<compile_context>
chip_gen: v6e
topology: v6e:2x2x1
jax: 0.10.0
libtpu: 0.0.40
codegen_flags: <defaults>
</compile_context>

<pallas_src>
import jax
import jax.numpy as jnp
from jax import lax
from jax.experimental import pallas as pl
from jax.experimental.pallas import tpu as pltpu


# ----------------------------------------------------------------------------
# Pallas kernels
# ----------------------------------------------------------------------------
def pred_kernel(feat_ref, w1_ref, b1_ref, w2_ref, b2_ref, pred_ref):
    # feat_ref: (N, HW, C) f32 -- global max over spatial axis == AdaptiveMaxPool2d(1)
    pooled = jnp.max(feat_ref[...], axis=1)                          # (N, C) f32
    # Linear(C, C//2) -> ReLU : bf16 operands on MXU, f32 accumulate, f32 elementwise
    h = jnp.dot(pooled.astype(jnp.bfloat16), w1_ref[...],
                preferred_element_type=jnp.float32) + b1_ref[...]
    h = jnp.maximum(h, 0.0)
    # Linear(C//2, OUT_BLK)  (this grid step's slice of the output columns)
    pred_ref[...] = jnp.dot(h.astype(jnp.bfloat16), w2_ref[...],
                            preferred_element_type=jnp.float32) + b2_ref[...]


def pool_kernel(feat_ref, out_ref):
    # AdaptiveMaxPool2d(1) + flatten only (return_feature path)
    out_ref[...] = jnp.max(feat_ref[...], axis=1)


def kernel_learning_predict(feat_nlc, w1, b1, w2, b2):
    """feat_nlc: (N, HW, C) f32.  Returns prediction (N, OUT) f32."""
    N, HW, C = feat_nlc.shape
    H1 = w1.shape[1]
    OUT = w2.shape[1]

    # bf16 weights: the head is HBM-byte bound (weights >> activations), not FLOP bound.
    w1_bf = w1.astype(jnp.bfloat16)
    b1_f = b1.reshape(1, H1).astype(jnp.float32)

    # Pad OUT up to a multiple of the block so it splits into lane-aligned,
    # per-TensorCore grid steps (v7x megacore; lane-dense stores on v5e/v6e).
    OUT_BLK = 1024 if OUT >= 1024 else ((OUT + 127) // 128) * 128
    OUT_PAD = pl.cdiv(OUT, OUT_BLK) * OUT_BLK
    w2_bf = jnp.pad(w2, ((0, 0), (0, OUT_PAD - OUT))).astype(jnp.bfloat16)
    b2_f = jnp.pad(b2, (0, OUT_PAD - OUT)).reshape(1, OUT_PAD).astype(jnp.float32)

    pred_pad = pl.pallas_call(
        pred_kernel,
        grid=(OUT_PAD // OUT_BLK,),
        in_specs=[
            pl.BlockSpec((N, HW, C), lambda j: (0, 0, 0)),   # feat, resident
            pl.BlockSpec((C, H1), lambda j: (0, 0)),         # w1, resident
            pl.BlockSpec((1, H1), lambda j: (0, 0)),         # b1, resident
            pl.BlockSpec((H1, OUT_BLK), lambda j: (0, j)),   # w2 column block
            pl.BlockSpec((1, OUT_BLK), lambda j: (0, j)),    # b2 column block
        ],
        out_specs=pl.BlockSpec((N, OUT_BLK), lambda j: (0, j)),
        out_shape=jax.ShapeDtypeStruct((N, OUT_PAD), jnp.float32),
        compiler_params=pltpu.CompilerParams(
            dimension_semantics=("parallel",)),
    )(feat_nlc, w1_bf, b1_f, w2_bf, b2_f)
    return pred_pad[:, :OUT]


def kernel_learning_pool(feat_nlc):
    """feat_nlc: (N, HW, C) f32.  Returns pooled+flattened feature (N, C)."""
    N, HW, C = feat_nlc.shape
    return pl.pallas_call(
        pool_kernel,
        grid=(1,),
        in_specs=[pl.BlockSpec((N, HW, C), lambda i: (0, 0, 0))],
        out_specs=pl.BlockSpec((N, C), lambda i: (0, 0)),
        out_shape=jax.ShapeDtypeStruct((N, C), jnp.float32),
    )(feat_nlc)


# ----------------------------------------------------------------------------
# shufflenet_v2_x0_5 backbone (plain JAX glue, NHWC / HWIO; deterministic
# synthetic weights, BatchNorm at default eval init == identity)
# ----------------------------------------------------------------------------
def conv2d(x, w, stride=1, padding=0, groups=1):
    # x: (N, H, W, C), w: (kh, kw, in_per_group, out)
    return lax.conv_general_dilated(
        x, w,
        window_strides=(stride, stride),
        padding=[(padding, padding), (padding, padding)],
        dimension_numbers=("NHWC", "HWIO", "NHWC"),
        feature_group_count=groups,
    )


def maxpool_3x3_s2_p1(x):
    return lax.reduce_window(
        x, -jnp.inf, lax.max,
        window_dimensions=(1, 3, 3, 1),
        window_strides=(1, 2, 2, 1),
        padding=((0, 0), (1, 1), (1, 1), (0, 0)),
    )


def channel_shuffle(x, groups=2):
    n, h, w, c = x.shape
    x = x.reshape(n, h, w, groups, c // groups)
    x = jnp.transpose(x, (0, 1, 2, 4, 3))
    return x.reshape(n, h, w, c)


def _init_conv(key, k, in_per_group, out_c):
    fan_in = in_per_group * k * k
    std = (2.0 / fan_in) ** 0.5
    return std * jax.random.normal(key, (k, k, in_per_group, out_c), jnp.float32)


def _init_linear(key, in_f, out_f):
    kw, kb = jax.random.split(key)
    bound = 1.0 / (in_f ** 0.5)
    w = jax.random.uniform(kw, (in_f, out_f), jnp.float32, -bound, bound)
    b = jax.random.uniform(kb, (out_f,), jnp.float32, -bound, bound)
    return w, b


def make_params(key, n_kernel=64, groups=3):
    keys = iter(jax.random.split(key, 128))
    nk = lambda: next(keys)
    p = {"conv1": _init_conv(nk(), 3, 3, 24)}

    def make_unit(inp, oup, stride):
        bf = oup // 2
        u = {"stride": stride}
        if stride > 1:
            u["b1_dw"] = _init_conv(nk(), 3, 1, inp)      # depthwise
            u["b1_pw"] = _init_conv(nk(), 1, inp, bf)
            b2_in = inp
        else:
            b2_in = bf
        u["b2_pw1"] = _init_conv(nk(), 1, b2_in, bf)
        u["b2_dw"] = _init_conv(nk(), 3, 1, bf)           # depthwise
        u["b2_pw2"] = _init_conv(nk(), 1, bf, bf)
        return u

    def make_stage(inp, oup, repeats):
        units = [make_unit(inp, oup, 2)]
        units += [make_unit(oup, oup, 1) for _ in range(repeats - 1)]
        return units

    p["stage2"] = make_stage(24, 48, 4)
    p["stage3"] = make_stage(48, 96, 8)
    p["stage4"] = make_stage(96, 192, 4)
    p["conv5"] = _init_conv(nk(), 1, 192, 1024)

    n_dims = 1024                                  # shufflenet.fc.in_features
    out_dim = n_kernel * (3 * 3 * 3 + 3) if groups == 3 else n_kernel * (3 * 3 * 3 * 3 + 3)
    p["fc1_w"], p["fc1_b"] = _init_linear(nk(), n_dims, n_dims // 2)
    p["fc2_w"], p["fc2_b"] = _init_linear(nk(), n_dims // 2, out_dim)
    return p


def inverted_residual(x, u):
    stride = u["stride"]
    if stride == 1:
        c = x.shape[-1]
        x1, b2 = x[..., : c // 2], x[..., c // 2:]
    else:
        b1 = conv2d(x, u["b1_dw"], stride=stride, padding=1, groups=x.shape[-1])
        x1 = jax.nn.relu(conv2d(b1, u["b1_pw"], stride=1, padding=0))
        b2 = x
    b2 = jax.nn.relu(conv2d(b2, u["b2_pw1"], stride=1, padding=0))
    b2 = conv2d(b2, u["b2_dw"], stride=stride, padding=1, groups=b2.shape[-1])
    b2 = jax.nn.relu(conv2d(b2, u["b2_pw2"], stride=1, padding=0))
    out = jnp.concatenate([x1, b2], axis=-1)
    return channel_shuffle(out, 2)


def backbone(x_nhwc, p):
    x = jax.nn.relu(conv2d(x_nhwc, p["conv1"], stride=2, padding=1))
    x = maxpool_3x3_s2_p1(x)
    for stage in ("stage2", "stage3", "stage4"):
        for u in p[stage]:
            x = inverted_residual(x, u)
    x = jax.nn.relu(conv2d(x, p["conv5"], stride=1, padding=0))
    return x                                                   # (N, Hf, Wf, 1024)


# ----------------------------------------------------------------------------
# Full forward (mirrors KernelLearning.forward)
# ----------------------------------------------------------------------------
def kernel_learning_forward(x_nchw, params, return_feature=False):
    # Single cheap transpose at the 3-channel input; backbone stays NHWC.
    x_nhwc = jnp.transpose(x_nchw, (0, 2, 3, 1))
    feat = backbone(x_nhwc, params)                            # (N, Hf, Wf, C)
    N, Hf, Wf, C = feat.shape
    feat_nlc = feat.reshape(N, Hf * Wf, C)                     # channels-last, no transpose
    if return_feature:
        return kernel_learning_pool(feat_nlc)
    return kernel_learning_predict(
        feat_nlc, params["fc1_w"], params["fc1_b"], params["fc2_w"], params["fc2_b"]
    )


if __name__ == "__main__":
    key = jax.random.PRNGKey(0)
    k_param, k_x = jax.random.split(key)

    n_kernel, groups = 64, 3
    params = make_params(k_param, n_kernel=n_kernel, groups=groups)

    # Small NCHW input (3-channel image; 64x64 survives the 5 stride-2 stages -> 2x2 feature map).
    x = jax.random.normal(k_x, (2, 3, 64, 64), jnp.float32)

    pred = jax.block_until_ready(
        jax.jit(lambda xx: kernel_learning_forward(xx, params, return_feature=False))(x)
    )
    feat = jax.block_until_ready(
        jax.jit(lambda xx: kernel_learning_forward(xx, params, return_feature=True))(x)
    )

    expected_out = n_kernel * (3 * 3 * 3 + 3)
    assert pred.shape == (2, expected_out), pred.shape
    assert feat.shape == (2, 1024), feat.shape
    assert jnp.all(jnp.isfinite(pred)) and jnp.all(jnp.isfinite(feat))
    print("KERNEL_OK")
</pallas_src>

<mosaic_0001>
module attributes {stable_mosaic.version = 11 : i64} {
  func.func @pred_kernel(%arg0: i32, %arg1: memref<2x4x1024xf32, #tpu.memory_space<vmem>>, %arg2: memref<1024x512xbf16, #tpu.memory_space<vmem>>, %arg3: memref<1x512xf32, #tpu.memory_space<vmem>>, %arg4: memref<512x1024xbf16, #tpu.memory_space<vmem>>, %arg5: memref<1x1024xf32, #tpu.memory_space<vmem>>, %arg6: memref<2x1024xf32, #tpu.memory_space<vmem>>) attributes {dimension_semantics = [#tpu.dimension_semantics<parallel>], iteration_bounds = array<i64: 2>, scalar_prefetch = 0 : i64, scratch_operands = 0 : i64, tpu.core_type = #tpu.core_type<tc>, window_params = [{pipeline_mode = #tpu.pipeline_mode<synchronous>, transform_indices = @transform_0, window_bounds = array<i64: 2, 4, 1024>}, {pipeline_mode = #tpu.pipeline_mode<synchronous>, transform_indices = @transform_1, window_bounds = array<i64: 1024, 512>}, {pipeline_mode = #tpu.pipeline_mode<synchronous>, transform_indices = @transform_2, window_bounds = array<i64: 1, 512>}, {transform_indices = @transform_3, window_bounds = array<i64: 512, 1024>}, {transform_indices = @transform_4, window_bounds = array<i64: 1, 1024>}, {transform_indices = @transform_5, window_bounds = array<i64: 2, 1024>}]} {
    %c0 = arith.constant 0 : index
    %c0_0 = arith.constant 0 : index
    %c0_1 = arith.constant 0 : index
    %0 = vector.load %arg1[%c0, %c0_0, %c0_1] : memref<2x4x1024xf32, #tpu.memory_space<vmem>>, vector<2x4x1024xf32>
    %cst = arith.constant dense<0xFF800000> : vector<2x1024xf32>
    %1 = vector.multi_reduction <maximumf>, %0, %cst [1] : vector<2x4x1024xf32> to vector<2x1024xf32>
    %2 = arith.truncf %1 : vector<2x1024xf32> to vector<2x1024xbf16>
    %c0_2 = arith.constant 0 : index
    %c0_3 = arith.constant 0 : index
    %3 = vector.load %arg2[%c0_2, %c0_3] : memref<1024x512xbf16, #tpu.memory_space<vmem>>, vector<1024x512xbf16>
    %cst_4 = arith.constant dense<0.000000e+00> : vector<2x512xf32>
    %4 = tpu.matmul %2, %3, %cst_4 {dimension_numbers = #tpu.dot_dimension_numbers<[1], [0], [0], [1], [0, 0, 1, 1], [], []>} : vector<2x1024xbf16>, vector<1024x512xbf16>, vector<2x512xf32> -> vector<2x512xf32>
    %c0_5 = arith.constant 0 : index
    %c0_6 = arith.constant 0 : index
    %5 = vector.load %arg3[%c0_5, %c0_6] : memref<1x512xf32, #tpu.memory_space<vmem>>, vector<1x512xf32>
    %6 = vector.broadcast %5 : vector<1x512xf32> to vector<2x512xf32>
    %7 = arith.addf %4, %6 : vector<2x512xf32>
    %cst_7 = arith.constant 0.000000e+00 : f32
    %8 = vector.broadcast %cst_7 : f32 to vector<2x512xf32>
    %9 = arith.maximumf %7, %8 : vector<2x512xf32>
    %10 = arith.truncf %9 : vector<2x512xf32> to vector<2x512xbf16>
    %c0_8 = arith.constant 0 : index
    %c0_9 = arith.constant 0 : index
    %11 = vector.load %arg4[%c0_8, %c0_9] : memref<512x1024xbf16, #tpu.memory_space<vmem>>, vector<512x1024xbf16>
    %cst_10 = arith.constant dense<0.000000e+00> : vector<2x1024xf32>
    %12 = tpu.matmul %10, %11, %cst_10 {dimension_numbers = #tpu.dot_dimension_numbers<[1], [0], [0], [1], [0, 0, 1, 1], [], []>} : vector<2x512xbf16>, vector<512x1024xbf16>, vector<2x1024xf32> -> vector<2x1024xf32>
    %c0_11 = arith.constant 0 : index
    %c0_12 = arith.constant 0 : index
    %13 = vector.load %arg5[%c0_11, %c0_12] : memref<1x1024xf32, #tpu.memory_space<vmem>>, vector<1x1024xf32>
    %14 = vector.broadcast %13 : vector<1x1024xf32> to vector<2x1024xf32>
    %15 = arith.addf %12, %14 : vector<2x1024xf32>
    %c0_13 = arith.constant 0 : index
    %c0_14 = arith.constant 0 : index
    %16 = vector.load %arg6[%c0_13, %c0_14] : memref<2x1024xf32, #tpu.memory_space<vmem>>, vector<2x1024xf32>
    tpu.vector_store %arg6[%c0_13, %c0_14], %15 {strides = array<i32>} : memref<2x1024xf32, #tpu.memory_space<vmem>>, vector<2x1024xf32>,
    return
  }
  func.func @transform_0(%arg0: i32) -> (i32, i32, i32) {
    %c0_i32 = arith.constant 0 : i32
    %c0_i32_0 = arith.constant 0 : i32
    %c0_i32_1 = arith.constant 0 : i32
    %c0_i32_2 = arith.constant 0 : i32
    return %c0_i32, %c0_i32_0, %c0_i32_1 : i32, i32, i32
  }
  func.func @transform_1(%arg0: i32) -> (i32, i32) {
    %c0_i32 = arith.constant 0 : i32
    %c0_i32_0 = arith.constant 0 : i32
    %c0_i32_1 = arith.constant 0 : i32
    return %c0_i32, %c0_i32_0 : i32, i32
  }
  func.func @transform_2(%arg0: i32) -> (i32, i32) {
    %c0_i32 = arith.constant 0 : i32
    %c0_i32_0 = arith.constant 0 : i32
    %c0_i32_1 = arith.constant 0 : i32
    return %c0_i32, %c0_i32_0 : i32, i32
  }
  func.func @transform_3(%arg0: i32) -> (i32, i32) {
    %c0_i32 = arith.constant 0 : i32
    %c0_i32_0 = arith.constant 0 : i32
    return %c0_i32, %arg0 : i32, i32
  }
  func.func @transform_4(%arg0: i32) -> (i32, i32) {
    %c0_i32 = arith.constant 0 : i32
    %c0_i32_0 = arith.constant 0 : i32
    return %c0_i32, %arg0 : i32, i32
  }
  func.func @transform_5(%arg0: i32) -> (i32, i32) {
    %c0_i32 = arith.constant 0 : i32
    %c0_i32_0 = arith.constant 0 : i32
    return %c0_i32, %arg0 : i32, i32
  }
}

</mosaic_0001>

<llo_original>
// kernel: _lambda_.1
$region0: #{_lambda_.1}
  #allocation0 [shape = 'u32[]', space=smem, size = 0x4, offset = 0x4, fixed_abs, tag = 'smem constant byte address 0x4 - core index']
  #allocation1 [shape = 'u32[144,128]{1,0:T(1,128)}', space=vmem, size = 0x12000, scoped, tag = 'internal scratch']
  %s0 = inlined_call_operand.vmem [shape: f32[2,4,1024], index: 0, kind: input, shape index: {}]
  %s1 = inlined_call_operand.vmem [shape: bf16[1024,512], index: 1, kind: input, shape index: {}]
  %s2 = inlined_call_operand.vmem [shape: f32[1,512], index: 2, kind: input, shape index: {}]
  %s3 = inlined_call_operand.vmem [shape: bf16[512,2048], index: 3, kind: input, shape index: {}]
  %s4 = inlined_call_operand.vmem [shape: f32[1,2048], index: 4, kind: input, shape index: {}]
  %s5 = inlined_call_operand.vmem [shape: f32[2,2048], index: 5, kind: output, shape index: {}]
  %s6 = sld [smem:[#allocation0]]
  $region76: #{_lambda_.1} parent=0
    _
  %s8 = ssub.s32 1, %s6
  %s9 = scalar_select 0, %s8, %s6
  $region1: #{_lambda_.1} parent=0
    #allocation2 [shape = 'u8[2097152]{0}', space=vmem, size = 0x200000, scoped, tag = 'input window, operand 3']
    loop: start=0, step=1, limit=4
    $region2: #{_lambda_.1} parent=1 // loop_pre_header
      _
    $region3: #{_lambda_.1} parent=1 // loop_header
      %s11 = sphi 0, %s15
      %p12 = scmp.ge.s32.totalorder %s11, 4
      %s19 = sphi 0, %s19
      %s21 = sphi 0, %s19
      %s22 = sphi 0, %s21
      %s36 = sphi 0, %s22
      %s40 = sphi 0, %s40
      %s42 = sphi 0, %s40
      %s43 = sphi 0, %s42
      %s57 = sphi 0, %s43
      %s61 = sphi 0, %s61
      %s63 = sphi 0, %s61
      %s64 = sphi 0, %s63
      %s78 = sphi 0, %s64
      %s84 = sphi 0, %s86
      %s87 = sphi 0, %s84
      %s88 = sphi 0, %s87
      %s104 = sphi 0, %s88
      %s110 = sphi 0, %s112
      %s113 = sphi 0, %s110
      %s114 = sphi 0, %s113
      %s130 = sphi 0, %s114
      %s136 = sphi 0, %s138
      %s139 = sphi 0, %s136
      %s140 = sphi 0, %s139
      %s156 = sphi 0, %s140
    $region4: #{_lambda_.1} parent=1 // loop_header_branch
      %14 = sbr.rel (%p12) target = $region8
    $region5: #{_lambda_.1} parent=1 // loop_body
      %s16 = ssub.s32 %s11, 1
      %s17 = ssub.s32 %s11, 2
      %s18 = sadd.s32 %s11, 1
      %s20 = sadd.s32 %s19, 1
      %p23 = scmp.eq.s32.totalorder %s11, 1
      %p24 = scmp.ne.s32.totalorder %s19, %s21
      %p25 = scmp.eq.s32.totalorder %s11, 0
      %p26 = por %p24, %p25
      %p27 = scmp.ne.s32.totalorder %s19, %s21
      %p28 = scmp.eq.s32.totalorder %s16, 1
      %p29 = por %p27, %p28
      %p30 = scmp.ne.s32.totalorder %s21, %s22
      %p31 = scmp.eq.s32.totalorder %s16, 0
      %p32 = por %p30, %p31
      %p33 = scmp.ne.s32.totalorder %s21, %s22
      %p34 = scmp.eq.s32.totalorder %s17, 1
      %p35 = por %p33, %p34
      %p37 = scmp.ne.s32.totalorder %s22, %s36
      %p38 = scmp.eq.s32.totalorder %s17, 0
      %p39 = por %p37, %p38
      %s41 = sadd.s32 %s40, 1
      %p44 = scmp.eq.s32.totalorder %s11, 1
      %p45 = scmp.ne.s32.totalorder %s40, %s42
      %p46 = scmp.eq.s32.totalorder %s11, 0
      %p47 = por %p45, %p46
      %p48 = scmp.ne.s32.totalorder %s40, %s42
      %p49 = scmp.eq.s32.totalorder %s16, 1
      %p50 = por %p48, %p49
      %p51 = scmp.ne.s32.totalorder %s42, %s43
      %p52 = scmp.eq.s32.totalorder %s16, 0
      %p53 = por %p51, %p52
      %p54 = scmp.ne.s32.totalorder %s42, %s43
      %p55 = scmp.eq.s32.totalorder %s17, 1
      %p56 = por %p54, %p55
      %p58 = scmp.ne.s32.totalorder %s43, %s57
      %p59 = scmp.eq.s32.totalorder %s17, 0
      %p60 = por %p58, %p59
      %s62 = sadd.s32 %s61, 1
      %p65 = scmp.eq.s32.totalorder %s11, 1
      %p66 = scmp.ne.s32.totalorder %s61, %s63
      %p67 = scmp.eq.s32.totalorder %s11, 0
      %p68 = por %p66, %p67
      %p69 = scmp.ne.s32.totalorder %s61, %s63
      %p70 = scmp.eq.s32.totalorder %s16, 1
      %p71 = por %p69, %p70
      %p72 = scmp.ne.s32.totalorder %s63, %s64
      %p73 = scmp.eq.s32.totalorder %s16, 0
      %p74 = por %p72, %p73
      %p75 = scmp.ne.s32.totalorder %s63, %s64
      %p76 = scmp.eq.s32.totalorder %s17, 1
      %p77 = por %p75, %p76
      %p79 = scmp.ne.s32.totalorder %s64, %s78
      %p80 = scmp.eq.s32.totalorder %s17, 0
      %p81 = por %p79, %p80
      %s82 = ssub.s32 %s11, %s18
      %p83 = scmp.eq.s32.totalorder %s82, 0
      %s85 = sadd.s32 %s84, 1
      %s86 = scalar_select %p83, %s84, %s85
      %p89 = pneg %p83
      %p90 = scmp.eq.s32.totalorder %s11, 1
      %p91 = por %p89, %p90
      %p92 = scmp.ne.s32.totalorder %s84, %s87
      %p93 = scmp.eq.s32.totalorder %s11, 0
      %p94 = por %p92, %p93
      %p95 = scmp.ne.s32.totalorder %s84, %s87
      %p96 = scmp.eq.s32.totalorder %s16, 1
      %p97 = por %p95, %p96
      %p98 = scmp.ne.s32.totalorder %s87, %s88
      %p99 = scmp.eq.s32.totalorder %s16, 0
      %p100 = por %p98, %p99
      %p101 = scmp.ne.s32.totalorder %s87, %s88
      %p102 = scmp.eq.s32.totalorder %s17, 1
      %p103 = por %p101, %p102
      %p105 = scmp.ne.s32.totalorder %s88, %s104
      %p106 = scmp.eq.s32.totalorder %s17, 0
      %p107 = por %p105, %p106
      %s108 = ssub.s32 %s11, %s18
      %p109 = scmp.eq.s32.totalorder %s108, 0
      %s111 = sadd.s32 %s110, 1
      %s112 = scalar_select %p109, %s110, %s111
      %p115 = pneg %p109
      %p116 = scmp.eq.s32.totalorder %s11, 1
      %p117 = por %p115, %p116
      %p118 = scmp.ne.s32.totalorder %s110, %s113
      %p119 = scmp.eq.s32.totalorder %s11, 0
      %p120 = por %p118, %p119
      %p121 = scmp.ne.s32.totalorder %s110, %s113
      %p122 = scmp.eq.s32.totalorder %s16, 1
      %p123 = por %p121, %p122
      %p124 = scmp.ne.s32.totalorder %s113, %s114
      %p125 = scmp.eq.s32.totalorder %s16, 0
      %p126 = por %p124, %p125
      %p127 = scmp.ne.s32.totalorder %s113, %s114
      %p128 = scmp.eq.s32.totalorder %s17, 1
      %p129 = por %p127, %p128
      %p131 = scmp.ne.s32.totalorder %s114, %s130
      %p132 = scmp.eq.s32.totalorder %s17, 0
      %p133 = por %p131, %p132
      %s134 = ssub.s32 %s11, %s18
      %p135 = scmp.eq.s32.totalorder %s134, 0
      %s137 = sadd.s32 %s136, 1
      %s138 = scalar_select %p135, %s136, %s137
      %p141 = pneg %p135
      %p142 = scmp.eq.s32.totalorder %s11, 1
      %p143 = por %p141, %p142
      %p144 = scmp.ne.s32.totalorder %s136, %s139
      %p145 = scmp.eq.s32.totalorder %s11, 0
      %p146 = por %p144, %p145
      %p147 = scmp.ne.s32.totalorder %s136, %s139
      %p148 = scmp.eq.s32.totalorder %s16, 1
      %p149 = por %p147, %p148
      %p150 = scmp.ne.s32.totalorder %s139, %s140
      %p151 = scmp.eq.s32.totalorder %s16, 0
      %p152 = por %p150, %p151
      %p153 = scmp.ne.s32.totalorder %s139, %s140
      %p154 = scmp.eq.s32.totalorder %s17, 1
      %p155 = por %p153, %p154
      %p157 = scmp.ne.s32.totalorder %s140, %s156
      %p158 = scmp.eq.s32.totalorder %s17, 0
      %p159 = por %p157, %p158
      %p160 = scmp.le.s32.totalorder 1, %s11
      %p161 = scmp.lt.s32.totalorder %s11, 3
      %p162 = pnand %p160, %p161
      %p163 = pneg %p162
      // Predicated region
      $region9: #{_lambda_.1} parent=5 // pred_check
        _
      $region10: #{_lambda_.1} parent=5 // pred_check_branch
        %165 = sbr.rel (%p162) target = $region12
      $region11: #{_lambda_.1} parent=5 // pred_region
        %s166 = ssub.s32 %s11, 1
        // Predicated region
        $region13: #{_lambda_.1} parent=11 // pred_check
          %p167 = pneg %p32
        $region14: #{_lambda_.1} parent=11 // pred_check_branch
          %169 = sbr.rel (%p167) target = $region16
        $region15: #{_lambda_.1} parent=11 // pred_region
          _
        $region16: #{_lambda_.1} parent=11 // pred_fallthru
          _
        // Predicated region
        $region17: #{_lambda_.1} parent=11 // pred_check
          %p170 = pneg %p53
        $region18: #{_lambda_.1} parent=11 // pred_check_branch
          %172 = sbr.rel (%p170) target = $region20
        $region19: #{_lambda_.1} parent=11 // pred_region
          _
        $region20: #{_lambda_.1} parent=11 // pred_fallthru
          _
        // Predicated region
        $region21: #{_lambda_.1} parent=11 // pred_check
          %p173 = pneg %p74
        $region22: #{_lambda_.1} parent=11 // pred_check_branch
          %175 = sbr.rel (%p173) target = $region24
        $region23: #{_lambda_.1} parent=11 // pred_region
          _
        $region24: #{_lambda_.1} parent=11 // pred_fallthru
          _
      $region12: #{_lambda_.1} parent=5 // pred_fallthru
        _
      %p176 = scmp.lt.s32.totalorder %s11, 2
      // Predicated region
      $region25: #{_lambda_.1} parent=5 // pred_check
        %p177 = pneg %p176
      $region26: #{_lambda_.1} parent=5 // pred_check_branch
        %179 = sbr.rel (%p177) target = $region28
      $region27: #{_lambda_.1} parent=5 // pred_region
        // Predicated region
        $region29: #{_lambda_.1} parent=27 // pred_check
          %p180 = pneg %p94
        $region30: #{_lambda_.1} parent=27 // pred_check_branch
          %182 = sbr.rel (%p180) target = $region32
        $region31: #{_lambda_.1} parent=27 // pred_region
          %s183 = sand.u32 %s84, 1
          %s184 = sand.u32 %s84, 1
          %s185 = smul.addr %s184, 2048
          %s186 = scalar_lea.vmem [#allocation2], %s185
          %s187 = smul.u32 8, %s11
          %s188 = smul.addr %s187, 4
          %s189 = scalar_lea.vmem %s3, %s188
          // Predicated region
          $region33: #{_lambda_.1} parent=31 // pred_check
            _
          $region34: #{_lambda_.1} parent=31 // pred_check_branch
            %191 = sbr.rel (0) target = $region36
          $region35: #{_lambda_.1} parent=31 // pred_region
            // Predicated region
            $region37: #{_lambda_.1} parent=35 // pred_check
              _
            $region38: #{_lambda_.1} parent=35 // pred_check_branch
              %193 = sbr.rel (0) target = $region40
            $region39: #{_lambda_.1} parent=35 // pred_region
              loop: start=0, step=1, limit=1
              $region41: #{_lambda_.1} parent=39 // loop_pre_header
                _
              $region42: #{_lambda_.1} parent=39 // loop_header
                %s195 = sphi 0, %s199
                %p196 = scmp.ge.s32.totalorder %s195, 1
                %s200 = sphi %s189, %s189
                %s201 = sphi %s186, %s186
              $region43: #{_lambda_.1} parent=39 // loop_header_branch
                %198 = sbr.rel (%p196) target = $region47
              $region44: #{_lambda_.1} parent=39 // loop_body
                %v202 = vld [vmem:[%s200] sm:$0xff]
                %203 = vst [vmem:[%s201] sm:$0xff] %v202
                %v204 = vld [vmem:[%s200 + $0x8] sm:$0xff]
                %205 = vst [vmem:[%s201 + $0x8] sm:$0xff] %v204
                %v206 = vld [vmem:[%s200 + $0x10] sm:$0xff]
                %207 = vst [vmem:[%s201 + $0x10] sm:$0xff] %v206
                %v208 = vld [vmem:[%s200 + $0x18] sm:$0xff]
                %209 = vst [vmem:[%s201 + $0x18] sm:$0xff] %v208
                %v210 = vld [vmem:[%s200 + $0x40] sm:$0xff]
                %211 = vst [vmem:[%s201 + $0x20] sm:$0xff] %v210
                %v212 = vld [vmem:[%s200 + $0x48] sm:$0xff]
                %213 = vst [vmem:[%s201 + $0x28] sm:$0xff] %v212
                %v214 = vld [vmem:[%s200 + $0x50] sm:$0xff]
                %215 = vst [vmem:[%s201 + $0x30] sm:$0xff] %v214
                %v216 = vld [vmem:[%s200 + $0x58] sm:$0xff]
                %217 = vst [vmem:[%s201 + $0x38] sm:$0xff] %v216
                %v218 = vld [vmem:[%s200 + $0x80] sm:$0xff]
                %219 = vst [vmem:[%s201 + $0x40] sm:$0xff] %v218
                %v220 = vld [vmem:[%s200 + $0x88] sm:$0xff]
                %221 = vst [vmem:[%s201 + $0x48] sm:$0xff] %v220
                %v222 = vld [vmem:[%s200 + $0x90] sm:$0xff]
                %223 = vst [vmem:[%s201 + $0x50] sm:$0xff] %v222
                %v224 = vld [vmem:[%s200 + $0x98] sm:$0xff]
                %225 = vst [vmem:[%s201 + $0x58] sm:$0xff] %v224
                %v226 = vld [vmem:[%s200 + $0xc0] sm:$0xff]
                %227 = vst [vmem:[%s201 + $0x60] sm:$0xff] %v226
                %v228 = vld [vmem:[%s200 + $0xc8] sm:$0xff]
                %229 = vst [vmem:[%s201 + $0x68] sm:$0xff] %v228
                %v230 = vld [vmem:[%s200 + $0xd0] sm:$0xff]
                %231 = vst [vmem:[%s201 + $0x70] sm:$0xff] %v230
                %v232 = vld [vmem:[%s200 + $0xd8] sm:$0xff]
                %233 = vst [vmem:[%s201 + $0x78] sm:$0xff] %v232
                %v234 = vld [vmem:[%s200 + $0x100] sm:$0xff]
                %235 = vst [vmem:[%s201 + $0x80] sm:$0xff] %v234
                %v236 = vld [vmem:[%s200 + $0x108] sm:$0xff]
                %237 = vst [vmem:[%s201 + $0x88] sm:$0xff] %v236
                %v238 = vld [vmem:[%s200 + $0x110] sm:$0xff]
                %239 = vst [vmem:[%s201 + $0x90] sm:$0xff] %v238
                %v240 = vld [vmem:[%s200 + $0x118] sm:$0xff]
                %241 = vst [vmem:[%s201 + $0x98] sm:$0xff] %v240
                %v242 = vld [vmem:[%s200 + $0x140] sm:$0xff]
                %243 = vst [vmem:[%s201 + $0xa0] sm:$0xff] %v242
                %v244 = vld [vmem:[%s200 + $0x148] sm:$0xff]
                %245 = vst [vmem:[%s201 + $0xa8] sm:$0xff] %v244
                %v246 = vld [vmem:[%s200 + $0x150] sm:$0xff]
                %247 = vst [vmem:[%s201 + $0xb0] sm:$0xff] %v246
                %v248 = vld [vmem:[%s200 + $0x158] sm:$0xff]
                %249 = vst [vmem:[%s201 + $0xb8] sm:$0xff] %v248
                %v250 = vld [vmem:[%s200 + $0x180] sm:$0xff]
                %251 = vst [vmem:[%s201 + $0xc0] sm:$0xff] %v250
                %v252 = vld [vmem:[%s200 + $0x188] sm:$0xff]
                %253 = vst [vmem:[%s201 + $0xc8] sm:$0xff] %v252
                %v254 = vld [vmem:[%s200 + $0x190] sm:$0xff]
                %255 = vst [vmem:[%s201 + $0xd0] sm:$0xff] %v254
                %v256 = vld [vmem:[%s200 + $0x198] sm:$0xff]
                %257 = vst [vmem:[%s201 + $0xd8] sm:$0xff] %v256
                %v258 = vld [vmem:[%s200 + $0x1c0] sm:$0xff]
                %259 = vst [vmem:[%s201 + $0xe0] sm:$0xff] %v258
                %v260 = vld [vmem:[%s200 + $0x1c8] sm:$0xff]
                %261 = vst [vmem:[%s201 + $0xe8] sm:$0xff] %v260
                %v262 = vld [vmem:[%s200 + $0x1d0] sm:$0xff]
                %263 = vst [vmem:[%s201 + $0xf0] sm:$0xff] %v262
                %v264 = vld [vmem:[%s200 + $0x1d8] sm:$0xff]
                %265 = vst [vmem:[%s201 + $0xf8] sm:$0xff] %v264
                %v266 = vld [vmem:[%s200 + $0x200] sm:$0xff]
                %267 = vst [vmem:[%s201 + $0x100] sm:$0xff] %v266
                %v268 = vld [vmem:[%s200 + $0x208] sm:$0xff]
                %269 = vst [vmem:[%s201 + $0x108] sm:$0xff] %v268
                %v270 = vld [vmem:[%s200 + $0x210] sm:$0xff]
                %271 = vst [vmem:[%s201 + $0x110] sm:$0xff] %v270
                %v272 = vld [vmem:[%s200 + $0x218] sm:$0xff]
                %273 = vst [vmem:[%s201 + $0x118] sm:$0xff] %v272
                %v274 = vld [vmem:[%s200 + $0x240] sm:$0xff]
                %275 = vst [vmem:[%s201 + $0x120] sm:$0xff] %v274
                %v276 = vld [vmem:[%s200 + $0x248] sm:$0xff]
                %277 = vst [vmem:[%s201 + $0x128] sm:$0xff] %v276
                %v278 = vld [vmem:[%s200 + $0x250] sm:$0xff]
                %279 = vst [vmem:[%s201 + $0x130] sm:$0xff] %v278
                %v280 = vld [vmem:[%s200 + $0x258] sm:$0xff]
                %281 = vst [vmem:[%s201 + $0x138] sm:$0xff] %v280
                %v282 = vld [vmem:[%s200 + $0x280] sm:$0xff]
                %283 = vst [vmem:[%s201 + $0x140] sm:$0xff] %v282
                %v284 = vld [vmem:[%s200 + $0x288] sm:$0xff]
                %285 = vst [vmem:[%s201 + $0x148] sm:$0xff] %v284
                %v286 = vld [vmem:[%s200 + $0x290] sm:$0xff]
                %287 = vst [vmem:[%s201 + $0x150] sm:$0xff] %v286
                %v288 = vld [vmem:[%s200 + $0x298] sm:$0xff]
                %289 = vst [vmem:[%s201 + $0x158] sm:$0xff] %v288
                %v290 = vld [vmem:[%s200 + $0x2c0] sm:$0xff]
                %291 = vst [vmem:[%s201 + $0x160] sm:$0xff] %v290
                %v292 = vld [vmem:[%s200 + $0x2c8] sm:$0xff]
                %293 = vst [vmem:[%s201 + $0x168] sm:$0xff] %v292
                %v294 = vld [vmem:[%s200 + $0x2d0] sm:$0xff]
                %295 = vst [vmem:[%s201 + $0x170] sm:$0xff] %v294
                %v296 = vld [vmem:[%s200 + $0x2d8] sm:$0xff]
                %297 = vst [vmem:[%s201 + $0x178] sm:$0xff] %v296
                %v298 = vld [vmem:[%s200 + $0x300] sm:$0xff]
                %299 = vst [vmem:[%s201 + $0x180] sm:$0xff] %v298
                %v300 = vld [vmem:[%s200 + $0x308] sm:$0xff]
                %301 = vst [vmem:[%s201 + $0x188] sm:$0xff] %v300
                %v302 = vld [vmem:[%s200 + $0x310] sm:$0xff]
                %303 = vst [vmem:[%s201 + $0x190] sm:$0xff] %v302
                %v304 = vld [vmem:[%s200 + $0x318] sm:$0xff]
                %305 = vst [vmem:[%s201 + $0x198] sm:$0xff] %v304
                %v306 = vld [vmem:[%s200 + $0x340] sm:$0xff]
                %307 = vst [vmem:[%s201 + $0x1a0] sm:$0xff] %v306
                %v308 = vld [vmem:[%s200 + $0x348] sm:$0xff]
                %309 = vst [vmem:[%s201 + $0x1a8] sm:$0xff] %v308
                %v310 = vld [vmem:[%s200 + $0x350] sm:$0xff]
                %311 = vst [vmem:[%s201 + $0x1b0] sm:$0xff] %v310
                %v312 = vld [vmem:[%s200 + $0x358] sm:$0xff]
                %313 = vst [vmem:[%s201 + $0x1b8] sm:$0xff] %v312
                %v314 = vld [vmem:[%s200 + $0x380] sm:$0xff]
                %315 = vst [vmem:[%s201 + $0x1c0] sm:$0xff] %v314
                %v316 = vld [vmem:[%s200 + $0x388] sm:$0xff]
                %317 = vst [vmem:[%s201 + $0x1c8] sm:$0xff] %v316
                %v318 = vld [vmem:[%s200 + $0x390] sm:$0xff]
                %319 = vst [vmem:[%s201 + $0x1d0] sm:$0xff] %v318
                %v320 = vld [vmem:[%s200 + $0x398] sm:$0xff]
                %321 = vst [vmem:[%s201 + $0x1d8] sm:$0xff] %v320
                %v322 = vld [vmem:[%s200 + $0x3c0] sm:$0xff]
                %323 = vst [vmem:[%s201 + $0x1e0] sm:$0xff] %v322
                %v324 = vld [vmem:[%s200 + $0x3c8] sm:$0xff]
                %325 = vst [vmem:[%s201 + $0x1e8] sm:$0xff] %v324
                %v326 = vld [vmem:[%s200 + $0x3d0] sm:$0xff]
                %327 = vst [vmem:[%s201 + $0x1f0] sm:$0xff] %v326
                %v328 = vld [vmem:[%s200 + $0x3d8] sm:$0xff]
                %329 = vst [vmem:[%s201 + $0x1f8] sm:$0xff] %v328
                %v330 = vld [vmem:[%s200 + $0x400] sm:$0xff]
                %331 = vst [vmem:[%s201 + $0x200] sm:$0xff] %v330
                %v332 = vld [vmem:[%s200 + $0x408] sm:$0xff]
                %333 = vst [vmem:[%s201 + $0x208] sm:$0xff] %v332
                %v334 = vld [vmem:[%s200 + $0x410] sm:$0xff]
                %335 = vst [vmem:[%s201 + $0x210] sm:$0xff] %v334
                %v336 = vld [vmem:[%s200 + $0x418] sm:$0xff]
                %337 = vst [vmem:[%s201 + $0x218] sm:$0xff] %v336
                %v338 = vld [vmem:[%s200 + $0x440] sm:$0xff]
                %339 = vst [vmem:[%s201 + $0x220] sm:$0xff] %v338
                %v340 = vld [vmem:[%s200 + $0x448] sm:$0xff]
                %341 = vst [vmem:[%s201 + $0x228] sm:$0xff] %v340
                %v342 = vld [vmem:[%s200 + $0x450] sm:$0xff]
                %343 = vst [vmem:[%s201 + $0x230] sm:$0xff] %v342
                %v344 = vld [vmem:[%s200 + $0x458] sm:$0xff]
                %345 = vst [vmem:[%s201 + $0x238] sm:$0xff] %v344
                %v346 = vld [vmem:[%s200 + $0x480] sm:$0xff]
                %347 = vst [vmem:[%s201 + $0x240] sm:$0xff] %v346
                %v348 = vld [vmem:[%s200 + $0x488] sm:$0xff]
                %349 = vst [vmem:[%s201 + $0x248] sm:$0xff] %v348
                %v350 = vld [vmem:[%s200 + $0x490] sm:$0xff]
                %351 = vst [vmem:[%s201 + $0x250] sm:$0xff] %v350
                %v352 = vld [vmem:[%s200 + $0x498] sm:$0xff]
                %353 = vst [vmem:[%s201 + $0x258] sm:$0xff] %v352
                %v354 = vld [vmem:[%s200 + $0x4c0] sm:$0xff]
                %355 = vst [vmem:[%s201 + $0x260] sm:$0xff] %v354
                %v356 = vld [vmem:[%s200 + $0x4c8] sm:$0xff]
                %357 = vst [vmem:[%s201 + $0x268] sm:$0xff] %v356
                %v358 = vld [vmem:[%s200 + $0x4d0] sm:$0xff]
                %359 = vst [vmem:[%s201 + $0x270] sm:$0xff] %v358
                %v360 = vld [vmem:[%s200 + $0x4d8] sm:$0xff]
                %361 = vst [vmem:[%s201 + $0x278] sm:$0xff] %v360
                %v362 = vld [vmem:[%s200 + $0x500] sm:$0xff]
                %363 = vst [vmem:[%s201 + $0x280] sm:$0xff] %v362
                %v364 = vld [vmem:[%s200 + $0x508] sm:$0xff]
                %365 = vst [vmem:[%s201 + $0x288] sm:$0xff] %v364
                %v366 = vld [vmem:[%s200 + $0x510] sm:$0xff]
                %367 = vst [vmem:[%s201 + $0x290] sm:$0xff] %v366
                %v368 = vld [vmem:[%s200 + $0x518] sm:$0xff]
                %369 = vst [vmem:[%s201 + $0x298] sm:$0xff] %v368
                %v370 = vld [vmem:[%s200 + $0x540] sm:$0xff]
                %371 = vst [vmem:[%s201 + $0x2a0] sm:$0xff] %v370
                %v372 = vld [vmem:[%s200 + $0x548] sm:$0xff]
                %373 = vst [vmem:[%s201 + $0x2a8] sm:$0xff] %v372
                %v374 = vld [vmem:[%s200 + $0x550] sm:$0xff]
                %375 = vst [vmem:[%s201 + $0x2b0] sm:$0xff] %v374
                %v376 = vld [vmem:[%s200 + $0x558] sm:$0xff]
                %377 = vst [vmem:[%s201 + $0x2b8] sm:$0xff] %v376
                %v378 = vld [vmem:[%s200 + $0x580] sm:$0xff]
                %379 = vst [vmem:[%s201 + $0x2c0] sm:$0xff] %v378
                %v380 = vld [vmem:[%s200 + $0x588] sm:$0xff]
                %381 = vst [vmem:[%s201 + $0x2c8] sm:$0xff] %v380
                %v382 = vld [vmem:[%s200 + $0x590] sm:$0xff]
                %383 = vst [vmem:[%s201 + $0x2d0] sm:$0xff] %v382
                %v384 = vld [vmem:[%s200 + $0x598] sm:$0xff]
                %385 = vst [vmem:[%s201 + $0x2d8] sm:$0xff] %v384
                %v386 = vld [vmem:[%s200 + $0x5c0] sm:$0xff]
                %387 = vst [vmem:[%s201 + $0x2e0] sm:$0xff] %v386
                %v388 = vld [vmem:[%s200 + $0x5c8] sm:$0xff]
                %389 = vst [vmem:[%s201 + $0x2e8] sm:$0xff] %v388
                %v390 = vld [vmem:[%s200 + $0x5d0] sm:$0xff]
                %391 = vst [vmem:[%s201 + $0x2f0] sm:$0xff] %v390
                %v392 = vld [vmem:[%s200 + $0x5d8] sm:$0xff]
                %393 = vst [vmem:[%s201 + $0x2f8] sm:$0xff] %v392
                %v394 = vld [vmem:[%s200 + $0x600] sm:$0xff]
                %395 = vst [vmem:[%s201 + $0x300] sm:$0xff] %v394
                %v396 = vld [vmem:[%s200 + $0x608] sm:$0xff]
                %397 = vst [vmem:[%s201 + $0x308] sm:$0xff] %v396
                %v398 = vld [vmem:[%s200 + $0x610] sm:$0xff]
                %399 = vst [vmem:[%s201 + $0x310] sm:$0xff] %v398
                %v400 = vld [vmem:[%s200 + $0x618] sm:$0xff]
                %401 = vst [vmem:[%s201 + $0x318] sm:$0xff] %v400
                %v402 = vld [vmem:[%s200 + $0x640] sm:$0xff]
                %403 = vst [vmem:[%s201 + $0x320] sm:$0xff] %v402
                %v404 = vld [vmem:[%s200 + $0x648] sm:$0xff]
                %405 = vst [vmem:[%s201 + $0x328] sm:$0xff] %v404
                %v406 = vld [vmem:[%s200 + $0x650] sm:$0xff]
                %407 = vst [vmem:[%s201 + $0x330] sm:$0xff] %v406
                %v408 = vld [vmem:[%s200 + $0x658] sm:$0xff]
                %409 = vst [vmem:[%s201 + $0x338] sm:$0xff] %v408
                %v410 = vld [vmem:[%s200 + $0x680] sm:$0xff]
                %411 = vst [vmem:[%s201 + $0x340] sm:$0xff] %v410
                %v412 = vld [vmem:[%s200 + $0x688] sm:$0xff]
                %413 = vst [vmem:[%s201 + $0x348] sm:$0xff] %v412
                %v414 = vld [vmem:[%s200 + $0x690] sm:$0xff]
                %415 = vst [vmem:[%s201 + $0x350] sm:$0xff] %v414
                %v416 = vld [vmem:[%s200 + $0x698] sm:$0xff]
                %417 = vst [vmem:[%s201 + $0x358] sm:$0xff] %v416
                %v418 = vld [vmem:[%s200 + $0x6c0] sm:$0xff]
                %419 = vst [vmem:[%s201 + $0x360] sm:$0xff] %v418
                %v420 = vld [vmem:[%s200 + $0x6c8] sm:$0xff]
                %421 = vst [vmem:[%s201 + $0x368] sm:$0xff] %v420
                %v422 = vld [vmem:[%s200 + $0x6d0] sm:$0xff]
                %423 = vst [vmem:[%s201 + $0x370] sm:$0xff] %v422
                %v424 = vld [vmem:[%s200 + $0x6d8] sm:$0xff]
                %425 = vst [vmem:[%s201 + $0x378] sm:$0xff] %v424
                %v426 = vld [vmem:[%s200 + $0x700] sm:$0xff]
                %427 = vst [vmem:[%s201 + $0x380] sm:$0xff] %v426
                %v428 = vld [vmem:[%s200 + $0x708] sm:$0xff]
                %429 = vst [vmem:[%s201 + $0x388] sm:$0xff] %v428
                %v430 = vld [vmem:[%s200 + $0x710] sm:$0xff]
                %431 = vst [vmem:[%s201 + $0x390] sm:$0xff] %v430
                %v432 = vld [vmem:[%s200 + $0x718] sm:$0xff]
                %433 = vst [vmem:[%s201 + $0x398] sm:$0xff] %v432
                %v434 = vld [vmem:[%s200 + $0x740] sm:$0xff]
                %435 = vst [vmem:[%s201 + $0x3a0] sm:$0xff] %v434
                %v436 = vld [vmem:[%s200 + $0x748] sm:$0xff]
                %437 = vst [vmem:[%s201 + $0x3a8] sm:$0xff] %v436
                %v438 = vld [vmem:[%s200 + $0x750] sm:$0xff]
                %439 = vst [vmem:[%s201 + $0x3b0] sm:$0xff] %v438
                %v440 = vld [vmem:[%s200 + $0x758] sm:$0xff]
                %441 = vst [vmem:[%s201 + $0x3b8] sm:$0xff] %v440
                %v442 = vld [vmem:[%s200 + $0x780] sm:$0xff]
                %443 = vst [vmem:[%s201 + $0x3c0] sm:$0xff] %v442
                %v444 = vld [vmem:[%s200 + $0x788] sm:$0xff]
                %445 = vst [vmem:[%s201 + $0x3c8] sm:$0xff] %v444
                %v446 = vld [vmem:[%s200 + $0x790] sm:$0xff]
                %447 = vst [vmem:[%s201 + $0x3d0] sm:$0xff] %v446
                %v448 = vld [vmem:[%s200 + $0x798] sm:$0xff]
                %449 = vst [vmem:[%s201 + $0x3d8] sm:$0xff] %v448
                %v450 = vld [vmem:[%s200 + $0x7c0] sm:$0xff]
                %451 = vst [vmem:[%s201 + $0x3e0] sm:$0xff] %v450
                %v452 = vld [vmem:[%s200 + $0x7c8] sm:$0xff]
                %453 = vst [vmem:[%s201 + $0x3e8] sm:$0xff] %v452
                %v454 = vld [vmem:[%s200 + $0x7d0] sm:$0xff]
                %455 = vst [vmem:[%s201 + $0x3f0] sm:$0xff] %v454
                %v456 = vld [vmem:[%s200 + $0x7d8] sm:$0xff]
                %457 = vst [vmem:[%s201 + $0x3f8] sm:$0xff] %v456
                %v458 = vld [vmem:[%s200 + $0x800] sm:$0xff]
                %459 = vst [vmem:[%s201 + $0x400] sm:$0xff] %v458
                %v460 = vld [vmem:[%s200 + $0x808] sm:$0xff]
                %461 = vst [vmem:[%s201 + $0x408] sm:$0xff] %v460
                %v462 = vld [vmem:[%s200 + $0x810] sm:$0xff]
                %463 = vst [vmem:[%s201 + $0x410] sm:$0xff] %v462
                %v464 = vld [vmem:[%s200 + $0x818] sm:$0xff]
                %465 = vst [vmem:[%s201 + $0x418] sm:$0xff] %v464
                %v466 = vld [vmem:[%s200 + $0x840] sm:$0xff]
                %467 = vst [vmem:[%s201 + $0x420] sm:$0xff] %v466
                %v468 = vld [vmem:[%s200 + $0x848] sm:$0xff]
                %469 = vst [vmem:[%s201 + $0x428] sm:$0xff] %v468
                %v470 = vld [vmem:[%s200 + $0x850] sm:$0xff]
                %471 = vst [vmem:[%s201 + $0x430] sm:$0xff] %v470
                %v472 = vld [vmem:[%s200 + $0x858] sm:$0xff]
                %473 = vst [vmem:[%s201 + $0x438] sm:$0xff] %v472
                %v474 = vld [vmem:[%s200 + $0x880] sm:$0xff]
                %475 = vst [vmem:[%s201 + $0x440] sm:$0xff] %v474
                %v476 = vld [vmem:[%s200 + $0x888] sm:$0xff]
                %477 = vst [vmem:[%s201 + $0x448] sm:$0xff] %v476
                %v478 = vld [vmem:[%s200 + $0x890] sm:$0xff]
                %479 = vst [vmem:[%s201 + $0x450] sm:$0xff] %v478
                %v480 = vld [vmem:[%s200 + $0x898] sm:$0xff]
                %481 = vst [vmem:[%s201 + $0x458] sm:$0xff] %v480
                %v482 = vld [vmem:[%s200 + $0x8c0] sm:$0xff]
                %483 = vst [vmem:[%s201 + $0x460] sm:$0xff] %v482
                %v484 = vld [vmem:[%s200 + $0x8c8] sm:$0xff]
                %485 = vst [vmem:[%s201 + $0x468] sm:$0xff] %v484
                %v486 = vld [vmem:[%s200 + $0x8d0] sm:$0xff]
                %487 = vst [vmem:[%s201 + $0x470] sm:$0xff] %v486
                %v488 = vld [vmem:[%s200 + $0x8d8] sm:$0xff]
                %489 = vst [vmem:[%s201 + $0x478] sm:$0xff] %v488
                %v490 = vld [vmem:[%s200 + $0x900] sm:$0xff]
                %491 = vst [vmem:[%s201 + $0x480] sm:$0xff] %v490
                %v492 = vld [vmem:[%s200 + $0x908] sm:$0xff]
                %493 = vst [vmem:[%s201 + $0x488] sm:$0xff] %v492
                %v494 = vld [vmem:[%s200 + $0x910] sm:$0xff]
                %495 = vst [vmem:[%s201 + $0x490] sm:$0xff] %v494
                %v496 = vld [vmem:[%s200 + $0x918] sm:$0xff]
                %497 = vst [vmem:[%s201 + $0x498] sm:$0xff] %v496
                %v498 = vld [vmem:[%s200 + $0x940] sm:$0xff]
                %499 = vst [vmem:[%s201 + $0x4a0] sm:$0xff] %v498
                %v500 = vld [vmem:[%s200 + $0x948] sm:$0xff]
                %501 = vst [vmem:[%s201 + $0x4a8] sm:$0xff] %v500
                %v502 = vld [vmem:[%s200 + $0x950] sm:$0xff]
                %503 = vst [vmem:[%s201 + $0x4b0] sm:$0xff] %v502
                %v504 = vld [vmem:[%s200 + $0x958] sm:$0xff]
                %505 = vst [vmem:[%s201 + $0x4b8] sm:$0xff] %v504
                %v506 = vld [vmem:[%s200 + $0x980] sm:$0xff]
                %507 = vst [vmem:[%s201 + $0x4c0] sm:$0xff] %v506
                %v508 = vld [vmem:[%s200 + $0x988] sm:$0xff]
                %509 = vst [vmem:[%s201 + $0x4c8] sm:$0xff] %v508
                %v510 = vld [vmem:[%s200 + $0x990] sm:$0xff]
                %511 = vst [vmem:[%s201 + $0x4d0] sm:$0xff] %v510
                %v512 = vld [vmem:[%s200 + $0x998] sm:$0xff]
                %513 = vst [vmem:[%s201 + $0x4d8] sm:$0xff] %v512
                %v514 = vld [vmem:[%s200 + $0x9c0] sm:$0xff]
                %515 = vst [vmem:[%s201 + $0x4e0] sm:$0xff] %v514
                %v516 = vld [vmem:[%s200 + $0x9c8] sm:$0xff]
                %517 = vst [vmem:[%s201 + $0x4e8] sm:$0xff] %v516
                %v518 = vld [vmem:[%s200 + $0x9d0] sm:$0xff]
                %519 = vst [vmem:[%s201 + $0x4f0] sm:$0xff] %v518
                %v520 = vld [vmem:[%s200 + $0x9d8] sm:$0xff]
                %521 = vst [vmem:[%s201 + $0x4f8] sm:$0xff] %v520
                %v522 = vld [vmem:[%s200 + $0xa00] sm:$0xff]
                %523 = vst [vmem:[%s201 + $0x500] sm:$0xff] %v522
                %v524 = vld [vmem:[%s200 + $0xa08] sm:$0xff]
                %525 = vst [vmem:[%s201 + $0x508] sm:$0xff] %v524
                %v526 = vld [vmem:[%s200 + $0xa10] sm:$0xff]
                %527 = vst [vmem:[%s201 + $0x510] sm:$0xff] %v526
                %v528 = vld [vmem:[%s200 + $0xa18] sm:$0xff]
                %529 = vst [vmem:[%s201 + $0x518] sm:$0xff] %v528
                %v530 = vld [vmem:[%s200 + $0xa40] sm:$0xff]
                %531 = vst [vmem:[%s201 + $0x520] sm:$0xff] %v530
                %v532 = vld [vmem:[%s200 + $0xa48] sm:$0xff]
                %533 = vst [vmem:[%s201 + $0x528] sm:$0xff] %v532
                %v534 = vld [vmem:[%s200 + $0xa50] sm:$0xff]
                %535 = vst [vmem:[%s201 + $0x530] sm:$0xff] %v534
                %v536 = vld [vmem:[%s200 + $0xa58] sm:$0xff]
                %537 = vst [vmem:[%s201 + $0x538] sm:$0xff] %v536
                %v538 = vld [vmem:[%s200 + $0xa80] sm:$0xff]
                %539 = vst [vmem:[%s201 + $0x540] sm:$0xff] %v538
                %v540 = vld [vmem:[%s200 + $0xa88] sm:$0xff]
                %541 = vst [vmem:[%s201 + $0x548] sm:$0xff] %v540
                %v542 = vld [vmem:[%s200 + $0xa90] sm:$0xff]
                %543 = vst [vmem:[%s201 + $0x550] sm:$0xff] %v542
                %v544 = vld [vmem:[%s200 + $0xa98] sm:$0xff]
                %545 = vst [vmem:[%s201 + $0x558] sm:$0xff] %v544
                %v546 = vld [vmem:[%s200 + $0xac0] sm:$0xff]
                %547 = vst [vmem:[%s201 + $0x560] sm:$0xff] %v546
                %v548 = vld [vmem:[%s200 + $0xac8] sm:$0xff]
                %549 = vst [vmem:[%s201 + $0x568] sm:$0xff] %v548
                %v550 = vld [vmem:[%s200 + $0xad0] sm:$0xff]
                %551 = vst [vmem:[%s201 + $0x570] sm:$0xff] %v550
                %v552 = vld [vmem:[%s200 + $0xad8] sm:$0xff]
                %553 = vst [vmem:[%s201 + $0x578] sm:$0xff] %v552
                %v554 = vld [vmem:[%s200 + $0xb00] sm:$0xff]
                %555 = vst [vmem:[%s201 + $0x580] sm:$0xff] %v554
                %v556 = vld [vmem:[%s200 + $0xb08] sm:$0xff]
                %557 = vst [vmem:[%s201 + $0x588] sm:$0xff] %v556
                %v558 = vld [vmem:[%s200 + $0xb10] sm:$0xff]
                %559 = vst [vmem:[%s201 + $0x590] sm:$0xff] %v558
                %v560 = vld [vmem:[%s200 + $0xb18] sm:$0xff]
                %561 = vst [vmem:[%s201 + $0x598] sm:$0xff] %v560
                %v562 = vld [vmem:[%s200 + $0xb40] sm:$0xff]
                %563 = vst [vmem:[%s201 + $0x5a0] sm:$0xff] %v562
                %v564 = vld [vmem:[%s200 + $0xb48] sm:$0xff]
                %565 = vst [vmem:[%s201 + $0x5a8] sm:$0xff] %v564
                %v566 = vld [vmem:[%s200 + $0xb50] sm:$0xff]
                %567 = vst [vmem:[%s201 + $0x5b0] sm:$0xff] %v566
                %v568 = vld [vmem:[%s200 + $0xb58] sm:$0xff]
                %569 = vst [vmem:[%s201 + $0x5b8] sm:$0xff] %v568
                %v570 = vld [vmem:[%s200 + $0xb80] sm:$0xff]
                %571 = vst [vmem:[%s201 + $0x5c0] sm:$0xff] %v570
                %v572 = vld [vmem:[%s200 + $0xb88] sm:$0xff]
                %573 = vst [vmem:[%s201 + $0x5c8] sm:$0xff] %v572
                %v574 = vld [vmem:[%s200 + $0xb90] sm:$0xff]
                %575 = vst [vmem:[%s201 + $0x5d0] sm:$0xff] %v574
                %v576 = vld [vmem:[%s200 + $0xb98] sm:$0xff]
                %577 = vst [vmem:[%s201 + $0x5d8] sm:$0xff] %v576
                %v578 = vld [vmem:[%s200 + $0xbc0] sm:$0xff]
                %579 = vst [vmem:[%s201 + $0x5e0] sm:$0xff] %v578
                %v580 = vld [vmem:[%s200 + $0xbc8] sm:$0xff]
                %581 = vst [vmem:[%s201 + $0x5e8] sm:$0xff] %v580
                %v582 = vld [vmem:[%s200 + $0xbd0] sm:$0xff]
                %583 = vst [vmem:[%s201 + $0x5f0] sm:$0xff] %v582
                %v584 = vld [vmem:[%s200 + $0xbd8] sm:$0xff]
                %585 = vst [vmem:[%s201 + $0x5f8] sm:$0xff] %v584
                %v586 = vld [vmem:[%s200 + $0xc00] sm:$0xff]
                %587 = vst [vmem:[%s201 + $0x600] sm:$0xff] %v586
                %v588 = vld [vmem:[%s200 + $0xc08] sm:$0xff]
                %589 = vst [vmem:[%s201 + $0x608] sm:$0xff] %v588
                %v590 = vld [vmem:[%s200 + $0xc10] sm:$0xff]
                %591 = vst [vmem:[%s201 + $0x610] sm:$0xff] %v590
                %v592 = vld [vmem:[%s200 + $0xc18] sm:$0xff]
                %593 = vst [vmem:[%s201 + $0x618] sm:$0xff] %v592
                %v594 = vld [vmem:[%s200 + $0xc40] sm:$0xff]
                %595 = vst [vmem:[%s201 + $0x620] sm:$0xff] %v594
                %v596 = vld [vmem:[%s200 + $0xc48] sm:$0xff]
                %597 = vst [vmem:[%s201 + $0x628] sm:$0xff] %v596
                %v598 = vld [vmem:[%s200 + $0xc50] sm:$0xff]
                %599 = vst [vmem:[%s201 + $0x630] sm:$0xff] %v598
                %v600 = vld [vmem:[%s200 + $0xc58] sm:$0xff]
                %601 = vst [vmem:[%s201 + $0x638] sm:$0xff] %v600
                %v602 = vld [vmem:[%s200 + $0xc80] sm:$0xff]
                %603 = vst [vmem:[%s201 + $0x640] sm:$0xff] %v602
                %v604 = vld [vmem:[%s200 + $0xc88] sm:$0xff]
                %605 = vst [vmem:[%s201 + $0x648] sm:$0xff] %v604
                %v606 = vld [vmem:[%s200 + $0xc90] sm:$0xff]
                %607 = vst [vmem:[%s201 + $0x650] sm:$0xff] %v606
                %v608 = vld [vmem:[%s200 + $0xc98] sm:$0xff]
                %609 = vst [vmem:[%s201 + $0x658] sm:$0xff] %v608
                %v610 = vld [vmem:[%s200 + $0xcc0] sm:$0xff]
                %611 = vst [vmem:[%s201 + $0x660] sm:$0xff] %v610
                %v612 = vld [vmem:[%s200 + $0xcc8] sm:$0xff]
                %613 = vst [vmem:[%s201 + $0x668] sm:$0xff] %v612
                %v614 = vld [vmem:[%s200 + $0xcd0] sm:$0xff]
                %615 = vst [vmem:[%s201 + $0x670] sm:$0xff] %v614
                %v616 = vld [vmem:[%s200 + $0xcd8] sm:$0xff]
                %617 = vst [vmem:[%s201 + $0x678] sm:$0xff] %v616
                %v618 = vld [vmem:[%s200 + $0xd00] sm:$0xff]
                %619 = vst [vmem:[%s201 + $0x680] sm:$0xff] %v618
                %v620 = vld [vmem:[%s200 + $0xd08] sm:$0xff]
                %621 = vst [vmem:[%s201 + $0x688] sm:$0xff] %v620
                %v622 = vld [vmem:[%s200 + $0xd10] sm:$0xff]
                %623 = vst [vmem:[%s201 + $0x690] sm:$0xff] %v622
                %v624 = vld [vmem:[%s200 + $0xd18] sm:$0xff]
                %625 = vst [vmem:[%s201 + $0x698] sm:$0xff] %v624
                %v626 = vld [vmem:[%s200 + $0xd40] sm:$0xff]
                %627 = vst [vmem:[%s201 + $0x6a0] sm:$0xff] %v626
                %v628 = vld [vmem:[%s200 + $0xd48] sm:$0xff]
                %629 = vst [vmem:[%s201 + $0x6a8] sm:$0xff] %v628
                %v630 = vld [vmem:[%s200 + $0xd50] sm:$0xff]
                %631 = vst [vmem:[%s201 + $0x6b0] sm:$0xff] %v630
                %v632 = vld [vmem:[%s200 + $0xd58] sm:$0xff]
                %633 = vst [vmem:[%s201 + $0x6b8] sm:$0xff] %v632
                %v634 = vld [vmem:[%s200 + $0xd80] sm:$0xff]
                %635 = vst [vmem:[%s201 + $0x6c0] sm:$0xff] %v634
                %v636 = vld [vmem:[%s200 + $0xd88] sm:$0xff]
                %637 = vst [vmem:[%s201 + $0x6c8] sm:$0xff] %v636
                %v638 = vld [vmem:[%s200 + $0xd90] sm:$0xff]
                %639 = vst [vmem:[%s201 + $0x6d0] sm:$0xff] %v638
                %v640 = vld [vmem:[%s200 + $0xd98] sm:$0xff]
                %641 = vst [vmem:[%s201 + $0x6d8] sm:$0xff] %v640
                %v642 = vld [vmem:[%s200 + $0xdc0] sm:$0xff]
                %643 = vst [vmem:[%s201 + $0x6e0] sm:$0xff] %v642
                %v644 = vld [vmem:[%s200 + $0xdc8] sm:$0xff]
                %645 = vst [vmem:[%s201 + $0x6e8] sm:$0xff] %v644
                %v646 = vld [vmem:[%s200 + $0xdd0] sm:$0xff]
                %647 = vst [vmem:[%s201 + $0x6f0] sm:$0xff] %v646
                %v648 = vld [vmem:[%s200 + $0xdd8] sm:$0xff]
                %649 = vst [vmem:[%s201 + $0x6f8] sm:$0xff] %v648
                %v650 = vld [vmem:[%s200 + $0xe00] sm:$0xff]
                %651 = vst [vmem:[%s201 + $0x700] sm:$0xff] %v650
                %v652 = vld [vmem:[%s200 + $0xe08] sm:$0xff]
                %653 = vst [vmem:[%s201 + $0x708] sm:$0xff] %v652
                %v654 = vld [vmem:[%s200 + $0xe10] sm:$0xff]
                %655 = vst [vmem:[%s201 + $0x710] sm:$0xff] %v654
                %v656 = vld [vmem:[%s200 + $0xe18] sm:$0xff]
                %657 = vst [vmem:[%s201 + $0x718] sm:$0xff] %v656
                %v658 = vld [vmem:[%s200 + $0xe40] sm:$0xff]
                %659 = vst [vmem:[%s201 + $0x720] sm:$0xff] %v658
                %v660 = vld [vmem:[%s200 + $0xe48] sm:$0xff]
                %661 = vst [vmem:[%s201 + $0x728] sm:$0xff] %v660
                %v662 = vld [vmem:[%s200 + $0xe50] sm:$0xff]
                %663 = vst [vmem:[%s201 + $0x730] sm:$0xff] %v662
                %v664 = vld [vmem:[%s200 + $0xe58] sm:$0xff]
                %665 = vst [vmem:[%s201 + $0x738] sm:$0xff] %v664
                %v666 = vld [vmem:[%s200 + $0xe80] sm:$0xff]
                %667 = vst [vmem:[%s201 + $0x740] sm:$0xff] %v666
                %v668 = vld [vmem:[%s200 + $0xe88] sm:$0xff]
                %669 = vst [vmem:[%s201 + $0x748] sm:$0xff] %v668
                %v670 = vld [vmem:[%s200 + $0xe90] sm:$0xff]
                %671 = vst [vmem:[%s201 + $0x750] sm:$0xff] %v670
                %v672 = vld [vmem:[%s200 + $0xe98] sm:$0xff]
                %673 = vst [vmem:[%s201 + $0x758] sm:$0xff] %v672
                %v674 = vld [vmem:[%s200 + $0xec0] sm:$0xff]
                %675 = vst [vmem:[%s201 + $0x760] sm:$0xff] %v674
                %v676 = vld [vmem:[%s200 + $0xec8] sm:$0xff]
                %677 = vst [vmem:[%s201 + $0x768] sm:$0xff] %v676
                %v678 = vld [vmem:[%s200 + $0xed0] sm:$0xff]
                %679 = vst [vmem:[%s201 + $0x770] sm:$0xff] %v678
                %v680 = vld [vmem:[%s200 + $0xed8] sm:$0xff]
                %681 = vst [vmem:[%s201 + $0x778] sm:$0xff] %v680
                %v682 = vld [vmem:[%s200 + $0xf00] sm:$0xff]
                %683 = vst [vmem:[%s201 + $0x780] sm:$0xff] %v682
                %v684 = vld [vmem:[%s200 + $0xf08] sm:$0xff]
                %685 = vst [vmem:[%s201 + $0x788] sm:$0xff] %v684
                %v686 = vld [vmem:[%s200 + $0xf10] sm:$0xff]
                %687 = vst [vmem:[%s201 + $0x790] sm:$0xff] %v686
                %v688 = vld [vmem:[%s200 + $0xf18] sm:$0xff]
                %689 = vst [vmem:[%s201 + $0x798] sm:$0xff] %v688
                %v690 = vld [vmem:[%s200 + $0xf40] sm:$0xff]
                %691 = vst [vmem:[%s201 + $0x7a0] sm:$0xff] %v690
                %v692 = vld [vmem:[%s200 + $0xf48] sm:$0xff]
                %693 = vst [vmem:[%s201 + $0x7a8] sm:$0xff] %v692
                %v694 = vld [vmem:[%s200 + $0xf50] sm:$0xff]
                %695 = vst [vmem:[%s201 + $0x7b0] sm:$0xff] %v694
                %v696 = vld [vmem:[%s200 + $0xf58] sm:$0xff]
                %697 = vst [vmem:[%s201 + $0x7b8] sm:$0xff] %v696
                %v698 = vld [vmem:[%s200 + $0xf80] sm:$0xff]
                %699 = vst [vmem:[%s201 + $0x7c0] sm:$0xff] %v698
                %v700 = vld [vmem:[%s200 + $0xf88] sm:$0xff]
                %701 = vst [vmem:[%s201 + $0x7c8] sm:$0xff] %v700
                %v702 = vld [vmem:[%s200 + $0xf90] sm:$0xff]
                %703 = vst [vmem:[%s201 + $0x7d0] sm:$0xff] %v702
                %v704 = vld [vmem:[%s200 + $0xf98] sm:$0xff]
                %705 = vst [vmem:[%s201 + $0x7d8] sm:$0xff] %v704
                %v706 = vld [vmem:[%s200 + $0xfc0] sm:$0xff]
                %707 = vst [vmem:[%s201 + $0x7e0] sm:$0xff] %v706
                %v708 = vld [vmem:[%s200 + $0xfc8] sm:$0xff]
                %709 = vst [vmem:[%s201 + $0x7e8] sm:$0xff] %v708
                %v710 = vld [vmem:[%s200 + $0xfd0] sm:$0xff]
                %711 = vst [vmem:[%s201 + $0x7f0] sm:$0xff] %v710
                %v712 = vld [vmem:[%s200 + $0xfd8] sm:$0xff]
                %713 = vst [vmem:[%s201 + $0x7f8] sm:$0xff] %v712
              $region45: #{_lambda_.1} parent=39 // loop_footer
                %s199 = sadd.s32 1, %s195
              $region46: #{_lambda_.1} parent=39 // loop_footer_branch
                %194 = sbr.rel target = $region42
              $region47: #{_lambda_.1} parent=39 // loop_exit
                _
            $region40: #{_lambda_.1} parent=35 // pred_fallthru
              _
            // Predicated region
            $region48: #{_lambda_.1} parent=35 // pred_check
              _
            $region49: #{_lambda_.1} parent=35 // pred_check_branch
              %715 = sbr.rel target = $region51
            $region50: #{_lambda_.1} parent=35 // pred_region
              _
            $region51: #{_lambda_.1} parent=35 // pred_fallthru
              _
          $region36: #{_lambda_.1} parent=31 // pred_fallthru
            _
          %716 = vnop
        $region32: #{_lambda_.1} parent=27 // pred_fallthru
          _
        // Predicated region
        $region52: #{_lambda_.1} parent=27 // pred_check
          %p717 = pneg %p120
        $region53: #{_lambda_.1} parent=27 // pred_check_branch
          %719 = sbr.rel (%p717) target = $region55
        $region54: #{_lambda_.1} parent=27 // pred_region
          %s720 = smul.u32 8, %s11
          %p721 = scmp.lt.s32.totalorder %s720, 15
          %s722 = scalar_select %p721, %s720, 15
          %s723 = scalar_lea.vmem %s4, %s722
          %s724 = smul.u32 8, %s11
        $region55: #{_lambda_.1} parent=27 // pred_fallthru
          _
      $region28: #{_lambda_.1} parent=5 // pred_fallthru
        _
      %p725 = scmp.le.s32.totalorder 1, %s11
      %p726 = scmp.lt.s32.totalorder %s11, 3
      %p727 = pnand %p725, %p726
      %p728 = pneg %p727
      // Predicated region
      $region56: #{_lambda_.1} parent=5 // pred_check
        _
      $region57: #{_lambda_.1} parent=5 // pred_check_branch
        %730 = sbr.rel (%p727) target = $region59
      $region58: #{_lambda_.1} parent=5 // pred_region
        %s731 = ssub.s32 %s11, 1
        %s732 = sand.u32 %s87, 1
        %s733 = sand.u32 %s87, 1
        %s734 = smul.addr %s733, 2048
        %s735 = scalar_lea.vmem [#allocation2], %s734
        // Predicated region
        $region60: #{_lambda_.1} parent=58 // pred_check
          %p736 = pneg %p100
        $region61: #{_lambda_.1} parent=58 // pred_check_branch
          %738 = sbr.rel (%p736) target = $region63
        $region62: #{_lambda_.1} parent=58 // pred_region
          _
        $region63: #{_lambda_.1} parent=58 // pred_fallthru
          _
        %p739 = pneg %p32
        %p740 = pneg %p29
        %p741 = pneg %p53
        %p742 = pneg %p50
        %p743 = pneg %p74
        %p744 = pneg %p71
        %s745 = sand.u32 %s87, 1
        %s746 = sand.u32 %s87, 1
        %s747 = smul.addr %s746, 2048
        %s748 = scalar_lea.vmem [#allocation2], %s747
        %p749 = pneg %p100
        %p750 = pneg %p97
        %s751 = smul.u32 8, %s16
        %p752 = scmp.lt.s32.totalorder %s751, 15
        %s753 = scalar_select %p752, %s751, 15
        %s754 = scalar_lea.vmem %s4, %s753
        %p755 = pneg %p126
        %p756 = pneg %p123
        %p757 = pneg %p152
        %p758 = pneg %p149
        %s759 = smul.u32 8, %s16
        %p760 = scmp.lt.s32.totalorder %s759, 15
        %s761 = scalar_select %p760, %s759, 15
        %s762 = smul.addr %s761, 2
        %s763 = scalar_lea.vmem %s5, %s762
        %s764 = smul.u32 8, %s16
        %s765 = smul.u32 8, %s16
        %p766 = scmp.lt.s32.totalorder %s765, 15
        %s767 = scalar_select %p766, %s765, 15
        %s768 = scalar_lea.vmem %s4, %s767
        %s769 = smul.u32 8, %s16
        %s770 = smul.u32 8, %s16
        %p771 = scmp.lt.s32.totalorder %s770, 15
        %s772 = scalar_select %p771, %s770, 15
        %s773 = smul.addr %s772, 2
        %s774 = scalar_lea.vmem %s5, %s773
        %s775 = smul.u32 8, %s16
        %v776 = vld [vmem:[%s0] sm:$0xff]
        %v777 = vld [vmem:[%s0 + $0x8] sm:$0xff]
        %v778 = vld [vmem:[%s0 + $0x10] sm:$0xff]
        %v779 = vld [vmem:[%s0 + $0x18] sm:$0xff]
        %v780 = vld [vmem:[%s0 + $0x20] sm:$0xff]
        %v781 = vld [vmem:[%s0 + $0x28] sm:$0xff]
        %v782 = vld [vmem:[%s0 + $0x30] sm:$0xff]
        %v783 = vld [vmem:[%s0 + $0x38] sm:$0xff]
        %v792 = vcombine.high %v776, %v776
        %v793 = vcombine.high %v777, %v777
        %v794 = vcombine.high %v778, %v778
        %v795 = vcombine.high %v779, %v779
        %v796 = vcombine.high %v780, %v780
        %v797 = vcombine.high %v781, %v781
        %v798 = vcombine.high %v782, %v782
        %v799 = vcombine.high %v783, %v783
        %vm808 = vcmask 1043456
        %v809 = vsel %vm808, %v776, -inf
        %v810 = vrot.slane %v809, 4
        %v811 = vmax.f32 %v809, %v810
        %v812 = vrot.slane %v811, 2
        %v813 = vmax.f32 %v811, %v812
        %v814 = vrot.slane %v813, 1
        %v815 = vmax.f32 %v813, %v814
        %v816 = vsel %vm808, %v792, -inf
        %v817 = vrot.slane %v816, 4
        %v818 = vmax.f32 %v816, %v817
        %v819 = vrot.slane %v818, 2
        %v820 = vmax.f32 %v818, %v819
        %v821 = vrot.slane %v820, 1
        %v822 = vmax.f32 %v820, %v821
        %v823 = vsel %vm808, %v777, -inf
        %v824 = vrot.slane %v823, 4
        %v825 = vmax.f32 %v823, %v824
        %v826 = vrot.slane %v825, 2
        %v827 = vmax.f32 %v825, %v826
        %v828 = vrot.slane %v827, 1
        %v829 = vmax.f32 %v827, %v828
        %v830 = vsel %vm808, %v793, -inf
        %v831 = vrot.slane %v830, 4
        %v832 = vmax.f32 %v830, %v831
        %v833 = vrot.slane %v832, 2
        %v834 = vmax.f32 %v832, %v833
        %v835 = vrot.slane %v834, 1
        %v836 = vmax.f32 %v834, %v835
        %v837 = vsel %vm808, %v778, -inf
        %v838 = vrot.slane %v837, 4
        %v839 = vmax.f32 %v837, %v838
        %v840 = vrot.slane %v839, 2
        %v841 = vmax.f32 %v839, %v840
        %v842 = vrot.slane %v841, 1
        %v843 = vmax.f32 %v841, %v842
        %v844 = vsel %vm808, %v794, -inf
        %v845 = vrot.slane %v844, 4
        %v846 = vmax.f32 %v844, %v845
        %v847 = vrot.slane %v846, 2
        %v848 = vmax.f32 %v846, %v847
        %v849 = vrot.slane %v848, 1
        %v850 = vmax.f32 %v848, %v849
        %v851 = vsel %vm808, %v779, -inf
        %v852 = vrot.slane %v851, 4
        %v853 = vmax.f32 %v851, %v852
        %v854 = vrot.slane %v853, 2
        %v855 = vmax.f32 %v853, %v854
        %v856 = vrot.slane %v855, 1
        %v857 = vmax.f32 %v855, %v856
        %v858 = vsel %vm808, %v795, -inf
        %v859 = vrot.slane %v858, 4
        %v860 = vmax.f32 %v858, %v859
        %v861 = vrot.slane %v860, 2
        %v862 = vmax.f32 %v860, %v861
        %v863 = vrot.slane %v862, 1
        %v864 = vmax.f32 %v862, %v863
        %v865 = vsel %vm808, %v780, -inf
        %v866 = vrot.slane %v865, 4
        %v867 = vmax.f32 %v865, %v866
        %v868 = vrot.slane %v867, 2
        %v869 = vmax.f32 %v867, %v868
        %v870 = vrot.slane %v869, 1
        %v871 = vmax.f32 %v869, %v870
        %v872 = vsel %vm808, %v796, -inf
        %v873 = vrot.slane %v872, 4
        %v874 = vmax.f32 %v872, %v873
        %v875 = vrot.slane %v874, 2
        %v876 = vmax.f32 %v874, %v875
        %v877 = vrot.slane %v876, 1
        %v878 = vmax.f32 %v876, %v877
        %v879 = vsel %vm808, %v781, -inf
        %v880 = vrot.slane %v879, 4
        %v881 = vmax.f32 %v879, %v880
        %v882 = vrot.slane %v881, 2
        %v883 = vmax.f32 %v881, %v882
        %v884 = vrot.slane %v883, 1
        %v885 = vmax.f32 %v883, %v884
        %v886 = vsel %vm808, %v797, -inf
        %v887 = vrot.slane %v886, 4
        %v888 = vmax.f32 %v886, %v887
        %v889 = vrot.slane %v888, 2
        %v890 = vmax.f32 %v888, %v889
        %v891 = vrot.slane %v890, 1
        %v892 = vmax.f32 %v890, %v891
        %v893 = vsel %vm808, %v782, -inf
        %v894 = vrot.slane %v893, 4
        %v895 = vmax.f32 %v893, %v894
        %v896 = vrot.slane %v895, 2
        %v897 = vmax.f32 %v895, %v896
        %v898 = vrot.slane %v897, 1
        %v899 = vmax.f32 %v897, %v898
        %v900 = vsel %vm808, %v798, -inf
        %v901 = vrot.slane %v900, 4
        %v902 = vmax.f32 %v900, %v901
        %v903 = vrot.slane %v902, 2
        %v904 = vmax.f32 %v902, %v903
        %v905 = vrot.slane %v904, 1
        %v906 = vmax.f32 %v904, %v905
        %v907 = vsel %vm808, %v783, -inf
        %v908 = vrot.slane %v907, 4
        %v909 = vmax.f32 %v907, %v908
        %v910 = vrot.slane %v909, 2
        %v911 = vmax.f32 %v909, %v910
        %v912 = vrot.slane %v911, 1
        %v913 = vmax.f32 %v911, %v912
        %v914 = vsel %vm808, %v799, -inf
        %v915 = vrot.slane %v914, 4
        %v916 = vmax.f32 %v914, %v915
        %v917 = vrot.slane %v916, 2
        %v918 = vmax.f32 %v916, %v917
        %v919 = vrot.slane %v918, 1
        %v920 = vmax.f32 %v918, %v919
        %v921 = vpack.c.bf16 %v815, %v815
        %v922 = vpack.c.bf16 %v822, %v822
        %v923 = vpack.c.bf16 %v829, %v829
        %v924 = vpack.c.bf16 %v836, %v836
        %v925 = vpack.c.bf16 %v843, %v843
        %v926 = vpack.c.bf16 %v850, %v850
        %v927 = vpack.c.bf16 %v857, %v857
        %v928 = vpack.c.bf16 %v864, %v864
        %v929 = vpack.c.bf16 %v871, %v871
        %v930 = vpack.c.bf16 %v878, %v878
        %v931 = vpack.c.bf16 %v885, %v885
        %v932 = vpack.c.bf16 %v892, %v892
        %v933 = vpack.c.bf16 %v899, %v899
        %v934 = vpack.c.bf16 %v906, %v906
        %v935 = vpack.c.bf16 %v913, %v913
        %v936 = vpack.c.bf16 %v920, %v920
        %v937 = vld [vmem:[%s1] sm:$0xff]
        %v938 = vld [vmem:[%s1 + $0x8] sm:$0xff]
        %v939 = vld [vmem:[%s1 + $0x10] sm:$0xff]
        %v940 = vld [vmem:[%s1 + $0x18] sm:$0xff]
        %v941 = vld [vmem:[%s1 + $0x20] sm:$0xff]
        %v942 = vld [vmem:[%s1 + $0x28] sm:$0xff]
        %v943 = vld [vmem:[%s1 + $0x30] sm:$0xff]
        %v944 = vld [vmem:[%s1 + $0x38] sm:$0xff]
        %v945 = vld [vmem:[%s1 + $0x40] sm:$0xff]
        %v946 = vld [vmem:[%s1 + $0x48] sm:$0xff]
        %v947 = vld [vmem:[%s1 + $0x50] sm:$0xff]
        %v948 = vld [vmem:[%s1 + $0x58] sm:$0xff]
        %v949 = vld [vmem:[%s1 + $0x60] sm:$0xff]
        %v950 = vld [vmem:[%s1 + $0x68] sm:$0xff]
        %v951 = vld [vmem:[%s1 + $0x70] sm:$0xff]
        %v952 = vld [vmem:[%s1 + $0x78] sm:$0xff]
        %v953 = vld [vmem:[%s1 + $0x80] sm:$0xff]
        %v954 = vld [vmem:[%s1 + $0x88] sm:$0xff]
        %v955 = vld [vmem:[%s1 + $0x90] sm:$0xff]
        %v956 = vld [vmem:[%s1 + $0x98] sm:$0xff]
        %v957 = vld [vmem:[%s1 + $0xa0] sm:$0xff]
        %v958 = vld [vmem:[%s1 + $0xa8] sm:$0xff]
        %v959 = vld [vmem:[%s1 + $0xb0] sm:$0xff]
        %v960 = vld [vmem:[%s1 + $0xb8] sm:$0xff]
        %v961 = vld [vmem:[%s1 + $0xc0] sm:$0xff]
        %v962 = vld [vmem:[%s1 + $0xc8] sm:$0xff]
        %v963 = vld [vmem:[%s1 + $0xd0] sm:$0xff]
        %v964 = vld [vmem:[%s1 + $0xd8] sm:$0xff]
        %v965 = vld [vmem:[%s1 + $0xe0] sm:$0xff]
        %v966 = vld [vmem:[%s1 + $0xe8] sm:$0xff]
        %v967 = vld [vmem:[%s1 + $0xf0] sm:$0xff]
        %v968 = vld [vmem:[%s1 + $0xf8] sm:$0xff]
        %v969 = vld [vmem:[%s1 + $0x100] sm:$0xff]
        %v970 = vld [vmem:[%s1 + $0x108] sm:$0xff]
        %v971 = vld [vmem:[%s1 + $0x110] sm:$0xff]
        %v972 = vld [vmem:[%s1 + $0x118] sm:$0xff]
        %v973 = vld [vmem:[%s1 + $0x120] sm:$0xff]
        %v974 = vld [vmem:[%s1 + $0x128] sm:$0xff]
        %v975 = vld [vmem:[%s1 + $0x130] sm:$0xff]
        %v976 = vld [vmem:[%s1 + $0x138] sm:$0xff]
        %v977 = vld [vmem:[%s1 + $0x140] sm:$0xff]
        %v978 = vld [vmem:[%s1 + $0x148] sm:$0xff]
        %v979 = vld [vmem:[%s1 + $0x150] sm:$0xff]
        %v980 = vld [vmem:[%s1 + $0x158] sm:$0xff]
        %v981 = vld [vmem:[%s1 + $0x160] sm:$0xff]
        %v982 = vld [vmem:[%s1 + $0x168] sm:$0xff]
        %v983 = vld [vmem:[%s1 + $0x170] sm:$0xff]
        %v984 = vld [vmem:[%s1 + $0x178] sm:$0xff]
        %v985 = vld [vmem:[%s1 + $0x180] sm:$0xff]
        %v986 = vld [vmem:[%s1 + $0x188] sm:$0xff]
        %v987 = vld [vmem:[%s1 + $0x190] sm:$0xff]
        %v988 = vld [vmem:[%s1 + $0x198] sm:$0xff]
        %v989 = vld [vmem:[%s1 + $0x1a0] sm:$0xff]
        %v990 = vld [vmem:[%s1 + $0x1a8] sm:$0xff]
        %v991 = vld [vmem:[%s1 + $0x1b0] sm:$0xff]
        %v992 = vld [vmem:[%s1 + $0x1b8] sm:$0xff]
        %v993 = vld [vmem:[%s1 + $0x1c0] sm:$0xff]
        %v994 = vld [vmem:[%s1 + $0x1c8] sm:$0xff]
        %v995 = vld [vmem:[%s1 + $0x1d0] sm:$0xff]
        %v996 = vld [vmem:[%s1 + $0x1d8] sm:$0xff]
        %v997 = vld [vmem:[%s1 + $0x1e0] sm:$0xff]
        %v998 = vld [vmem:[%s1 + $0x1e8] sm:$0xff]
        %v999 = vld [vmem:[%s1 + $0x1f0] sm:$0xff]
        %v1000 = vld [vmem:[%s1 + $0x1f8] sm:$0xff]
        %v1001 = vld [vmem:[%s1 + $0x200] sm:$0xff]
        %v1002 = vld [vmem:[%s1 + $0x208] sm:$0xff]
        %v1003 = vld [vmem:[%s1 + $0x210] sm:$0xff]
        %v1004 = vld [vmem:[%s1 + $0x218] sm:$0xff]
        %v1005 = vld [vmem:[%s1 + $0x220] sm:$0xff]
        %v1006 = vld [vmem:[%s1 + $0x228] sm:$0xff]
        %v1007 = vld [vmem:[%s1 + $0x230] sm:$0xff]
        %v1008 = vld [vmem:[%s1 + $0x238] sm:$0xff]
        %v1009 = vld [vmem:[%s1 + $0x240] sm:$0xff]
        %v1010 = vld [vmem:[%s1 + $0x248] sm:$0xff]
        %v1011 = vld [vmem:[%s1 + $0x250] sm:$0xff]
        %v1012 = vld [vmem:[%s1 + $0x258] sm:$0xff]
        %v1013 = vld [vmem:[%s1 + $0x260] sm:$0xff]
        %v1014 = vld [vmem:[%s1 + $0x268] sm:$0xff]
        %v1015 = vld [vmem:[%s1 + $0x270] sm:$0xff]
        %v1016 = vld [vmem:[%s1 + $0x278] sm:$0xff]
        %v1017 = vld [vmem:[%s1 + $0x280] sm:$0xff]
        %v1018 = vld [vmem:[%s1 + $0x288] sm:$0xff]
        %v1019 = vld [vmem:[%s1 + $0x290] sm:$0xff]
        %v1020 = vld [vmem:[%s1 + $0x298] sm:$0xff]
        %v1021 = vld [vmem:[%s1 + $0x2a0] sm:$0xff]
        %v1022 = vld [vmem:[%s1 + $0x2a8] sm:$0xff]
        %v1023 = vld [vmem:[%s1 + $0x2b0] sm:$0xff]
        %v1024 = vld [vmem:[%s1 + $0x2b8] sm:$0xff]
        %v1025 = vld [vmem:[%s1 + $0x2c0] sm:$0xff]
        %v1026 = vld [vmem:[%s1 + $0x2c8] sm:$0xff]
        %v1027 = vld [vmem:[%s1 + $0x2d0] sm:$0xff]
        %v1028 = vld [vmem:[%s1 + $0x2d8] sm:$0xff]
        %v1029 = vld [vmem:[%s1 + $0x2e0] sm:$0xff]
        %v1030 = vld [vmem:[%s1 + $0x2e8] sm:$0xff]
        %v1031 = vld [vmem:[%s1 + $0x2f0] sm:$0xff]
        %v1032 = vld [vmem:[%s1 + $0x2f8] sm:$0xff]
        %v1033 = vld [vmem:[%s1 + $0x300] sm:$0xff]
        %v1034 = vld [vmem:[%s1 + $0x308] sm:$0xff]
        %v1035 = vld [vmem:[%s1 + $0x310] sm:$0xff]
        %v1036 = vld [vmem:[%s1 + $0x318] sm:$0xff]
        %v1037 = vld [vmem:[%s1 + $0x320] sm:$0xff]
        %v1038 = vld [vmem:[%s1 + $0x328] sm:$0xff]
        %v1039 = vld [vmem:[%s1 + $0x330] sm:$0xff]
        %v1040 = vld [vmem:[%s1 + $0x338] sm:$0xff]
        %v1041 = vld [vmem:[%s1 + $0x340] sm:$0xff]
        %v1042 = vld [vmem:[%s1 + $0x348] sm:$0xff]
        %v1043 = vld [vmem:[%s1 + $0x350] sm:$0xff]
        %v1044 = vld [vmem:[%s1 + $0x358] sm:$0xff]
        %v1045 = vld [vmem:[%s1 + $0x360] sm:$0xff]
        %v1046 = vld [vmem:[%s1 + $0x368] sm:$0xff]
        %v1047 = vld [vmem:[%s1 + $0x370] sm:$0xff]
        %v1048 = vld [vmem:[%s1 + $0x378] sm:$0xff]
        %v1049 = vld [vmem:[%s1 + $0x380] sm:$0xff]
        %v1050 = vld [vmem:[%s1 + $0x388] sm:$0xff]
        %v1051 = vld [vmem:[%s1 + $0x390] sm:$0xff]
        %v1052 = vld [vmem:[%s1 + $0x398] sm:$0xff]
        %v1053 = vld [vmem:[%s1 + $0x3a0] sm:$0xff]
        %v1054 = vld [vmem:[%s1 + $0x3a8] sm:$0xff]
        %v1055 = vld [vmem:[%s1 + $0x3b0] sm:$0xff]
        %v1056 = vld [vmem:[%s1 + $0x3b8] sm:$0xff]
        %v1057 = vld [vmem:[%s1 + $0x3c0] sm:$0xff]
        %v1058 = vld [vmem:[%s1 + $0x3c8] sm:$0xff]
        %v1059 = vld [vmem:[%s1 + $0x3d0] sm:$0xff]
        %v1060 = vld [vmem:[%s1 + $0x3d8] sm:$0xff]
        %v1061 = vld [vmem:[%s1 + $0x3e0] sm:$0xff]
        %v1062 = vld [vmem:[%s1 + $0x3e8] sm:$0xff]
        %v1063 = vld [vmem:[%s1 + $0x3f0] sm:$0xff]
        %v1064 = vld [vmem:[%s1 + $0x3f8] sm:$0xff]
        %v1065 = vld [vmem:[%s1 + $0x400] sm:$0xff]
        %v1066 = vld [vmem:[%s1 + $0x408] sm:$0xff]
        %v1067 = vld [vmem:[%s1 + $0x410] sm:$0xff]
        %v1068 = vld [vmem:[%s1 + $0x418] sm:$0xff]
        %v1069 = vld [vmem:[%s1 + $0x420] sm:$0xff]
        %v1070 = vld [vmem:[%s1 + $0x428] sm:$0xff]
        %v1071 = vld [vmem:[%s1 + $0x430] sm:$0xff]
        %v1072 = vld [vmem:[%s1 + $0x438] sm:$0xff]
        %v1073 = vld [vmem:[%s1 + $0x440] sm:$0xff]
        %v1074 = vld [vmem:[%s1 + $0x448] sm:$0xff]
        %v1075 = vld [vmem:[%s1 + $0x450] sm:$0xff]
        %v1076 = vld [vmem:[%s1 + $0x458] sm:$0xff]
        %v1077 = vld [vmem:[%s1 + $0x460] sm:$0xff]
        %v1078 = vld [vmem:[%s1 + $0x468] sm:$0xff]
        %v1079 = vld [vmem:[%s1 + $0x470] sm:$0xff]
        %v1080 = vld [vmem:[%s1 + $0x478] sm:$0xff]
        %v1081 = vld [vmem:[%s1 + $0x480] sm:$0xff]
        %v1082 = vld [vmem:[%s1 + $0x488] sm:$0xff]
        %v1083 = vld [vmem:[%s1 + $0x490] sm:$0xff]
        %v1084 = vld [vmem:[%s1 + $0x498] sm:$0xff]
        %v1085 = vld [vmem:[%s1 + $0x4a0] sm:$0xff]
        %v1086 = vld [vmem:[%s1 + $0x4a8] sm:$0xff]
        %v1087 = vld [vmem:[%s1 + $0x4b0] sm:$0xff]
        %v1088 = vld [vmem:[%s1 + $0x4b8] sm:$0xff]
        %v1089 = vld [vmem:[%s1 + $0x4c0] sm:$0xff]
        %v1090 = vld [vmem:[%s1 + $0x4c8] sm:$0xff]
        %v1091 = vld [vmem:[%s1 + $0x4d0] sm:$0xff]
        %v1092 = vld [vmem:[%s1 + $0x4d8] sm:$0xff]
        %v1093 = vld [vmem:[%s1 + $0x4e0] sm:$0xff]
        %v1094 = vld [vmem:[%s1 + $0x4e8] sm:$0xff]
        %v1095 = vld [vmem:[%s1 + $0x4f0] sm:$0xff]
        %v1096 = vld [vmem:[%s1 + $0x4f8] sm:$0xff]
        %v1097 = vld [vmem:[%s1 + $0x500] sm:$0xff]
        %v1098 = vld [vmem:[%s1 + $0x508] sm:$0xff]
        %v1099 = vld [vmem:[%s1 + $0x510] sm:$0xff]
        %v1100 = vld [vmem:[%s1 + $0x518] sm:$0xff]
        %v1101 = vld [vmem:[%s1 + $0x520] sm:$0xff]
        %v1102 = vld [vmem:[%s1 + $0x528] sm:$0xff]
        %v1103 = vld [vmem:[%s1 + $0x530] sm:$0xff]
        %v1104 = vld [vmem:[%s1 + $0x538] sm:$0xff]
        %v1105 = vld [vmem:[%s1 + $0x540] sm:$0xff]
        %v1106 = vld [vmem:[%s1 + $0x548] sm:$0xff]
        %v1107 = vld [vmem:[%s1 + $0x550] sm:$0xff]
        %v1108 = vld [vmem:[%s1 + $0x558] sm:$0xff]
        %v1109 = vld [vmem:[%s1 + $0x560] sm:$0xff]
        %v1110 = vld [vmem:[%s1 + $0x568] sm:$0xff]
        %v1111 = vld [vmem:[%s1 + $0x570] sm:$0xff]
        %v1112 = vld [vmem:[%s1 + $0x578] sm:$0xff]
        %v1113 = vld [vmem:[%s1 + $0x580] sm:$0xff]
        %v1114 = vld [vmem:[%s1 + $0x588] sm:$0xff]
        %v1115 = vld [vmem:[%s1 + $0x590] sm:$0xff]
        %v1116 = vld [vmem:[%s1 + $0x598] sm:$0xff]
        %v1117 = vld [vmem:[%s1 + $0x5a0] sm:$0xff]
        %v1118 = vld [vmem:[%s1 + $0x5a8] sm:$0xff]
        %v1119 = vld [vmem:[%s1 + $0x5b0] sm:$0xff]
        %v1120 = vld [vmem:[%s1 + $0x5b8] sm:$0xff]
        %v1121 = vld [vmem:[%s1 + $0x5c0] sm:$0xff]
        %v1122 = vld [vmem:[%s1 + $0x5c8] sm:$0xff]
        %v1123 = vld [vmem:[%s1 + $0x5d0] sm:$0xff]
        %v1124 = vld [vmem:[%s1 + $0x5d8] sm:$0xff]
        %v1125 = vld [vmem:[%s1 + $0x5e0] sm:$0xff]
        %v1126 = vld [vmem:[%s1 + $0x5e8] sm:$0xff]
        %v1127 = vld [vmem:[%s1 + $0x5f0] sm:$0xff]
        %v1128 = vld [vmem:[%s1 + $0x5f8] sm:$0xff]
        %v1129 = vld [vmem:[%s1 + $0x600] sm:$0xff]
        %v1130 = vld [vmem:[%s1 + $0x608] sm:$0xff]
        %v1131 = vld [vmem:[%s1 + $0x610] sm:$0xff]
        %v1132 = vld [vmem:[%s1 + $0x618] sm:$0xff]
        %v1133 = vld [vmem:[%s1 + $0x620] sm:$0xff]
        %v1134 = vld [vmem:[%s1 + $0x628] sm:$0xff]
        %v1135 = vld [vmem:[%s1 + $0x630] sm:$0xff]
        %v1136 = vld [vmem:[%s1 + $0x638] sm:$0xff]
        %v1137 = vld [vmem:[%s1 + $0x640] sm:$0xff]
        %v1138 = vld [vmem:[%s1 + $0x648] sm:$0xff]
        %v1139 = vld [vmem:[%s1 + $0x650] sm:$0xff]
        %v1140 = vld [vmem:[%s1 + $0x658] sm:$0xff]
        %v1141 = vld [vmem:[%s1 + $0x660] sm:$0xff]
        %v1142 = vld [vmem:[%s1 + $0x668] sm:$0xff]
        %v1143 = vld [vmem:[%s1 + $0x670] sm:$0xff]
        %v1144 = vld [vmem:[%s1 + $0x678] sm:$0xff]
        %v1145 = vld [vmem:[%s1 + $0x680] sm:$0xff]
        %v1146 = vld [vmem:[%s1 + $0x688] sm:$0xff]
        %v1147 = vld [vmem:[%s1 + $0x690] sm:$0xff]
        %v1148 = vld [vmem:[%s1 + $0x698] sm:$0xff]
        %v1149 = vld [vmem:[%s1 + $0x6a0] sm:$0xff]
        %v1150 = vld [vmem:[%s1 + $0x6a8] sm:$0xff]
        %v1151 = vld [vmem:[%s1 + $0x6b0] sm:$0xff]
        %v1152 = vld [vmem:[%s1 + $0x6b8] sm:$0xff]
        %v1153 = vld [vmem:[%s1 + $0x6c0] sm:$0xff]
        %v1154 = vld [vmem:[%s1 + $0x6c8] sm:$0xff]
        %v1155 = vld [vmem:[%s1 + $0x6d0] sm:$0xff]
        %v1156 = vld [vmem:[%s1 + $0x6d8] sm:$0xff]
        %v1157 = vld [vmem:[%s1 + $0x6e0] sm:$0xff]
        %v1158 = vld [vmem:[%s1 + $0x6e8] sm:$0xff]
        %v1159 = vld [vmem:[%s1 + $0x6f0] sm:$0xff]
        %v1160 = vld [vmem:[%s1 + $0x6f8] sm:$0xff]
        %v1161 = vld [vmem:[%s1 + $0x700] sm:$0xff]
        %v1162 = vld [vmem:[%s1 + $0x708] sm:$0xff]
        %v1163 = vld [vmem:[%s1 + $0x710] sm:$0xff]
        %v1164 = vld [vmem:[%s1 + $0x718] sm:$0xff]
        %v1165 = vld [vmem:[%s1 + $0x720] sm:$0xff]
        %v1166 = vld [vmem:[%s1 + $0x728] sm:$0xff]
        %v1167 = vld [vmem:[%s1 + $0x730] sm:$0xff]
        %v1168 = vld [vmem:[%s1 + $0x738] sm:$0xff]
        %v1169 = vld [vmem:[%s1 + $0x740] sm:$0xff]
        %v1170 = vld [vmem:[%s1 + $0x748] sm:$0xff]
        %v1171 = vld [vmem:[%s1 + $0x750] sm:$0xff]
        %v1172 = vld [vmem:[%s1 + $0x758] sm:$0xff]
        %v1173 = vld [vmem:[%s1 + $0x760] sm:$0xff]
        %v1174 = vld [vmem:[%s1 + $0x768] sm:$0xff]
        %v1175 = vld [vmem:[%s1 + $0x770] sm:$0xff]
        %v1176 = vld [vmem:[%s1 + $0x778] sm:$0xff]
        %v1177 = vld [vmem:[%s1 + $0x780] sm:$0xff]
        %v1178 = vld [vmem:[%s1 + $0x788] sm:$0xff]
        %v1179 = vld [vmem:[%s1 + $0x790] sm:$0xff]
        %v1180 = vld [vmem:[%s1 + $0x798] sm:$0xff]
        %v1181 = vld [vmem:[%s1 + $0x7a0] sm:$0xff]
        %v1182 = vld [vmem:[%s1 + $0x7a8] sm:$0xff]
        %v1183 = vld [vmem:[%s1 + $0x7b0] sm:$0xff]
        %v1184 = vld [vmem:[%s1 + $0x7b8] sm:$0xff]
        %v1185 = vld [vmem:[%s1 + $0x7c0] sm:$0xff]
        %v1186 = vld [vmem:[%s1 + $0x7c8] sm:$0xff]
        %v1187 = vld [vmem:[%s1 + $0x7d0] sm:$0xff]
        %v1188 = vld [vmem:[%s1 + $0x7d8] sm:$0xff]
        %v1189 = vld [vmem:[%s1 + $0x7e0] sm:$0xff]
        %v1190 = vld [vmem:[%s1 + $0x7e8] sm:$0xff]
        %v1191 = vld [vmem:[%s1 + $0x7f0] sm:$0xff]
        %v1192 = vld [vmem:[%s1 + $0x7f8] sm:$0xff]
        %v1193 = vld [vmem:[%s2] sm:$0xf]
        %v1195 = vlaneseq
        %v1196 = vshrl.u32 %v1195, 7
        %v1197 = vsub.s32 0, %v1196
        %v1198 = vrot.slane %v1193, %v1197
        %v1199 = vlaneseq
        %v1200 = vshrl.u32 %v1199, 7
        %v1201 = vsub.s32 1, %v1200
        %v1202 = vrot.slane %v1193, %v1201
        %v1203 = vlaneseq
        %v1204 = vshrl.u32 %v1203, 7
        %v1205 = vsub.s32 2, %v1204
        %v1206 = vrot.slane %v1193, %v1205
        %v1207 = vlaneseq
        %v1208 = vshrl.u32 %v1207, 7
        %v1209 = vsub.s32 3, %v1208
        %v1210 = vrot.slane %v1193, %v1209
        %v1231 = vunpack.c.l.b16 %v921
        %v1232 = vunpack.c.l.b16 %v922
        %v1233 = vunpack.c.l.b16 %v923
        %v1234 = vunpack.c.l.b16 %v924
        %v1235 = vunpack.c.l.b16 %v925
        %v1236 = vunpack.c.l.b16 %v926
        %v1237 = vunpack.c.l.b16 %v927
        %v1238 = vunpack.c.l.b16 %v928
        %v1239 = vunpack.c.l.b16 %v929
        %v1240 = vunpack.c.l.b16 %v930
        %v1241 = vunpack.c.l.b16 %v931
        %v1242 = vunpack.c.l.b16 %v932
        %v1243 = vunpack.c.l.b16 %v933
        %v1244 = vunpack.c.l.b16 %v934
        %v1245 = vunpack.c.l.b16 %v935
        %v1246 = vunpack.c.l.b16 %v936
        %vm1247 = vcmask 1041409
        %v1248 = vsel %vm1247, %v1239, %v1231
        %v1249 = vsel %vm1247, %v1240, %v1232
        %v1250 = vsel %vm1247, %v1241, %v1233
        %v1251 = vsel %vm1247, %v1242, %v1234
        %v1252 = vsel %vm1247, %v1243, %v1235
        %v1253 = vsel %vm1247, %v1244, %v1236
        %v1254 = vsel %vm1247, %v1245, %v1237
        %v1255 = vsel %vm1247, %v1246, %v1238
        %v1256 = vpack.c.b16 %v1248, %v1248
        %v1257 = vpack.c.b16 %v1249, %v1249
        %v1258 = vpack.c.b16 %v1250, %v1250
        %v1259 = vpack.c.b16 %v1251, %v1251
        %v1260 = vpack.c.b16 %v1252, %v1252
        %v1261 = vpack.c.b16 %v1253, %v1253
        %v1262 = vpack.c.b16 %v1254, %v1254
        %v1263 = vpack.c.b16 %v1255, %v1255
        %v1528 = vunpack.c.l.b16 %v937
        %v1529 = vunpack.c.h.b16 %v937
        %v1530 = vunpack.c.l.b16 %v938
        %v1531 = vunpack.c.h.b16 %v938
        %v1532 = vunpack.c.l.b16 %v939
        %v1533 = vunpack.c.h.b16 %v939
        %v1534 = vunpack.c.l.b16 %v940
        %v1535 = vunpack.c.h.b16 %v940
        %v1536 = vunpack.c.l.b16 %v941
        %v1537 = vunpack.c.h.b16 %v941
        %v1538 = vunpack.c.l.b16 %v942
        %v1539 = vunpack.c.h.b16 %v942
        %v1540 = vunpack.c.l.b16 %v943
        %v1541 = vunpack.c.h.b16 %v943
        %v1542 = vunpack.c.l.b16 %v944
        %v1543 = vunpack.c.h.b16 %v944
        %v1544 = vunpack.c.l.b16 %v945
        %v1545 = vunpack.c.h.b16 %v945
        %v1546 = vunpack.c.l.b16 %v946
        %v1547 = vunpack.c.h.b16 %v946
        %v1548 = vunpack.c.l.b16 %v947
        %v1549 = vunpack.c.h.b16 %v947
        %v1550 = vunpack.c.l.b16 %v948
        %v1551 = vunpack.c.h.b16 %v948
        %v1552 = vunpack.c.l.b16 %v949
        %v1553 = vunpack.c.h.b16 %v949
        %v1554 = vunpack.c.l.b16 %v950
        %v1555 = vunpack.c.h.b16 %v950
        %v1556 = vunpack.c.l.b16 %v951
        %v1557 = vunpack.c.h.b16 %v951
        %v1558 = vunpack.c.l.b16 %v952
        %v1559 = vunpack.c.h.b16 %v952
        %v1560 = vunpack.c.l.b16 %v953
        %v1561 = vunpack.c.h.b16 %v953
        %v1562 = vunpack.c.l.b16 %v954
        %v1563 = vunpack.c.h.b16 %v954
        %v1564 = vunpack.c.l.b16 %v955
        %v1565 = vunpack.c.h.b16 %v955
        %v1566 = vunpack.c.l.b16 %v956
        %v1567 = vunpack.c.h.b16 %v956
        %v1568 = vunpack.c.l.b16 %v957
        %v1569 = vunpack.c.h.b16 %v957
        %v1570 = vunpack.c.l.b16 %v958
        %v1571 = vunpack.c.h.b16 %v958
        %v1572 = vunpack.c.l.b16 %v959
        %v1573 = vunpack.c.h.b16 %v959
        %v1574 = vunpack.c.l.b16 %v960
        %v1575 = vunpack.c.h.b16 %v960
        %v1576 = vunpack.c.l.b16 %v961
        %v1577 = vunpack.c.h.b16 %v961
        %v1578 = vunpack.c.l.b16 %v962
        %v1579 = vunpack.c.h.b16 %v962
        %v1580 = vunpack.c.l.b16 %v963
        %v1581 = vunpack.c.h.b16 %v963
        %v1582 = vunpack.c.l.b16 %v964
        %v1583 = vunpack.c.h.b16 %v964
        %v1584 = vunpack.c.l.b16 %v965
        %v1585 = vunpack.c.h.b16 %v965
        %v1586 = vunpack.c.l.b16 %v966
        %v1587 = vunpack.c.h.b16 %v966
        %v1588 = vunpack.c.l.b16 %v967
        %v1589 = vunpack.c.h.b16 %v967
        %v1590 = vunpack.c.l.b16 %v968
        %v1591 = vunpack.c.h.b16 %v968
        %v1592 = vunpack.c.l.b16 %v969
        %v1593 = vunpack.c.h.b16 %v969
        %v1594 = vunpack.c.l.b16 %v970
        %v1595 = vunpack.c.h.b16 %v970
        %v1596 = vunpack.c.l.b16 %v971
        %v1597 = vunpack.c.h.b16 %v971
        %v1598 = vunpack.c.l.b16 %v972
        %v1599 = vunpack.c.h.b16 %v972
        %v1600 = vunpack.c.l.b16 %v973
        %v1601 = vunpack.c.h.b16 %v973
        %v1602 = vunpack.c.l.b16 %v974
        %v1603 = vunpack.c.h.b16 %v974
        %v1604 = vunpack.c.l.b16 %v975
        %v1605 = vunpack.c.h.b16 %v975
        %v1606 = vunpack.c.l.b16 %v976
        %v1607 = vunpack.c.h.b16 %v976
        %v1608 = vunpack.c.l.b16 %v977
        %v1609 = vunpack.c.h.b16 %v977
        %v1610 = vunpack.c.l.b16 %v978
        %v1611 = vunpack.c.h.b16 %v978
        %v1612 = vunpack.c.l.b16 %v979
        %v1613 = vunpack.c.h.b16 %v979
        %v1614 = vunpack.c.l.b16 %v980
        %v1615 = vunpack.c.h.b16 %v980
        %v1616 = vunpack.c.l.b16 %v981
        %v1617 = vunpack.c.h.b16 %v981
        %v1618 = vunpack.c.l.b16 %v982
        %v1619 = vunpack.c.h.b16 %v982
        %v1620 = vunpack.c.l.b16 %v983
        %v1621 = vunpack.c.h.b16 %v983
        %v1622 = vunpack.c.l.b16 %v984
        %v1623 = vunpack.c.h.b16 %v984
        %v1624 = vunpack.c.l.b16 %v985
        %v1625 = vunpack.c.h.b16 %v985
        %v1626 = vunpack.c.l.b16 %v986
        %v1627 = vunpack.c.h.b16 %v986
        %v1628 = vunpack.c.l.b16 %v987
        %v1629 = vunpack.c.h.b16 %v987
        %v1630 = vunpack.c.l.b16 %v988
        %v1631 = vunpack.c.h.b16 %v988
        %v1632 = vunpack.c.l.b16 %v989
        %v1633 = vunpack.c.h.b16 %v989
        %v1634 = vunpack.c.l.b16 %v990
        %v1635 = vunpack.c.h.b16 %v990
        %v1636 = vunpack.c.l.b16 %v991
        %v1637 = vunpack.c.h.b16 %v991
        %v1638 = vunpack.c.l.b16 %v992
        %v1639 = vunpack.c.h.b16 %v992
        %v1640 = vunpack.c.l.b16 %v993
        %v1641 = vunpack.c.h.b16 %v993
        %v1642 = vunpack.c.l.b16 %v994
        %v1643 = vunpack.c.h.b16 %v994
        %v1644 = vunpack.c.l.b16 %v995
        %v1645 = vunpack.c.h.b16 %v995
        %v1646 = vunpack.c.l.b16 %v996
        %v1647 = vunpack.c.h.b16 %v996
        %v1648 = vunpack.c.l.b16 %v997
        %v1649 = vunpack.c.h.b16 %v997
        %v1650 = vunpack.c.l.b16 %v998
        %v1651 = vunpack.c.h.b16 %v998
        %v1652 = vunpack.c.l.b16 %v999
        %v1653 = vunpack.c.h.b16 %v999
        %v1654 = vunpack.c.l.b16 %v1000
        %v1655 = vunpack.c.h.b16 %v1000
        %v1656 = vunpack.c.l.b16 %v1001
        %v1657 = vunpack.c.h.b16 %v1001
        %v1658 = vunpack.c.l.b16 %v1002
        %v1659 = vunpack.c.h.b16 %v1002
        %v1660 = vunpack.c.l.b16 %v1003
        %v1661 = vunpack.c.h.b16 %v1003
        %v1662 = vunpack.c.l.b16 %v1004
        %v1663 = vunpack.c.h.b16 %v1004
        %v1664 = vunpack.c.l.b16 %v1005
        %v1665 = vunpack.c.h.b16 %v1005
        %v1666 = vunpack.c.l.b16 %v1006
        %v1667 = vunpack.c.h.b16 %v1006
        %v1668 = vunpack.c.l.b16 %v1007
        %v1669 = vunpack.c.h.b16 %v1007
        %v1670 = vunpack.c.l.b16 %v1008
        %v1671 = vunpack.c.h.b16 %v1008
        %v1672 = vunpack.c.l.b16 %v1009
        %v1673 = vunpack.c.h.b16 %v1009
        %v1674 = vunpack.c.l.b16 %v1010
        %v1675 = vunpack.c.h.b16 %v1010
        %v1676 = vunpack.c.l.b16 %v1011
        %v1677 = vunpack.c.h.b16 %v1011
        %v1678 = vunpack.c.l.b16 %v1012
        %v1679 = vunpack.c.h.b16 %v1012
        %v1680 = vunpack.c.l.b16 %v1013
        %v1681 = vunpack.c.h.b16 %v1013
        %v1682 = vunpack.c.l.b16 %v1014
        %v1683 = vunpack.c.h.b16 %v1014
        %v1684 = vunpack.c.l.b16 %v1015
        %v1685 = vunpack.c.h.b16 %v1015
        %v1686 = vunpack.c.l.b16 %v1016
        %v1687 = vunpack.c.h.b16 %v1016
        %v1688 = vunpack.c.l.b16 %v1017
        %v1689 = vunpack.c.h.b16 %v1017
        %v1690 = vunpack.c.l.b16 %v1018
        %v1691 = vunpack.c.h.b16 %v1018
        %v1692 = vunpack.c.l.b16 %v1019
        %v1693 = vunpack.c.h.b16 %v1019
        %v1694 = vunpack.c.l.b16 %v1020
        %v1695 = vunpack.c.h.b16 %v1020
        %v1696 = vunpack.c.l.b16 %v1021
        %v1697 = vunpack.c.h.b16 %v1021
        %v1698 = vunpack.c.l.b16 %v1022
        %v1699 = vunpack.c.h.b16 %v1022
        %v1700 = vunpack.c.l.b16 %v1023
        %v1701 = vunpack.c.h.b16 %v1023
        %v1702 = vunpack.c.l.b16 %v1024
        %v1703 = vunpack.c.h.b16 %v1024
        %v1704 = vunpack.c.l.b16 %v1025
        %v1705 = vunpack.c.h.b16 %v1025
        %v1706 = vunpack.c.l.b16 %v1026
        %v1707 = vunpack.c.h.b16 %v1026
        %v1708 = vunpack.c.l.b16 %v1027
        %v1709 = vunpack.c.h.b16 %v1027
        %v1710 = vunpack.c.l.b16 %v1028
        %v1711 = vunpack.c.h.b16 %v1028
        %v1712 = vunpack.c.l.b16 %v1029
        %v1713 = vunpack.c.h.b16 %v1029
        %v1714 = vunpack.c.l.b16 %v1030
        %v1715 = vunpack.c.h.b16 %v1030
        %v1716 = vunpack.c.l.b16 %v1031
        %v1717 = vunpack.c.h.b16 %v1031
        %v1718 = vunpack.c.l.b16 %v1032
        %v1719 = vunpack.c.h.b16 %v1032
        %v1720 = vunpack.c.l.b16 %v1033
        %v1721 = vunpack.c.h.b16 %v1033
        %v1722 = vunpack.c.l.b16 %v1034
        %v1723 = vunpack.c.h.b16 %v1034
        %v1724 = vunpack.c.l.b16 %v1035
        %v1725 = vunpack.c.h.b16 %v1035
        %v1726 = vunpack.c.l.b16 %v1036
        %v1727 = vunpack.c.h.b16 %v1036
        %v1728 = vunpack.c.l.b16 %v1037
        %v1729 = vunpack.c.h.b16 %v1037
        %v1730 = vunpack.c.l.b16 %v1038
        %v1731 = vunpack.c.h.b16 %v1038
        %v1732 = vunpack.c.l.b16 %v1039
        %v1733 = vunpack.c.h.b16 %v1039
        %v1734 = vunpack.c.l.b16 %v1040
        %v1735 = vunpack.c.h.b16 %v1040
        %v1736 = vunpack.c.l.b16 %v1041
        %v1737 = vunpack.c.h.b16 %v1041
        %v1738 = vunpack.c.l.b16 %v1042
        %v1739 = vunpack.c.h.b16 %v1042
        %v1740 = vunpack.c.l.b16 %v1043
        %v1741 = vunpack.c.h.b16 %v1043
        %v1742 = vunpack.c.l.b16 %v1044
        %v1743 = vunpack.c.h.b16 %v1044
        %v1744 = vunpack.c.l.b16 %v1045
        %v1745 = vunpack.c.h.b16 %v1045
        %v1746 = vunpack.c.l.b16 %v1046
        %v1747 = vunpack.c.h.b16 %v1046
        %v1748 = vunpack.c.l.b16 %v1047
        %v1749 = vunpack.c.h.b16 %v1047
        %v1750 = vunpack.c.l.b16 %v1048
        %v1751 = vunpack.c.h.b16 %v1048
        %v1752 = vunpack.c.l.b16 %v1049
        %v1753 = vunpack.c.h.b16 %v1049
        %v1754 = vunpack.c.l.b16 %v1050
        %v1755 = vunpack.c.h.b16 %v1050
        %v1756 = vunpack.c.l.b16 %v1051
        %v1757 = vunpack.c.h.b16 %v1051
        %v1758 = vunpack.c.l.b16 %v1052
        %v1759 = vunpack.c.h.b16 %v1052
        %v1760 = vunpack.c.l.b16 %v1053
        %v1761 = vunpack.c.h.b16 %v1053
        %v1762 = vunpack.c.l.b16 %v1054
        %v1763 = vunpack.c.h.b16 %v1054
        %v1764 = vunpack.c.l.b16 %v1055
        %v1765 = vunpack.c.h.b16 %v1055
        %v1766 = vunpack.c.l.b16 %v1056
        %v1767 = vunpack.c.h.b16 %v1056
        %v1768 = vunpack.c.l.b16 %v1057
        %v1769 = vunpack.c.h.b16 %v1057
        %v1770 = vunpack.c.l.b16 %v1058
        %v1771 = vunpack.c.h.b16 %v1058
        %v1772 = vunpack.c.l.b16 %v1059
        %v1773 = vunpack.c.h.b16 %v1059
        %v1774 = vunpack.c.l.b16 %v1060
        %v1775 = vunpack.c.h.b16 %v1060
        %v1776 = vunpack.c.l.b16 %v1061
        %v1777 = vunpack.c.h.b16 %v1061
        %v1778 = vunpack.c.l.b16 %v1062
        %v1779 = vunpack.c.h.b16 %v1062
        %v1780 = vunpack.c.l.b16 %v1063
        %v1781 = vunpack.c.h.b16 %v1063
        %v1782 = vunpack.c.l.b16 %v1064
        %v1783 = vunpack.c.h.b16 %v1064
        %v1784 = vunpack.c.l.b16 %v1065
        %v1785 = vunpack.c.h.b16 %v1065
        %v1786 = vunpack.c.l.b16 %v1066
        %v1787 = vunpack.c.h.b16 %v1066
        %v1788 = vunpack.c.l.b16 %v1067
        %v1789 = vunpack.c.h.b16 %v1067
        %v1790 = vunpack.c.l.b16 %v1068
        %v1791 = vunpack.c.h.b16 %v1068
        %v1792 = vunpack.c.l.b16 %v1069
        %v1793 = vunpack.c.h.b16 %v1069
        %v1794 = vunpack.c.l.b16 %v1070
        %v1795 = vunpack.c.h.b16 %v1070
        %v1796 = vunpack.c.l.b16 %v1071
        %v1797 = vunpack.c.h.b16 %v1071
        %v1798 = vunpack.c.l.b16 %v1072
        %v1799 = vunpack.c.h.b16 %v1072
        %v1800 = vunpack.c.l.b16 %v1073
        %v1801 = vunpack.c.h.b16 %v1073
        %v1802 = vunpack.c.l.b16 %v1074
        %v1803 = vunpack.c.h.b16 %v1074
        %v1804 = vunpack.c.l.b16 %v1075
        %v1805 = vunpack.c.h.b16 %v1075
        %v1806 = vunpack.c.l.b16 %v1076
        %v1807 = vunpack.c.h.b16 %v1076
        %v1808 = vunpack.c.l.b16 %v1077
        %v1809 = vunpack.c.h.b16 %v1077
        %v1810 = vunpack.c.l.b16 %v1078
        %v1811 = vunpack.c.h.b16 %v1078
        %v1812 = vunpack.c.l.b16 %v1079
        %v1813 = vunpack.c.h.b16 %v1079
        %v1814 = vunpack.c.l.b16 %v1080
        %v1815 = vunpack.c.h.b16 %v1080
        %v1816 = vunpack.c.l.b16 %v1081
        %v1817 = vunpack.c.h.b16 %v1081
        %v1818 = vunpack.c.l.b16 %v1082
        %v1819 = vunpack.c.h.b16 %v1082
        %v1820 = vunpack.c.l.b16 %v1083
        %v1821 = vunpack.c.h.b16 %v1083
        %v1822 = vunpack.c.l.b16 %v1084
        %v1823 = vunpack.c.h.b16 %v1084
        %v1824 = vunpack.c.l.b16 %v1085
        %v1825 = vunpack.c.h.b16 %v1085
        %v1826 = vunpack.c.l.b16 %v1086
        %v1827 = vunpack.c.h.b16 %v1086
        %v1828 = vunpack.c.l.b16 %v1087
        %v1829 = vunpack.c.h.b16 %v1087
        %v1830 = vunpack.c.l.b16 %v1088
        %v1831 = vunpack.c.h.b16 %v1088
        %v1832 = vunpack.c.l.b16 %v1089
        %v1833 = vunpack.c.h.b16 %v1089
        %v1834 = vunpack.c.l.b16 %v1090
        %v1835 = vunpack.c.h.b16 %v1090
        %v1836 = vunpack.c.l.b16 %v1091
        %v1837 = vunpack.c.h.b16 %v1091
        %v1838 = vunpack.c.l.b16 %v1092
        %v1839 = vunpack.c.h.b16 %v1092
        %v1840 = vunpack.c.l.b16 %v1093
        %v1841 = vunpack.c.h.b16 %v1093
        %v1842 = vunpack.c.l.b16 %v1094
        %v1843 = vunpack.c.h.b16 %v1094
        %v1844 = vunpack.c.l.b16 %v1095
        %v1845 = vunpack.c.h.b16 %v1095
        %v1846 = vunpack.c.l.b16 %v1096
        %v1847 = vunpack.c.h.b16 %v1096
        %v1848 = vunpack.c.l.b16 %v1097
        %v1849 = vunpack.c.h.b16 %v1097
        %v1850 = vunpack.c.l.b16 %v1098
        %v1851 = vunpack.c.h.b16 %v1098
        %v1852 = vunpack.c.l.b16 %v1099
        %v1853 = vunpack.c.h.b16 %v1099
        %v1854 = vunpack.c.l.b16 %v1100
        %v1855 = vunpack.c.h.b16 %v1100
        %v1856 = vunpack.c.l.b16 %v1101
        %v1857 = vunpack.c.h.b16 %v1101
        %v1858 = vunpack.c.l.b16 %v1102
        %v1859 = vunpack.c.h.b16 %v1102
        %v1860 = vunpack.c.l.b16 %v1103
        %v1861 = vunpack.c.h.b16 %v1103
        %v1862 = vunpack.c.l.b16 %v1104
        %v1863 = vunpack.c.h.b16 %v1104
        %v1864 = vunpack.c.l.b16 %v1105
        %v1865 = vunpack.c.h.b16 %v1105
        %v1866 = vunpack.c.l.b16 %v1106
        %v1867 = vunpack.c.h.b16 %v1106
        %v1868 = vunpack.c.l.b16 %v1107
        %v1869 = vunpack.c.h.b16 %v1107
        %v1870 = vunpack.c.l.b16 %v1108
        %v1871 = vunpack.c.h.b16 %v1108
        %v1872 = vunpack.c.l.b16 %v1109
        %v1873 = vunpack.c.h.b16 %v1109
        %v1874 = vunpack.c.l.b16 %v1110
        %v1875 = vunpack.c.h.b16 %v1110
        %v1876 = vunpack.c.l.b16 %v1111
        %v1877 = vunpack.c.h.b16 %v1111
        %v1878 = vunpack.c.l.b16 %v1112
        %v1879 = vunpack.c.h.b16 %v1112
        %v1880 = vunpack.c.l.b16 %v1113
        %v1881 = vunpack.c.h.b16 %v1113
        %v1882 = vunpack.c.l.b16 %v1114
        %v1883 = vunpack.c.h.b16 %v1114
        %v1884 = vunpack.c.l.b16 %v1115
        %v1885 = vunpack.c.h.b16 %v1115
        %v1886 = vunpack.c.l.b16 %v1116
        %v1887 = vunpack.c.h.b16 %v1116
        %v1888 = vunpack.c.l.b16 %v1117
        %v1889 = vunpack.c.h.b16 %v1117
        %v1890 = vunpack.c.l.b16 %v1118
        %v1891 = vunpack.c.h.b16 %v1118
        %v1892 = vunpack.c.l.b16 %v1119
        %v1893 = vunpack.c.h.b16 %v1119
        %v1894 = vunpack.c.l.b16 %v1120
        %v1895 = vunpack.c.h.b16 %v1120
        %v1896 = vunpack.c.l.b16 %v1121
        %v1897 = vunpack.c.h.b16 %v1121
        %v1898 = vunpack.c.l.b16 %v1122
        %v1899 = vunpack.c.h.b16 %v1122
        %v1900 = vunpack.c.l.b16 %v1123
        %v1901 = vunpack.c.h.b16 %v1123
        %v1902 = vunpack.c.l.b16 %v1124
        %v1903 = vunpack.c.h.b16 %v1124
        %v1904 = vunpack.c.l.b16 %v1125
        %v1905 = vunpack.c.h.b16 %v1125
        %v1906 = vunpack.c.l.b16 %v1126
        %v1907 = vunpack.c.h.b16 %v1126
        %v1908 = vunpack.c.l.b16 %v1127
        %v1909 = vunpack.c.h.b16 %v1127
        %v1910 = vunpack.c.l.b16 %v1128
        %v1911 = vunpack.c.h.b16 %v1128
        %v1912 = vunpack.c.l.b16 %v1129
        %v1913 = vunpack.c.h.b16 %v1129
        %v1914 = vunpack.c.l.b16 %v1130
        %v1915 = vunpack.c.h.b16 %v1130
        %v1916 = vunpack.c.l.b16 %v1131
        %v1917 = vunpack.c.h.b16 %v1131
        %v1918 = vunpack.c.l.b16 %v1132
        %v1919 = vunpack.c.h.b16 %v1132
        %v1920 = vunpack.c.l.b16 %v1133
        %v1921 = vunpack.c.h.b16 %v1133
        %v1922 = vunpack.c.l.b16 %v1134
        %v1923 = vunpack.c.h.b16 %v1134
        %v1924 = vunpack.c.l.b16 %v1135
        %v1925 = vunpack.c.h.b16 %v1135
        %v1926 = vunpack.c.l.b16 %v1136
        %v1927 = vunpack.c.h.b16 %v1136
        %v1928 = vunpack.c.l.b16 %v1137
        %v1929 = vunpack.c.h.b16 %v1137
        %v1930 = vunpack.c.l.b16 %v1138
        %v1931 = vunpack.c.h.b16 %v1138
        %v1932 = vunpack.c.l.b16 %v1139
        %v1933 = vunpack.c.h.b16 %v1139
        %v1934 = vunpack.c.l.b16 %v1140
        %v1935 = vunpack.c.h.b16 %v1140
        %v1936 = vunpack.c.l.b16 %v1141
        %v1937 = vunpack.c.h.b16 %v1141
        %v1938 = vunpack.c.l.b16 %v1142
        %v1939 = vunpack.c.h.b16 %v1142
        %v1940 = vunpack.c.l.b16 %v1143
        %v1941 = vunpack.c.h.b16 %v1143
        %v1942 = vunpack.c.l.b16 %v1144
        %v1943 = vunpack.c.h.b16 %v1144
        %v1944 = vunpack.c.l.b16 %v1145
        %v1945 = vunpack.c.h.b16 %v1145
        %v1946 = vunpack.c.l.b16 %v1146
        %v1947 = vunpack.c.h.b16 %v1146
        %v1948 = vunpack.c.l.b16 %v1147
        %v1949 = vunpack.c.h.b16 %v1147
        %v1950 = vunpack.c.l.b16 %v1148
        %v1951 = vunpack.c.h.b16 %v1148
        %v1952 = vunpack.c.l.b16 %v1149
        %v1953 = vunpack.c.h.b16 %v1149
        %v1954 = vunpack.c.l.b16 %v1150
        %v1955 = vunpack.c.h.b16 %v1150
        %v1956 = vunpack.c.l.b16 %v1151
        %v1957 = vunpack.c.h.b16 %v1151
        %v1958 = vunpack.c.l.b16 %v1152
        %v1959 = vunpack.c.h.b16 %v1152
        %v1960 = vunpack.c.l.b16 %v1153
        %v1961 = vunpack.c.h.b16 %v1153
        %v1962 = vunpack.c.l.b16 %v1154
        %v1963 = vunpack.c.h.b16 %v1154
        %v1964 = vunpack.c.l.b16 %v1155
        %v1965 = vunpack.c.h.b16 %v1155
        %v1966 = vunpack.c.l.b16 %v1156
        %v1967 = vunpack.c.h.b16 %v1156
        %v1968 = vunpack.c.l.b16 %v1157
        %v1969 = vunpack.c.h.b16 %v1157
        %v1970 = vunpack.c.l.b16 %v1158
        %v1971 = vunpack.c.h.b16 %v1158
        %v1972 = vunpack.c.l.b16 %v1159
        %v1973 = vunpack.c.h.b16 %v1159
        %v1974 = vunpack.c.l.b16 %v1160
        %v1975 = vunpack.c.h.b16 %v1160
        %v1976 = vunpack.c.l.b16 %v1161
        %v1977 = vunpack.c.h.b16 %v1161
        %v1978 = vunpack.c.l.b16 %v1162
        %v1979 = vunpack.c.h.b16 %v1162
        %v1980 = vunpack.c.l.b16 %v1163
        %v1981 = vunpack.c.h.b16 %v1163
        %v1982 = vunpack.c.l.b16 %v1164
        %v1983 = vunpack.c.h.b16 %v1164
        %v1984 = vunpack.c.l.b16 %v1165
        %v1985 = vunpack.c.h.b16 %v1165
        %v1986 = vunpack.c.l.b16 %v1166
        %v1987 = vunpack.c.h.b16 %v1166
        %v1988 = vunpack.c.l.b16 %v1167
        %v1989 = vunpack.c.h.b16 %v1167
        %v1990 = vunpack.c.l.b16 %v1168
        %v1991 = vunpack.c.h.b16 %v1168
        %v1992 = vunpack.c.l.b16 %v1169
        %v1993 = vunpack.c.h.b16 %v1169
        %v1994 = vunpack.c.l.b16 %v1170
        %v1995 = vunpack.c.h.b16 %v1170
        %v1996 = vunpack.c.l.b16 %v1171
        %v1997 = vunpack.c.h.b16 %v1171
        %v1998 = vunpack.c.l.b16 %v1172
        %v1999 = vunpack.c.h.b16 %v1172
        %v2000 = vunpack.c.l.b16 %v1173
        %v2001 = vunpack.c.h.b16 %v1173
        %v2002 = vunpack.c.l.b16 %v1174
        %v2003 = vunpack.c.h.b16 %v1174
        %v2004 = vunpack.c.l.b16 %v1175
        %v2005 = vunpack.c.h.b16 %v1175
        %v2006 = vunpack.c.l.b16 %v1176
        %v2007 = vunpack.c.h.b16 %v1176
        %v2008 = vunpack.c.l.b16 %v1177
        %v2009 = vunpack.c.h.b16 %v1177
        %v2010 = vunpack.c.l.b16 %v1178
        %v2011 = vunpack.c.h.b16 %v1178
        %v2012 = vunpack.c.l.b16 %v1179
        %v2013 = vunpack.c.h.b16 %v1179
        %v2014 = vunpack.c.l.b16 %v1180
        %v2015 = vunpack.c.h.b16 %v1180
        %v2016 = vunpack.c.l.b16 %v1181
        %v2017 = vunpack.c.h.b16 %v1181
        %v2018 = vunpack.c.l.b16 %v1182
        %v2019 = vunpack.c.h.b16 %v1182
        %v2020 = vunpack.c.l.b16 %v1183
        %v2021 = vunpack.c.h.b16 %v1183
        %v2022 = vunpack.c.l.b16 %v1184
        %v2023 = vunpack.c.h.b16 %v1184
        %v2024 = vunpack.c.l.b16 %v1185
        %v2025 = vunpack.c.h.b16 %v1185
        %v2026 = vunpack.c.l.b16 %v1186
        %v2027 = vunpack.c.h.b16 %v1186
        %v2028 = vunpack.c.l.b16 %v1187
        %v2029 = vunpack.c.h.b16 %v1187
        %v2030 = vunpack.c.l.b16 %v1188
        %v2031 = vunpack.c.h.b16 %v1188
        %v2032 = vunpack.c.l.b16 %v1189
        %v2033 = vunpack.c.h.b16 %v1189
        %v2034 = vunpack.c.l.b16 %v1190
        %v2035 = vunpack.c.h.b16 %v1190
        %v2036 = vunpack.c.l.b16 %v1191
        %v2037 = vunpack.c.h.b16 %v1191
        %v2038 = vunpack.c.l.b16 %v1192
        %v2039 = vunpack.c.h.b16 %v1192
        %v2040 = vpack.c.b16 %v1532, %v1528
        %v2041 = vpack.c.b16 %v1533, %v1529
        %v2042 = vpack.c.b16 %v1534, %v1530
        %v2043 = vpack.c.b16 %v1535, %v1531
        %v2044 = vpack.c.b16 %v1540, %v1536
        %v2045 = vpack.c.b16 %v1541, %v1537
        %v2046 = vpack.c.b16 %v1542, %v1538
        %v2047 = vpack.c.b16 %v1543, %v1539
        %v2048 = vpack.c.b16 %v1548, %v1544
        %v2049 = vpack.c.b16 %v1549, %v1545
        %v2050 = vpack.c.b16 %v1550, %v1546
        %v2051 = vpack.c.b16 %v1551, %v1547
        %v2052 = vpack.c.b16 %v1556, %v1552
        %v2053 = vpack.c.b16 %v1557, %v1553
        %v2054 = vpack.c.b16 %v1558, %v1554
        %v2055 = vpack.c.b16 %v1559, %v1555
        %v2056 = vpack.c.b16 %v1564, %v1560
        %v2057 = vpack.c.b16 %v1565, %v1561
        %v2058 = vpack.c.b16 %v1566, %v1562
        %v2059 = vpack.c.b16 %v1567, %v1563
        %v2060 = vpack.c.b16 %v1572, %v1568
        %v2061 = vpack.c.b16 %v1573, %v1569
        %v2062 = vpack.c.b16 %v1574, %v1570
        %v2063 = vpack.c.b16 %v1575, %v1571
        %v2064 = vpack.c.b16 %v1580, %v1576
        %v2065 = vpack.c.b16 %v1581, %v1577
        %v2066 = vpack.c.b16 %v1582, %v1578
        %v2067 = vpack.c.b16 %v1583, %v1579
        %v2068 = vpack.c.b16 %v1588, %v1584
        %v2069 = vpack.c.b16 %v1589, %v1585
        %v2070 = vpack.c.b16 %v1590, %v1586
        %v2071 = vpack.c.b16 %v1591, %v1587
        %v2072 = vpack.c.b16 %v1596, %v1592
        %v2073 = vpack.c.b16 %v1597, %v1593
        %v2074 = vpack.c.b16 %v1598, %v1594
        %v2075 = vpack.c.b16 %v1599, %v1595
        %v2076 = vpack.c.b16 %v1604, %v1600
        %v2077 = vpack.c.b16 %v1605, %v1601
        %v2078 = vpack.c.b16 %v1606, %v1602
        %v2079 = vpack.c.b16 %v1607, %v1603
        %v2080 = vpack.c.b16 %v1612, %v1608
        %v2081 = vpack.c.b16 %v1613, %v1609
        %v2082 = vpack.c.b16 %v1614, %v1610
        %v2083 = vpack.c.b16 %v1615, %v1611
        %v2084 = vpack.c.b16 %v1620, %v1616
        %v2085 = vpack.c.b16 %v1621, %v1617
        %v2086 = vpack.c.b16 %v1622, %v1618
        %v2087 = vpack.c.b16 %v1623, %v1619
        %v2088 = vpack.c.b16 %v1628, %v1624
        %v2089 = vpack.c.b16 %v1629, %v1625
        %v2090 = vpack.c.b16 %v1630, %v1626
        %v2091 = vpack.c.b16 %v1631, %v1627
        %v2092 = vpack.c.b16 %v1636, %v1632
        %v2093 = vpack.c.b16 %v1637, %v1633
        %v2094 = vpack.c.b16 %v1638, %v1634
        %v2095 = vpack.c.b16 %v1639, %v1635
        %v2096 = vpack.c.b16 %v1644, %v1640
        %v2097 = vpack.c.b16 %v1645, %v1641
        %v2098 = vpack.c.b16 %v1646, %v1642
        %v2099 = vpack.c.b16 %v1647, %v1643
        %v2100 = vpack.c.b16 %v1652, %v1648
        %v2101 = vpack.c.b16 %v1653, %v1649
        %v2102 = vpack.c.b16 %v1654, %v1650
        %v2103 = vpack.c.b16 %v1655, %v1651
        %v2104 = vpack.c.b16 %v1660, %v1656
        %v2105 = vpack.c.b16 %v1661, %v1657
        %v2106 = vpack.c.b16 %v1662, %v1658
        %v2107 = vpack.c.b16 %v1663, %v1659
        %v2108 = vpack.c.b16 %v1668, %v1664
        %v2109 = vpack.c.b16 %v1669, %v1665
        %v2110 = vpack.c.b16 %v1670, %v1666
        %v2111 = vpack.c.b16 %v1671, %v1667
        %v2112 = vpack.c.b16 %v1676, %v1672
        %v2113 = vpack.c.b16 %v1677, %v1673
        %v2114 = vpack.c.b16 %v1678, %v1674
        %v2115 = vpack.c.b16 %v1679, %v1675
        %v2116 = vpack.c.b16 %v1684, %v1680
        %v2117 = vpack.c.b16 %v1685, %v1681
        %v2118 = vpack.c.b16 %v1686, %v1682
        %v2119 = vpack.c.b16 %v1687, %v1683
        %v2120 = vpack.c.b16 %v1692, %v1688
        %v2121 = vpack.c.b16 %v1693, %v1689
        %v2122 = vpack.c.b16 %v1694, %v1690
        %v2123 = vpack.c.b16 %v1695, %v1691
        %v2124 = vpack.c.b16 %v1700, %v1696
        %v2125 = vpack.c.b16 %v1701, %v1697
        %v2126 = vpack.c.b16 %v1702, %v1698
        %v2127 = vpack.c.b16 %v1703, %v1699
        %v2128 = vpack.c.b16 %v1708, %v1704
        %v2129 = vpack.c.b16 %v1709, %v1705
        %v2130 = vpack.c.b16 %v1710, %v1706
        %v2131 = vpack.c.b16 %v1711, %v1707
        %v2132 = vpack.c.b16 %v1716, %v1712
        %v2133 = vpack.c.b16 %v1717, %v1713
        %v2134 = vpack.c.b16 %v1718, %v1714
        %v2135 = vpack.c.b16 %v1719, %v1715
        %v2136 = vpack.c.b16 %v1724, %v1720
        %v2137 = vpack.c.b16 %v1725, %v1721
        %v2138 = vpack.c.b16 %v1726, %v1722
        %v2139 = vpack.c.b16 %v1727, %v1723
        %v2140 = vpack.c.b16 %v1732, %v1728
        %v2141 = vpack.c.b16 %v1733, %v1729
        %v2142 = vpack.c.b16 %v1734, %v1730
        %v2143 = vpack.c.b16 %v1735, %v1731
        %v2144 = vpack.c.b16 %v1740, %v1736
        %v2145 = vpack.c.b16 %v1741, %v1737
        %v2146 = vpack.c.b16 %v1742, %v1738
        %v2147 = vpack.c.b16 %v1743, %v1739
        %v2148 = vpack.c.b16 %v1748, %v1744
        %v2149 = vpack.c.b16 %v1749, %v1745
        %v2150 = vpack.c.b16 %v1750, %v1746
        %v2151 = vpack.c.b16 %v1751, %v1747
        %v2152 = vpack.c.b16 %v1756, %v1752
        %v2153 = vpack.c.b16 %v1757, %v1753
        %v2154 = vpack.c.b16 %v1758, %v1754
        %v2155 = vpack.c.b16 %v1759, %v1755
        %v2156 = vpack.c.b16 %v1764, %v1760
        %v2157 = vpack.c.b16 %v1765, %v1761
        %v2158 = vpack.c.b16 %v1766, %v1762
        %v2159 = vpack.c.b16 %v1767, %v1763
        %v2160 = vpack.c.b16 %v1772, %v1768
        %v2161 = vpack.c.b16 %v1773, %v1769
        %v2162 = vpack.c.b16 %v1774, %v1770
        %v2163 = vpack.c.b16 %v1775, %v1771
        %v2164 = vpack.c.b16 %v1780, %v1776
        %v2165 = vpack.c.b16 %v1781, %v1777
        %v2166 = vpack.c.b16 %v1782, %v1778
        %v2167 = vpack.c.b16 %v1783, %v1779
        %v2168 = vpack.c.b16 %v1788, %v1784
        %v2169 = vpack.c.b16 %v1789, %v1785
        %v2170 = vpack.c.b16 %v1790, %v1786
        %v2171 = vpack.c.b16 %v1791, %v1787
        %v2172 = vpack.c.b16 %v1796, %v1792
        %v2173 = vpack.c.b16 %v1797, %v1793
        %v2174 = vpack.c.b16 %v1798, %v1794
        %v2175 = vpack.c.b16 %v1799, %v1795
        %v2176 = vpack.c.b16 %v1804, %v1800
        %v2177 = vpack.c.b16 %v1805, %v1801
        %v2178 = vpack.c.b16 %v1806, %v1802
        %v2179 = vpack.c.b16 %v1807, %v1803
        %v2180 = vpack.c.b16 %v1812, %v1808
        %v2181 = vpack.c.b16 %v1813, %v1809
        %v2182 = vpack.c.b16 %v1814, %v1810
        %v2183 = vpack.c.b16 %v1815, %v1811
        %v2184 = vpack.c.b16 %v1820, %v1816
        %v2185 = vpack.c.b16 %v1821, %v1817
        %v2186 = vpack.c.b16 %v1822, %v1818
        %v2187 = vpack.c.b16 %v1823, %v1819
        %v2188 = vpack.c.b16 %v1828, %v1824
        %v2189 = vpack.c.b16 %v1829, %v1825
        %v2190 = vpack.c.b16 %v1830, %v1826
        %v2191 = vpack.c.b16 %v1831, %v1827
        %v2192 = vpack.c.b16 %v1836, %v1832
        %v2193 = vpack.c.b16 %v1837, %v1833
        %v2194 = vpack.c.b16 %v1838, %v1834
        %v2195 = vpack.c.b16 %v1839, %v1835
        %v2196 = vpack.c.b16 %v1844, %v1840
        %v2197 = vpack.c.b16 %v1845, %v1841
        %v2198 = vpack.c.b16 %v1846, %v1842
        %v2199 = vpack.c.b16 %v1847, %v1843
        %v2200 = vpack.c.b16 %v1852, %v1848
        %v2201 = vpack.c.b16 %v1853, %v1849
        %v2202 = vpack.c.b16 %v1854, %v1850
        %v2203 = vpack.c.b16 %v1855, %v1851
        %v2204 = vpack.c.b16 %v1860, %v1856
        %v2205 = vpack.c.b16 %v1861, %v1857
        %v2206 = vpack.c.b16 %v1862, %v1858
        %v2207 = vpack.c.b16 %v1863, %v1859
        %v2208 = vpack.c.b16 %v1868, %v1864
        %v2209 = vpack.c.b16 %v1869, %v1865
        %v2210 = vpack.c.b16 %v1870, %v1866
        %v2211 = vpack.c.b16 %v1871, %v1867
        %v2212 = vpack.c.b16 %v1876, %v1872
        %v2213 = vpack.c.b16 %v1877, %v1873
        %v2214 = vpack.c.b16 %v1878, %v1874
        %v2215 = vpack.c.b16 %v1879, %v1875
        %v2216 = vpack.c.b16 %v1884, %v1880
        %v2217 = vpack.c.b16 %v1885, %v1881
        %v2218 = vpack.c.b16 %v1886, %v1882
        %v2219 = vpack.c.b16 %v1887, %v1883
        %v2220 = vpack.c.b16 %v1892, %v1888
        %v2221 = vpack.c.b16 %v1893, %v1889
        %v2222 = vpack.c.b16 %v1894, %v1890
        %v2223 = vpack.c.b16 %v1895, %v1891
        %v2224 = vpack.c.b16 %v1900, %v1896
        %v2225 = vpack.c.b16 %v1901, %v1897
        %v2226 = vpack.c.b16 %v1902, %v1898
        %v2227 = vpack.c.b16 %v1903, %v1899
        %v2228 = vpack.c.b16 %v1908, %v1904
        %v2229 = vpack.c.b16 %v1909, %v1905
        %v2230 = vpack.c.b16 %v1910, %v1906
        %v2231 = vpack.c.b16 %v1911, %v1907
        %v2232 = vpack.c.b16 %v1916, %v1912
        %v2233 = vpack.c.b16 %v1917, %v1913
        %v2234 = vpack.c.b16 %v1918, %v1914
        %v2235 = vpack.c.b16 %v1919, %v1915
        %v2236 = vpack.c.b16 %v1924, %v1920
        %v2237 = vpack.c.b16 %v1925, %v1921
        %v2238 = vpack.c.b16 %v1926, %v1922
        %v2239 = vpack.c.b16 %v1927, %v1923
        %v2240 = vpack.c.b16 %v1932, %v1928
        %v2241 = vpack.c.b16 %v1933, %v1929
        %v2242 = vpack.c.b16 %v1934, %v1930
        %v2243 = vpack.c.b16 %v1935, %v1931
        %v2244 = vpack.c.b16 %v1940, %v1936
        %v2245 = vpack.c.b16 %v1941, %v1937
        %v2246 = vpack.c.b16 %v1942, %v1938
        %v2247 = vpack.c.b16 %v1943, %v1939
        %v2248 = vpack.c.b16 %v1948, %v1944
        %v2249 = vpack.c.b16 %v1949, %v1945
        %v2250 = vpack.c.b16 %v1950, %v1946
        %v2251 = vpack.c.b16 %v1951, %v1947
        %v2252 = vpack.c.b16 %v1956, %v1952
        %v2253 = vpack.c.b16 %v1957, %v1953
        %v2254 = vpack.c.b16 %v1958, %v1954
        %v2255 = vpack.c.b16 %v1959, %v1955
        %v2256 = vpack.c.b16 %v1964, %v1960
        %v2257 = vpack.c.b16 %v1965, %v1961
        %v2258 = vpack.c.b16 %v1966, %v1962
        %v2259 = vpack.c.b16 %v1967, %v1963
        %v2260 = vpack.c.b16 %v1972, %v1968
        %v2261 = vpack.c.b16 %v1973, %v1969
        %v2262 = vpack.c.b16 %v1974, %v1970
        %v2263 = vpack.c.b16 %v1975, %v1971
        %v2264 = vpack.c.b16 %v1980, %v1976
        %v2265 = vpack.c.b16 %v1981, %v1977
        %v2266 = vpack.c.b16 %v1982, %v1978
        %v2267 = vpack.c.b16 %v1983, %v1979
        %v2268 = vpack.c.b16 %v1988, %v1984
        %v2269 = vpack.c.b16 %v1989, %v1985
        %v2270 = vpack.c.b16 %v1990, %v1986
        %v2271 = vpack.c.b16 %v1991, %v1987
        %v2272 = vpack.c.b16 %v1996, %v1992
        %v2273 = vpack.c.b16 %v1997, %v1993
        %v2274 = vpack.c.b16 %v1998, %v1994
        %v2275 = vpack.c.b16 %v1999, %v1995
        %v2276 = vpack.c.b16 %v2004, %v2000
        %v2277 = vpack.c.b16 %v2005, %v2001
        %v2278 = vpack.c.b16 %v2006, %v2002
        %v2279 = vpack.c.b16 %v2007, %v2003
        %v2280 = vpack.c.b16 %v2012, %v2008
        %v2281 = vpack.c.b16 %v2013, %v2009
        %v2282 = vpack.c.b16 %v2014, %v2010
        %v2283 = vpack.c.b16 %v2015, %v2011
        %v2284 = vpack.c.b16 %v2020, %v2016
        %v2285 = vpack.c.b16 %v2021, %v2017
        %v2286 = vpack.c.b16 %v2022, %v2018
        %v2287 = vpack.c.b16 %v2023, %v2019
        %v2288 = vpack.c.b16 %v2028, %v2024
        %v2289 = vpack.c.b16 %v2029, %v2025
        %v2290 = vpack.c.b16 %v2030, %v2026
        %v2291 = vpack.c.b16 %v2031, %v2027
        %v2292 = vpack.c.b16 %v2036, %v2032
        %v2293 = vpack.c.b16 %v2037, %v2033
        %v2294 = vpack.c.b16 %v2038, %v2034
        %v2295 = vpack.c.b16 %v2039, %v2035
        %2552 = vmatprep.subr.bf16.mxu0 %v2069
        %2553 = vmatpush1.bf16.msra.mxu0 %v2068
        %2554 = vmatprep.subr.bf16.mxu0 %v2065
        %2555 = vmatpush1.bf16.msra.mxu0 %v2064
        %2556 = vmatprep.subr.bf16.mxu0 %v2061
        %2557 = vmatpush1.bf16.msra.mxu0 %v2060
        %2558 = vmatprep.subr.bf16.mxu0 %v2057
        %2559 = vmatpush1.bf16.msra.mxu0 %v2056
        %2560 = vmatprep.subr.bf16.mxu0 %v2053
        %2561 = vmatpush1.bf16.msra.mxu0 %v2052
        %2562 = vmatprep.subr.bf16.mxu0 %v2049
        %2563 = vmatpush1.bf16.msra.mxu0 %v2048
        %2564 = vmatprep.subr.bf16.mxu0 %v2045
        %2565 = vmatpush1.bf16.msra.mxu0 %v2044
        %2566 = vmatprep.subr.bf16.mxu0 %v2041
        %2567 = vmatpush1.bf16.msra.mxu0 %v2040
        %2568 = vmatprep.subr.bf16.mxu0 %v2101
        %2569 = vmatpush2.bf16.msra.mxu0 %v2100
        %2570 = vmatprep.subr.bf16.mxu0 %v2097
        %2571 = vmatpush2.bf16.msra.mxu0 %v2096
        %2572 = vmatprep.subr.bf16.mxu0 %v2093
        %2573 = vmatpush2.bf16.msra.mxu0 %v2092
        %2574 = vmatprep.subr.bf16.mxu0 %v2089
        %2575 = vmatpush2.bf16.msra.mxu0 %v2088
        %2576 = vmatprep.subr.bf16.mxu0 %v2085
        %2577 = vmatpush2.bf16.msra.mxu0 %v2084
        %2578 = vmatprep.subr.bf16.mxu0 %v2081
        %2579 = vmatpush2.bf16.msra.mxu0 %v2080
        %2580 = vmatprep.subr.bf16.mxu0 %v2077
        %2581 = vmatpush2.bf16.msra.mxu0 %v2076
        %2582 = vmatprep.subr.bf16.mxu0 %v2073
        %2583 = vmatpush2.bf16.msra.mxu0 %v2072
        %2584 = vmatprep.mubr.bf16.mxu0 %v1257
        %2585 = vmatmul.mubr.bf16.gmra.mxu0 %v1256
        %v2586 = vpop.f32.mrf.mxu0
        %v2587 = vadd.f32 %v1198, %v2586
        %v2588 = vpop.f32.mrf.mxu0
        %v2589 = vadd.f32 %v1202, %v2588
        %v2590 = vpop.f32.mrf.mxu0
        %v2591 = vpop.f32.mrf.mxu0
        %2592 = vdwg.mxu0
        %2593 = vmatprep.subr.bf16.mxu0 %v2133
        %2594 = vmatpush1.bf16.msra.mxu0 %v2132
        %2595 = vmatprep.subr.bf16.mxu0 %v2129
        %2596 = vmatpush1.bf16.msra.mxu0 %v2128
        %2597 = vmatprep.subr.bf16.mxu0 %v2125
        %2598 = vmatpush1.bf16.msra.mxu0 %v2124
        %2599 = vmatprep.subr.bf16.mxu0 %v2121
        %2600 = vmatpush1.bf16.msra.mxu0 %v2120
        %2601 = vmatprep.subr.bf16.mxu0 %v2117
        %2602 = vmatpush1.bf16.msra.mxu0 %v2116
        %2603 = vmatprep.subr.bf16.mxu0 %v2113
        %2604 = vmatpush1.bf16.msra.mxu0 %v2112
        %2605 = vmatprep.subr.bf16.mxu0 %v2109
        %2606 = vmatpush1.bf16.msra.mxu0 %v2108
        %2607 = vmatprep.subr.bf16.mxu0 %v2105
        %2608 = vmatpush1.bf16.msra.mxu0 %v2104
        %2609 = vmatprep.subr.bf16.mxu0 %v2165
        %2610 = vmatpush2.bf16.msra.mxu0 %v2164
        %2611 = vmatprep.subr.bf16.mxu0 %v2161
        %2612 = vmatpush2.bf16.msra.mxu0 %v2160
        %2613 = vmatprep.subr.bf16.mxu0 %v2157
        %2614 = vmatpush2.bf16.msra.mxu0 %v2156
        %2615 = vmatprep.subr.bf16.mxu0 %v2153
        %2616 = vmatpush2.bf16.msra.mxu0 %v2152
        %2617 = vmatprep.subr.bf16.mxu0 %v2149
        %2618 = vmatpush2.bf16.msra.mxu0 %v2148
        %2619 = vmatprep.subr.bf16.mxu0 %v2145
        %2620 = vmatpush2.bf16.msra.mxu0 %v2144
        %2621 = vmatprep.subr.bf16.mxu0 %v2141
        %2622 = vmatpush2.bf16.msra.mxu0 %v2140
        %2623 = vmatprep.subr.bf16.mxu0 %v2137
        %2624 = vmatpush2.bf16.msra.mxu0 %v2136
        %2625 = vmatprep.mubr.bf16.mxu0 %v1259
        %2626 = vmatmul.mubr.bf16.gmra.mxu0 %v1258
        %v2627 = vpop.f32.mrf.mxu0
        %v2628 = vadd.f32 %v2587, %v2627
        %v2629 = vpop.f32.mrf.mxu0
        %v2630 = vadd.f32 %v2589, %v2629
        %v2631 = vpop.f32.mrf.mxu0
        %v2632 = vpop.f32.mrf.mxu0
        %2633 = vdwg.mxu0
        %2634 = vmatprep.subr.bf16.mxu0 %v2197
        %2635 = vmatpush1.bf16.msra.mxu0 %v2196
        %2636 = vmatprep.subr.bf16.mxu0 %v2193
        %2637 = vmatpush1.bf16.msra.mxu0 %v2192
        %2638 = vmatprep.subr.bf16.mxu0 %v2189
        %2639 = vmatpush1.bf16.msra.mxu0 %v2188
        %2640 = vmatprep.subr.bf16.mxu0 %v2185
        %2641 = vmatpush1.bf16.msra.mxu0 %v2184
        %2642 = vmatprep.subr.bf16.mxu0 %v2181
        %2643 = vmatpush1.bf16.msra.mxu0 %v2180
        %2644 = vmatprep.subr.bf16.mxu0 %v2177
        %2645 = vmatpush1.bf16.msra.mxu0 %v2176
        %2646 = vmatprep.subr.bf16.mxu0 %v2173
        %2647 = vmatpush1.bf16.msra.mxu0 %v2172
        %2648 = vmatprep.subr.bf16.mxu0 %v2169
        %2649 = vmatpush1.bf16.msra.mxu0 %v2168
        %2650 = vmatprep.subr.bf16.mxu0 %v2229
        %2651 = vmatpush2.bf16.msra.mxu0 %v2228
        %2652 = vmatprep.subr.bf16.mxu0 %v2225
        %2653 = vmatpush2.bf16.msra.mxu0 %v2224
        %2654 = vmatprep.subr.bf16.mxu0 %v2221
        %2655 = vmatpush2.bf16.msra.mxu0 %v2220
        %2656 = vmatprep.subr.bf16.mxu0 %v2217
        %2657 = vmatpush2.bf16.msra.mxu0 %v2216
        %2658 = vmatprep.subr.bf16.mxu0 %v2213
        %2659 = vmatpush2.bf16.msra.mxu0 %v2212
        %2660 = vmatprep.subr.bf16.mxu0 %v2209
        %2661 = vmatpush2.bf16.msra.mxu0 %v2208
        %2662 = vmatprep.subr.bf16.mxu0 %v2205
        %2663 = vmatpush2.bf16.msra.mxu0 %v2204
        %2664 = vmatprep.subr.bf16.mxu0 %v2201
        %2665 = vmatpush2.bf16.msra.mxu0 %v2200
        %2666 = vmatprep.mubr.bf16.mxu0 %v1261
        %2667 = vmatmul.mubr.bf16.gmra.mxu0 %v1260
        %v2668 = vpop.f32.mrf.mxu0
        %v2669 = vadd.f32 %v2628, %v2668
        %v2670 = vpop.f32.mrf.mxu0
        %v2671 = vadd.f32 %v2630, %v2670
        %v2672 = vpop.f32.mrf.mxu0
        %v2673 = vpop.f32.mrf.mxu0
        %2674 = vdwg.mxu0
        %2675 = vmatprep.subr.bf16.mxu0 %v2261
        %2676 = vmatpush1.bf16.msra.mxu0 %v2260
        %2677 = vmatprep.subr.bf16.mxu0 %v2257
        %2678 = vmatpush1.bf16.msra.mxu0 %v2256
        %2679 = vmatprep.subr.bf16.mxu0 %v2253
        %2680 = vmatpush1.bf16.msra.mxu0 %v2252
        %2681 = vmatprep.subr.bf16.mxu0 %v2249
        %2682 = vmatpush1.bf16.msra.mxu0 %v2248
        %2683 = vmatprep.subr.bf16.mxu0 %v2245
        %2684 = vmatpush1.bf16.msra.mxu0 %v2244
        %2685 = vmatprep.subr.bf16.mxu0 %v2241
        %2686 = vmatpush1.bf16.msra.mxu0 %v2240
        %2687 = vmatprep.subr.bf16.mxu0 %v2237
        %2688 = vmatpush1.bf16.msra.mxu0 %v2236
        %2689 = vmatprep.subr.bf16.mxu0 %v2233
        %2690 = vmatpush1.bf16.msra.mxu0 %v2232
        %2691 = vmatprep.subr.bf16.mxu0 %v2293
        %2692 = vmatpush2.bf16.msra.mxu0 %v2292
        %2693 = vmatprep.subr.bf16.mxu0 %v2289
        %2694 = vmatpush2.bf16.msra.mxu0 %v2288
        %2695 = vmatprep.subr.bf16.mxu0 %v2285
        %2696 = vmatpush2.bf16.msra.mxu0 %v2284
        %2697 = vmatprep.subr.bf16.mxu0 %v2281
        %2698 = vmatpush2.bf16.msra.mxu0 %v2280
        %2699 = vmatprep.subr.bf16.mxu0 %v2277
        %2700 = vmatpush2.bf16.msra.mxu0 %v2276
        %2701 = vmatprep.subr.bf16.mxu0 %v2273
        %2702 = vmatpush2.bf16.msra.mxu0 %v2272
        %2703 = vmatprep.subr.bf16.mxu0 %v2269
        %2704 = vmatpush2.bf16.msra.mxu0 %v2268
        %2705 = vmatprep.subr.bf16.mxu0 %v2265
        %2706 = vmatpush2.bf16.msra.mxu0 %v2264
        %2707 = vmatprep.mubr.bf16.mxu0 %v1263
        %2708 = vmatmul.mubr.bf16.gmra.mxu0 %v1262
        %v2709 = vpop.f32.mrf.mxu0
        %v2710 = vadd.f32 %v2669, %v2709
        %v2711 = vpop.f32.mrf.mxu0
        %v2712 = vadd.f32 %v2671, %v2711
        %v2713 = vpop.f32.mrf.mxu0
        %v2714 = vpop.f32.mrf.mxu0
        %2715 = vdwg.mxu0
        %2716 = vmatprep.subr.bf16.mxu0 %v2071
        %2717 = vmatpush1.bf16.msra.mxu0 %v2070
        %2718 = vmatprep.subr.bf16.mxu0 %v2067
        %2719 = vmatpush1.bf16.msra.mxu0 %v2066
        %2720 = vmatprep.subr.bf16.mxu0 %v2063
        %2721 = vmatpush1.bf16.msra.mxu0 %v2062
        %2722 = vmatprep.subr.bf16.mxu0 %v2059
        %2723 = vmatpush1.bf16.msra.mxu0 %v2058
        %2724 = vmatprep.subr.bf16.mxu0 %v2055
        %2725 = vmatpush1.bf16.msra.mxu0 %v2054
        %2726 = vmatprep.subr.bf16.mxu0 %v2051
        %2727 = vmatpush1.bf16.msra.mxu0 %v2050
        %2728 = vmatprep.subr.bf16.mxu0 %v2047
        %2729 = vmatpush1.bf16.msra.mxu0 %v2046
        %2730 = vmatprep.subr.bf16.mxu0 %v2043
        %2731 = vmatpush1.bf16.msra.mxu0 %v2042
        %2732 = vmatprep.subr.bf16.mxu0 %v2103
        %2733 = vmatpush2.bf16.msra.mxu0 %v2102
        %2734 = vmatprep.subr.bf16.mxu0 %v2099
        %2735 = vmatpush2.bf16.msra.mxu0 %v2098
        %2736 = vmatprep.subr.bf16.mxu0 %v2095
        %2737 = vmatpush2.bf16.msra.mxu0 %v2094
        %2738 = vmatprep.subr.bf16.mxu0 %v2091
        %2739 = vmatpush2.bf16.msra.mxu0 %v2090
        %2740 = vmatprep.subr.bf16.mxu0 %v2087
        %2741 = vmatpush2.bf16.msra.mxu0 %v2086
        %2742 = vmatprep.subr.bf16.mxu0 %v2083
        %2743 = vmatpush2.bf16.msra.mxu0 %v2082
        %2744 = vmatprep.subr.bf16.mxu0 %v2079
        %2745 = vmatpush2.bf16.msra.mxu0 %v2078
        %2746 = vmatprep.subr.bf16.mxu0 %v2075
        %2747 = vmatpush2.bf16.msra.mxu0 %v2074
        %2748 = vmatprep.mubr.bf16.mxu0 %v1257
        %2749 = vmatmul.mubr.bf16.gmra.mxu0 %v1256
        %v2750 = vpop.f32.mrf.mxu0
        %v2751 = vadd.f32 %v1206, %v2750
        %v2752 = vpop.f32.mrf.mxu0
        %v2753 = vadd.f32 %v1210, %v2752
        %v2754 = vpop.f32.mrf.mxu0
        %v2755 = vpop.f32.mrf.mxu0
        %2756 = vdwg.mxu0
        %2757 = vmatprep.subr.bf16.mxu0 %v2135
        %2758 = vmatpush1.bf16.msra.mxu0 %v2134
        %2759 = vmatprep.subr.bf16.mxu0 %v2131
        %2760 = vmatpush1.bf16.msra.mxu0 %v2130
        %2761 = vmatprep.subr.bf16.mxu0 %v2127
        %2762 = vmatpush1.bf16.msra.mxu0 %v2126
        %2763 = vmatprep.subr.bf16.mxu0 %v2123
        %2764 = vmatpush1.bf16.msra.mxu0 %v2122
        %2765 = vmatprep.subr.bf16.mxu0 %v2119
        %2766 = vmatpush1.bf16.msra.mxu0 %v2118
        %2767 = vmatprep.subr.bf16.mxu0 %v2115
        %2768 = vmatpush1.bf16.msra.mxu0 %v2114
        %2769 = vmatprep.subr.bf16.mxu0 %v2111
        %2770 = vmatpush1.bf16.msra.mxu0 %v2110
        %2771 = vmatprep.subr.bf16.mxu0 %v2107
        %2772 = vmatpush1.bf16.msra.mxu0 %v2106
        %2773 = vmatprep.subr.bf16.mxu0 %v2167
        %2774 = vmatpush2.bf16.msra.mxu0 %v2166
        %2775 = vmatprep.subr.bf16.mxu0 %v2163
        %2776 = vmatpush2.bf16.msra.mxu0 %v2162
        %2777 = vmatprep.subr.bf16.mxu0 %v2159
        %2778 = vmatpush2.bf16.msra.mxu0 %v2158
        %2779 = vmatprep.subr.bf16.mxu0 %v2155
        %2780 = vmatpush2.bf16.msra.mxu0 %v2154
        %2781 = vmatprep.subr.bf16.mxu0 %v2151
        %2782 = vmatpush2.bf16.msra.mxu0 %v2150
        %2783 = vmatprep.subr.bf16.mxu0 %v2147
        %2784 = vmatpush2.bf16.msra.mxu0 %v2146
        %2785 = vmatprep.subr.bf16.mxu0 %v2143
        %2786 = vmatpush2.bf16.msra.mxu0 %v2142
        %2787 = vmatprep.subr.bf16.mxu0 %v2139
        %2788 = vmatpush2.bf16.msra.mxu0 %v2138
        %2789 = vmatprep.mubr.bf16.mxu0 %v1259
        %2790 = vmatmul.mubr.bf16.gmra.mxu0 %v1258
        %v2791 = vpop.f32.mrf.mxu0
        %v2792 = vadd.f32 %v2751, %v2791
        %v2793 = vpop.f32.mrf.mxu0
        %v2794 = vadd.f32 %v2753, %v2793
        %v2795 = vpop.f32.mrf.mxu0
        %v2796 = vpop.f32.mrf.mxu0
        %2797 = vdwg.mxu0
        %2798 = vmatprep.subr.bf16.mxu0 %v2199
        %2799 = vmatpush1.bf16.msra.mxu0 %v2198
        %2800 = vmatprep.subr.bf16.mxu0 %v2195
        %2801 = vmatpush1.bf16.msra.mxu0 %v2194
        %2802 = vmatprep.subr.bf16.mxu0 %v2191
        %2803 = vmatpush1.bf16.msra.mxu0 %v2190
        %2804 = vmatprep.subr.bf16.mxu0 %v2187
        %2805 = vmatpush1.bf16.msra.mxu0 %v2186
        %2806 = vmatprep.subr.bf16.mxu0 %v2183
        %2807 = vmatpush1.bf16.msra.mxu0 %v2182
        %2808 = vmatprep.subr.bf16.mxu0 %v2179
        %2809 = vmatpush1.bf16.msra.mxu0 %v2178
        %2810 = vmatprep.subr.bf16.mxu0 %v2175
        %2811 = vmatpush1.bf16.msra.mxu0 %v2174
        %2812 = vmatprep.subr.bf16.mxu0 %v2171
        %2813 = vmatpush1.bf16.msra.mxu0 %v2170
        %2814 = vmatprep.subr.bf16.mxu0 %v2231
        %2815 = vmatpush2.bf16.msra.mxu0 %v2230
        %2816 = vmatprep.subr.bf16.mxu0 %v2227
        %2817 = vmatpush2.bf16.msra.mxu0 %v2226
        %2818 = vmatprep.subr.bf16.mxu0 %v2223
        %2819 = vmatpush2.bf16.msra.mxu0 %v2222
        %2820 = vmatprep.subr.bf16.mxu0 %v2219
        %2821 = vmatpush2.bf16.msra.mxu0 %v2218
        %2822 = vmatprep.subr.bf16.mxu0 %v2215
        %2823 = vmatpush2.bf16.msra.mxu0 %v2214
        %2824 = vmatprep.subr.bf16.mxu0 %v2211
        %2825 = vmatpush2.bf16.msra.mxu0 %v2210
        %2826 = vmatprep.subr.bf16.mxu0 %v2207
        %2827 = vmatpush2.bf16.msra.mxu0 %v2206
        %2828 = vmatprep.subr.bf16.mxu0 %v2203
        %2829 = vmatpush2.bf16.msra.mxu0 %v2202
        %2830 = vmatprep.mubr.bf16.mxu0 %v1261
        %2831 = vmatmul.mubr.bf16.gmra.mxu0 %v1260
        %v2832 = vpop.f32.mrf.mxu0
        %v2833 = vadd.f32 %v2792, %v2832
        %v2834 = vpop.f32.mrf.mxu0
        %v2835 = vadd.f32 %v2794, %v2834
        %v2836 = vpop.f32.mrf.mxu0
        %v2837 = vpop.f32.mrf.mxu0
        %2838 = vdwg.mxu0
        %2839 = vmatprep.subr.bf16.mxu0 %v2263
        %2840 = vmatpush1.bf16.msra.mxu0 %v2262
        %2841 = vmatprep.subr.bf16.mxu0 %v2259
        %2842 = vmatpush1.bf16.msra.mxu0 %v2258
        %2843 = vmatprep.subr.bf16.mxu0 %v2255
        %2844 = vmatpush1.bf16.msra.mxu0 %v2254
        %2845 = vmatprep.subr.bf16.mxu0 %v2251
        %2846 = vmatpush1.bf16.msra.mxu0 %v2250
        %2847 = vmatprep.subr.bf16.mxu0 %v2247
        %2848 = vmatpush1.bf16.msra.mxu0 %v2246
        %2849 = vmatprep.subr.bf16.mxu0 %v2243
        %2850 = vmatpush1.bf16.msra.mxu0 %v2242
        %2851 = vmatprep.subr.bf16.mxu0 %v2239
        %2852 = vmatpush1.bf16.msra.mxu0 %v2238
        %2853 = vmatprep.subr.bf16.mxu0 %v2235
        %2854 = vmatpush1.bf16.msra.mxu0 %v2234
        %2855 = vmatprep.subr.bf16.mxu0 %v2295
        %2856 = vmatpush2.bf16.msra.mxu0 %v2294
        %2857 = vmatprep.subr.bf16.mxu0 %v2291
        %2858 = vmatpush2.bf16.msra.mxu0 %v2290
        %2859 = vmatprep.subr.bf16.mxu0 %v2287
        %2860 = vmatpush2.bf16.msra.mxu0 %v2286
        %2861 = vmatprep.subr.bf16.mxu0 %v2283
        %2862 = vmatpush2.bf16.msra.mxu0 %v2282
        %2863 = vmatprep.subr.bf16.mxu0 %v2279
        %2864 = vmatpush2.bf16.msra.mxu0 %v2278
        %2865 = vmatprep.subr.bf16.mxu0 %v2275
        %2866 = vmatpush2.bf16.msra.mxu0 %v2274
        %2867 = vmatprep.subr.bf16.mxu0 %v2271
        %2868 = vmatpush2.bf16.msra.mxu0 %v2270
        %2869 = vmatprep.subr.bf16.mxu0 %v2267
        %2870 = vmatpush2.bf16.msra.mxu0 %v2266
        %2871 = vmatprep.mubr.bf16.mxu0 %v1263
        %2872 = vmatmul.mubr.bf16.gmra.mxu0 %v1262
        %v2873 = vpop.f32.mrf.mxu0
        %v2874 = vadd.f32 %v2833, %v2873
        %v2875 = vpop.f32.mrf.mxu0
        %v2876 = vadd.f32 %v2835, %v2875
        %v2877 = vpop.f32.mrf.mxu0
        %v2878 = vpop.f32.mrf.mxu0
        %2879 = vdwg.mxu0
        %v2880 = vmax.f32 %v2710, 0.0
        %v2881 = vmax.f32 %v2712, 0.0
        %v2882 = vmax.f32 %v2874, 0.0
        %v2883 = vmax.f32 %v2876, 0.0
        %v2884 = vpack.c.bf16 %v2880, %v2880
        %v2885 = vpack.c.bf16 %v2881, %v2881
        %v2886 = vpack.c.bf16 %v2882, %v2882
        %v2887 = vpack.c.bf16 %v2883, %v2883
        %v2888 = vld [vmem:[%s735] sm:$0xff]
        %v2889 = vld [vmem:[%s735 + $0x8] sm:$0xff]
        %v2890 = vld [vmem:[%s735 + $0x10] sm:$0xff]
        %v2891 = vld [vmem:[%s735 + $0x18] sm:$0xff]
        %v2892 = vld [vmem:[%s735 + $0x20] sm:$0xff]
        %v2893 = vld [vmem:[%s735 + $0x28] sm:$0xff]
        %v2894 = vld [vmem:[%s735 + $0x30] sm:$0xff]
        %v2895 = vld [vmem:[%s735 + $0x38] sm:$0xff]
        %v2896 = vld [vmem:[%s735 + $0x40] sm:$0xff]
        %v2897 = vld [vmem:[%s735 + $0x48] sm:$0xff]
        %v2898 = vld [vmem:[%s735 + $0x50] sm:$0xff]
        %v2899 = vld [vmem:[%s735 + $0x58] sm:$0xff]
        %v2900 = vld [vmem:[%s735 + $0x60] sm:$0xff]
        %v2901 = vld [vmem:[%s735 + $0x68] sm:$0xff]
        %v2902 = vld [vmem:[%s735 + $0x70] sm:$0xff]
        %v2903 = vld [vmem:[%s735 + $0x78] sm:$0xff]
        %v2904 = vld [vmem:[%s735 + $0x80] sm:$0xff]
        %v2905 = vld [vmem:[%s735 + $0x88] sm:$0xff]
        %v2906 = vld [vmem:[%s735 + $0x90] sm:$0xff]
        %v2907 = vld [vmem:[%s735 + $0x98] sm:$0xff]
        %v2908 = vld [vmem:[%s735 + $0xa0] sm:$0xff]
        %v2909 = vld [vmem:[%s735 + $0xa8] sm:$0xff]
        %v2910 = vld [vmem:[%s735 + $0xb0] sm:$0xff]
        %v2911 = vld [vmem:[%s735 + $0xb8] sm:$0xff]
        %v2912 = vld [vmem:[%s735 + $0xc0] sm:$0xff]
        %v2913 = vld [vmem:[%s735 + $0xc8] sm:$0xff]
        %v2914 = vld [vmem:[%s735 + $0xd0] sm:$0xff]
        %v2915 = vld [vmem:[%s735 + $0xd8] sm:$0xff]
        %v2916 = vld [vmem:[%s735 + $0xe0] sm:$0xff]
        %v2917 = vld [vmem:[%s735 + $0xe8] sm:$0xff]
        %v2918 = vld [vmem:[%s735 + $0xf0] sm:$0xff]
        %v2919 = vld [vmem:[%s735 + $0xf8] sm:$0xff]
        %v2920 = vld [vmem:[%s735 + $0x100] sm:$0xff]
        %v2921 = vld [vmem:[%s735 + $0x108] sm:$0xff]
        %v2922 = vld [vmem:[%s735 + $0x110] sm:$0xff]
        %v2923 = vld [vmem:[%s735 + $0x118] sm:$0xff]
        %v2924 = vld [vmem:[%s735 + $0x120] sm:$0xff]
        %v2925 = vld [vmem:[%s735 + $0x128] sm:$0xff]
        %v2926 = vld [vmem:[%s735 + $0x130] sm:$0xff]
        %v2927 = vld [vmem:[%s735 + $0x138] sm:$0xff]
        %v2928 = vld [vmem:[%s735 + $0x140] sm:$0xff]
        %v2929 = vld [vmem:[%s735 + $0x148] sm:$0xff]
        %v2930 = vld [vmem:[%s735 + $0x150] sm:$0xff]
        %v2931 = vld [vmem:[%s735 + $0x158] sm:$0xff]
        %v2932 = vld [vmem:[%s735 + $0x160] sm:$0xff]
        %v2933 = vld [vmem:[%s735 + $0x168] sm:$0xff]
        %v2934 = vld [vmem:[%s735 + $0x170] sm:$0xff]
        %v2935 = vld [vmem:[%s735 + $0x178] sm:$0xff]
        %v2936 = vld [vmem:[%s735 + $0x180] sm:$0xff]
        %v2937 = vld [vmem:[%s735 + $0x188] sm:$0xff]
        %v2938 = vld [vmem:[%s735 + $0x190] sm:$0xff]
        %v2939 = vld [vmem:[%s735 + $0x198] sm:$0xff]
        %v2940 = vld [vmem:[%s735 + $0x1a0] sm:$0xff]
        %v2941 = vld [vmem:[%s735 + $0x1a8] sm:$0xff]
        %v2942 = vld [vmem:[%s735 + $0x1b0] sm:$0xff]
        %v2943 = vld [vmem:[%s735 + $0x1b8] sm:$0xff]
        %v2944 = vld [vmem:[%s735 + $0x1c0] sm:$0xff]
        %v2945 = vld [vmem:[%s735 + $0x1c8] sm:$0xff]
        %v2946 = vld [vmem:[%s735 + $0x1d0] sm:$0xff]
        %v2947 = vld [vmem:[%s735 + $0x1d8] sm:$0xff]
        %v2948 = vld [vmem:[%s735 + $0x1e0] sm:$0xff]
        %v2949 = vld [vmem:[%s735 + $0x1e8] sm:$0xff]
        %v2950 = vld [vmem:[%s735 + $0x1f0] sm:$0xff]
        %v2951 = vld [vmem:[%s735 + $0x1f8] sm:$0xff]
        %v2952 = vld [vmem:[%s735 + $0x200] sm:$0xff]
        %v2953 = vld [vmem:[%s735 + $0x208] sm:$0xff]
        %v2954 = vld [vmem:[%s735 + $0x210] sm:$0xff]
        %v2955 = vld [vmem:[%s735 + $0x218] sm:$0xff]
        %v2956 = vld [vmem:[%s735 + $0x220] sm:$0xff]
        %v2957 = vld [vmem:[%s735 + $0x228] sm:$0xff]
        %v2958 = vld [vmem:[%s735 + $0x230] sm:$0xff]
        %v2959 = vld [vmem:[%s735 + $0x238] sm:$0xff]
        %v2960 = vld [vmem:[%s735 + $0x240] sm:$0xff]
        %v2961 = vld [vmem:[%s735 + $0x248] sm:$0xff]
        %v2962 = vld [vmem:[%s735 + $0x250] sm:$0xff]
        %v2963 = vld [vmem:[%s735 + $0x258] sm:$0xff]
        %v2964 = vld [vmem:[%s735 + $0x260] sm:$0xff]
        %v2965 = vld [vmem:[%s735 + $0x268] sm:$0xff]
        %v2966 = vld [vmem:[%s735 + $0x270] sm:$0xff]
        %v2967 = vld [vmem:[%s735 + $0x278] sm:$0xff]
        %v2968 = vld [vmem:[%s735 + $0x280] sm:$0xff]
        %v2969 = vld [vmem:[%s735 + $0x288] sm:$0xff]
        %v2970 = vld [vmem:[%s735 + $0x290] sm:$0xff]
        %v2971 = vld [vmem:[%s735 + $0x298] sm:$0xff]
        %v2972 = vld [vmem:[%s735 + $0x2a0] sm:$0xff]
        %v2973 = vld [vmem:[%s735 + $0x2a8] sm:$0xff]
        %v2974 = vld [vmem:[%s735 + $0x2b0] sm:$0xff]
        %v2975 = vld [vmem:[%s735 + $0x2b8] sm:$0xff]
        %v2976 = vld [vmem:[%s735 + $0x2c0] sm:$0xff]
        %v2977 = vld [vmem:[%s735 + $0x2c8] sm:$0xff]
        %v2978 = vld [vmem:[%s735 + $0x2d0] sm:$0xff]
        %v2979 = vld [vmem:[%s735 + $0x2d8] sm:$0xff]
        %v2980 = vld [vmem:[%s735 + $0x2e0] sm:$0xff]
        %v2981 = vld [vmem:[%s735 + $0x2e8] sm:$0xff]
        %v2982 = vld [vmem:[%s735 + $0x2f0] sm:$0xff]
        %v2983 = vld [vmem:[%s735 + $0x2f8] sm:$0xff]
        %v2984 = vld [vmem:[%s735 + $0x300] sm:$0xff]
        %v2985 = vld [vmem:[%s735 + $0x308] sm:$0xff]
        %v2986 = vld [vmem:[%s735 + $0x310] sm:$0xff]
        %v2987 = vld [vmem:[%s735 + $0x318] sm:$0xff]
        %v2988 = vld [vmem:[%s735 + $0x320] sm:$0xff]
        %v2989 = vld [vmem:[%s735 + $0x328] sm:$0xff]
        %v2990 = vld [vmem:[%s735 + $0x330] sm:$0xff]
        %v2991 = vld [vmem:[%s735 + $0x338] sm:$0xff]
        %v2992 = vld [vmem:[%s735 + $0x340] sm:$0xff]
        %v2993 = vld [vmem:[%s735 + $0x348] sm:$0xff]
        %v2994 = vld [vmem:[%s735 + $0x350] sm:$0xff]
        %v2995 = vld [vmem:[%s735 + $0x358] sm:$0xff]
        %v2996 = vld [vmem:[%s735 + $0x360] sm:$0xff]
        %v2997 = vld [vmem:[%s735 + $0x368] sm:$0xff]
        %v2998 = vld [vmem:[%s735 + $0x370] sm:$0xff]
        %v2999 = vld [vmem:[%s735 + $0x378] sm:$0xff]
        %v3000 = vld [vmem:[%s735 + $0x380] sm:$0xff]
        %v3001 = vld [vmem:[%s735 + $0x388] sm:$0xff]
        %v3002 = vld [vmem:[%s735 + $0x390] sm:$0xff]
        %v3003 = vld [vmem:[%s735 + $0x398] sm:$0xff]
        %v3004 = vld [vmem:[%s735 + $0x3a0] sm:$0xff]
        %v3005 = vld [vmem:[%s735 + $0x3a8] sm:$0xff]
        %v3006 = vld [vmem:[%s735 + $0x3b0] sm:$0xff]
        %v3007 = vld [vmem:[%s735 + $0x3b8] sm:$0xff]
        %v3008 = vld [vmem:[%s735 + $0x3c0] sm:$0xff]
        %v3009 = vld [vmem:[%s735 + $0x3c8] sm:$0xff]
        %v3010 = vld [vmem:[%s735 + $0x3d0] sm:$0xff]
        %v3011 = vld [vmem:[%s735 + $0x3d8] sm:$0xff]
        %v3012 = vld [vmem:[%s735 + $0x3e0] sm:$0xff]
        %v3013 = vld [vmem:[%s735 + $0x3e8] sm:$0xff]
        %v3014 = vld [vmem:[%s735 + $0x3f0] sm:$0xff]
        %v3015 = vld [vmem:[%s735 + $0x3f8] sm:$0xff]
        %v3016 = vld [vmem:[%s735 + $0x400] sm:$0xff]
        %v3017 = vld [vmem:[%s735 + $0x408] sm:$0xff]
        %v3018 = vld [vmem:[%s735 + $0x410] sm:$0xff]
        %v3019 = vld [vmem:[%s735 + $0x418] sm:$0xff]
        %v3020 = vld [vmem:[%s735 + $0x420] sm:$0xff]
        %v3021 = vld [vmem:[%s735 + $0x428] sm:$0xff]
        %v3022 = vld [vmem:[%s735 + $0x430] sm:$0xff]
        %v3023 = vld [vmem:[%s735 + $0x438] sm:$0xff]
        %v3024 = vld [vmem:[%s735 + $0x440] sm:$0xff]
        %v3025 = vld [vmem:[%s735 + $0x448] sm:$0xff]
        %v3026 = vld [vmem:[%s735 + $0x450] sm:$0xff]
        %v3027 = vld [vmem:[%s735 + $0x458] sm:$0xff]
        %v3028 = vld [vmem:[%s735 + $0x460] sm:$0xff]
        %v3029 = vld [vmem:[%s735 + $0x468] sm:$0xff]
        %v3030 = vld [vmem:[%s735 + $0x470] sm:$0xff]
        %v3031 = vld [vmem:[%s735 + $0x478] sm:$0xff]
        %v3032 = vld [vmem:[%s735 + $0x480] sm:$0xff]
        %v3033 = vld [vmem:[%s735 + $0x488] sm:$0xff]
        %v3034 = vld [vmem:[%s735 + $0x490] sm:$0xff]
        %v3035 = vld [vmem:[%s735 + $0x498] sm:$0xff]
        %v3036 = vld [vmem:[%s735 + $0x4a0] sm:$0xff]
        %v3037 = vld [vmem:[%s735 + $0x4a8] sm:$0xff]
        %v3038 = vld [vmem:[%s735 + $0x4b0] sm:$0xff]
        %v3039 = vld [vmem:[%s735 + $0x4b8] sm:$0xff]
        %v3040 = vld [vmem:[%s735 + $0x4c0] sm:$0xff]
        %v3041 = vld [vmem:[%s735 + $0x4c8] sm:$0xff]
        %v3042 = vld [vmem:[%s735 + $0x4d0] sm:$0xff]
        %v3043 = vld [vmem:[%s735 + $0x4d8] sm:$0xff]
        %v3044 = vld [vmem:[%s735 + $0x4e0] sm:$0xff]
        %v3045 = vld [vmem:[%s735 + $0x4e8] sm:$0xff]
        %v3046 = vld [vmem:[%s735 + $0x4f0] sm:$0xff]
        %v3047 = vld [vmem:[%s735 + $0x4f8] sm:$0xff]
        %v3048 = vld [vmem:[%s735 + $0x500] sm:$0xff]
        %v3049 = vld [vmem:[%s735 + $0x508] sm:$0xff]
        %v3050 = vld [vmem:[%s735 + $0x510] sm:$0xff]
        %v3051 = vld [vmem:[%s735 + $0x518] sm:$0xff]
        %v3052 = vld [vmem:[%s735 + $0x520] sm:$0xff]
        %v3053 = vld [vmem:[%s735 + $0x528] sm:$0xff]
        %v3054 = vld [vmem:[%s735 + $0x530] sm:$0xff]
        %v3055 = vld [vmem:[%s735 + $0x538] sm:$0xff]
        %v3056 = vld [vmem:[%s735 + $0x540] sm:$0xff]
        %v3057 = vld [vmem:[%s735 + $0x548] sm:$0xff]
        %v3058 = vld [vmem:[%s735 + $0x550] sm:$0xff]
        %v3059 = vld [vmem:[%s735 + $0x558] sm:$0xff]
        %v3060 = vld [vmem:[%s735 + $0x560] sm:$0xff]
        %v3061 = vld [vmem:[%s735 + $0x568] sm:$0xff]
        %v3062 = vld [vmem:[%s735 + $0x570] sm:$0xff]
        %v3063 = vld [vmem:[%s735 + $0x578] sm:$0xff]
        %v3064 = vld [vmem:[%s735 + $0x580] sm:$0xff]
        %v3065 = vld [vmem:[%s735 + $0x588] sm:$0xff]
        %v3066 = vld [vmem:[%s735 + $0x590] sm:$0xff]
        %v3067 = vld [vmem:[%s735 + $0x598] sm:$0xff]
        %v3068 = vld [vmem:[%s735 + $0x5a0] sm:$0xff]
        %v3069 = vld [vmem:[%s735 + $0x5a8] sm:$0xff]
        %v3070 = vld [vmem:[%s735 + $0x5b0] sm:$0xff]
        %v3071 = vld [vmem:[%s735 + $0x5b8] sm:$0xff]
        %v3072 = vld [vmem:[%s735 + $0x5c0] sm:$0xff]
        %v3073 = vld [vmem:[%s735 + $0x5c8] sm:$0xff]
        %v3074 = vld [vmem:[%s735 + $0x5d0] sm:$0xff]
        %v3075 = vld [vmem:[%s735 + $0x5d8] sm:$0xff]
        %v3076 = vld [vmem:[%s735 + $0x5e0] sm:$0xff]
        %v3077 = vld [vmem:[%s735 + $0x5e8] sm:$0xff]
        %v3078 = vld [vmem:[%s735 + $0x5f0] sm:$0xff]
        %v3079 = vld [vmem:[%s735 + $0x5f8] sm:$0xff]
        %v3080 = vld [vmem:[%s735 + $0x600] sm:$0xff]
        %v3081 = vld [vmem:[%s735 + $0x608] sm:$0xff]
        %v3082 = vld [vmem:[%s735 + $0x610] sm:$0xff]
        %v3083 = vld [vmem:[%s735 + $0x618] sm:$0xff]
        %v3084 = vld [vmem:[%s735 + $0x620] sm:$0xff]
        %v3085 = vld [vmem:[%s735 + $0x628] sm:$0xff]
        %v3086 = vld [vmem:[%s735 + $0x630] sm:$0xff]
        %v3087 = vld [vmem:[%s735 + $0x638] sm:$0xff]
        %v3088 = vld [vmem:[%s735 + $0x640] sm:$0xff]
        %v3089 = vld [vmem:[%s735 + $0x648] sm:$0xff]
        %v3090 = vld [vmem:[%s735 + $0x650] sm:$0xff]
        %v3091 = vld [vmem:[%s735 + $0x658] sm:$0xff]
        %v3092 = vld [vmem:[%s735 + $0x660] sm:$0xff]
        %v3093 = vld [vmem:[%s735 + $0x668] sm:$0xff]
        %v3094 = vld [vmem:[%s735 + $0x670] sm:$0xff]
        %v3095 = vld [vmem:[%s735 + $0x678] sm:$0xff]
        %v3096 = vld [vmem:[%s735 + $0x680] sm:$0xff]
        %v3097 = vld [vmem:[%s735 + $0x688] sm:$0xff]
        %v3098 = vld [vmem:[%s735 + $0x690] sm:$0xff]
        %v3099 = vld [vmem:[%s735 + $0x698] sm:$0xff]
        %v3100 = vld [vmem:[%s735 + $0x6a0] sm:$0xff]
        %v3101 = vld [vmem:[%s735 + $0x6a8] sm:$0xff]
        %v3102 = vld [vmem:[%s735 + $0x6b0] sm:$0xff]
        %v3103 = vld [vmem:[%s735 + $0x6b8] sm:$0xff]
        %v3104 = vld [vmem:[%s735 + $0x6c0] sm:$0xff]
        %v3105 = vld [vmem:[%s735 + $0x6c8] sm:$0xff]
        %v3106 = vld [vmem:[%s735 + $0x6d0] sm:$0xff]
        %v3107 = vld [vmem:[%s735 + $0x6d8] sm:$0xff]
        %v3108 = vld [vmem:[%s735 + $0x6e0] sm:$0xff]
        %v3109 = vld [vmem:[%s735 + $0x6e8] sm:$0xff]
        %v3110 = vld [vmem:[%s735 + $0x6f0] sm:$0xff]
        %v3111 = vld [vmem:[%s735 + $0x6f8] sm:$0xff]
        %v3112 = vld [vmem:[%s735 + $0x700] sm:$0xff]
        %v3113 = vld [vmem:[%s735 + $0x708] sm:$0xff]
        %v3114 = vld [vmem:[%s735 + $0x710] sm:$0xff]
        %v3115 = vld [vmem:[%s735 + $0x718] sm:$0xff]
        %v3116 = vld [vmem:[%s735 + $0x720] sm:$0xff]
        %v3117 = vld [vmem:[%s735 + $0x728] sm:$0xff]
        %v3118 = vld [vmem:[%s735 + $0x730] sm:$0xff]
        %v3119 = vld [vmem:[%s735 + $0x738] sm:$0xff]
        %v3120 = vld [vmem:[%s735 + $0x740] sm:$0xff]
        %v3121 = vld [vmem:[%s735 + $0x748] sm:$0xff]
        %v3122 = vld [vmem:[%s735 + $0x750] sm:$0xff]
        %v3123 = vld [vmem:[%s735 + $0x758] sm:$0xff]
        %v3124 = vld [vmem:[%s735 + $0x760] sm:$0xff]
        %v3125 = vld [vmem:[%s735 + $0x768] sm:$0xff]
        %v3126 = vld [vmem:[%s735 + $0x770] sm:$0xff]
        %v3127 = vld [vmem:[%s735 + $0x778] sm:$0xff]
        %v3128 = vld [vmem:[%s735 + $0x780] sm:$0xff]
        %v3129 = vld [vmem:[%s735 + $0x788] sm:$0xff]
        %v3130 = vld [vmem:[%s735 + $0x790] sm:$0xff]
        %v3131 = vld [vmem:[%s735 + $0x798] sm:$0xff]
        %v3132 = vld [vmem:[%s735 + $0x7a0] sm:$0xff]
        %v3133 = vld [vmem:[%s735 + $0x7a8] sm:$0xff]
        %v3134 = vld [vmem:[%s735 + $0x7b0] sm:$0xff]
        %v3135 = vld [vmem:[%s735 + $0x7b8] sm:$0xff]
        %v3136 = vld [vmem:[%s735 + $0x7c0] sm:$0xff]
        %v3137 = vld [vmem:[%s735 + $0x7c8] sm:$0xff]
        %v3138 = vld [vmem:[%s735 + $0x7d0] sm:$0xff]
        %v3139 = vld [vmem:[%s735 + $0x7d8] sm:$0xff]
        %v3140 = vld [vmem:[%s735 + $0x7e0] sm:$0xff]
        %v3141 = vld [vmem:[%s735 + $0x7e8] sm:$0xff]
        %v3142 = vld [vmem:[%s735 + $0x7f0] sm:$0xff]
        %v3143 = vld [vmem:[%s735 + $0x7f8] sm:$0xff]
        %v3144 = vld [vmem:[%s768] sm:$0xff]
        %v3146 = vlaneseq
        %v3147 = vshrl.u32 %v3146, 7
        %v3148 = vsub.s32 0, %v3147
        %v3149 = vrot.slane %v3144, %v3148
        %v3150 = vlaneseq
        %v3151 = vshrl.u32 %v3150, 7
        %v3152 = vsub.s32 1, %v3151
        %v3153 = vrot.slane %v3144, %v3152
        %v3154 = vlaneseq
        %v3155 = vshrl.u32 %v3154, 7
        %v3156 = vsub.s32 2, %v3155
        %v3157 = vrot.slane %v3144, %v3156
        %v3158 = vlaneseq
        %v3159 = vshrl.u32 %v3158, 7
        %v3160 = vsub.s32 3, %v3159
        %v3161 = vrot.slane %v3144, %v3160
        %v3162 = vlaneseq
        %v3163 = vshrl.u32 %v3162, 7
        %v3164 = vsub.s32 4, %v3163
        %v3165 = vrot.slane %v3144, %v3164
        %v3166 = vlaneseq
        %v3167 = vshrl.u32 %v3166, 7
        %v3168 = vsub.s32 5, %v3167
        %v3169 = vrot.slane %v3144, %v3168
        %v3170 = vlaneseq
        %v3171 = vshrl.u32 %v3170, 7
        %v3172 = vsub.s32 6, %v3171
        %v3173 = vrot.slane %v3144, %v3172
        %v3174 = vlaneseq
        %v3175 = vshrl.u32 %v3174, 7
        %v3176 = vsub.s32 7, %v3175
        %v3177 = vrot.slane %v3144, %v3176
        %v3442 = vunpack.c.l.b16 %v2888
        %v3443 = vunpack.c.h.b16 %v2888
        %v3444 = vunpack.c.l.b16 %v2889
        %v3445 = vunpack.c.h.b16 %v2889
        %v3446 = vunpack.c.l.b16 %v2890
        %v3447 = vunpack.c.h.b16 %v2890
        %v3448 = vunpack.c.l.b16 %v2891
        %v3449 = vunpack.c.h.b16 %v2891
        %v3450 = vunpack.c.l.b16 %v2892
        %v3451 = vunpack.c.h.b16 %v2892
        %v3452 = vunpack.c.l.b16 %v2893
        %v3453 = vunpack.c.h.b16 %v2893
        %v3454 = vunpack.c.l.b16 %v2894
        %v3455 = vunpack.c.h.b16 %v2894
        %v3456 = vunpack.c.l.b16 %v2895
        %v3457 = vunpack.c.h.b16 %v2895
        %v3458 = vunpack.c.l.b16 %v2896
        %v3459 = vunpack.c.h.b16 %v2896
        %v3460 = vunpack.c.l.b16 %v2897
        %v3461 = vunpack.c.h.b16 %v2897
        %v3462 = vunpack.c.l.b16 %v2898
        %v3463 = vunpack.c.h.b16 %v2898
        %v3464 = vunpack.c.l.b16 %v2899
        %v3465 = vunpack.c.h.b16 %v2899
        %v3466 = vunpack.c.l.b16 %v2900
        %v3467 = vunpack.c.h.b16 %v2900
        %v3468 = vunpack.c.l.b16 %v2901
        %v3469 = vunpack.c.h.b16 %v2901
        %v3470 = vunpack.c.l.b16 %v2902
        %v3471 = vunpack.c.h.b16 %v2902
        %v3472 = vunpack.c.l.b16 %v2903
        %v3473 = vunpack.c.h.b16 %v2903
        %v3474 = vunpack.c.l.b16 %v2904
        %v3475 = vunpack.c.h.b16 %v2904
        %v3476 = vunpack.c.l.b16 %v2905
        %v3477 = vunpack.c.h.b16 %v2905
        %v3478 = vunpack.c.l.b16 %v2906
        %v3479 = vunpack.c.h.b16 %v2906
        %v3480 = vunpack.c.l.b16 %v2907
        %v3481 = vunpack.c.h.b16 %v2907
        %v3482 = vunpack.c.l.b16 %v2908
        %v3483 = vunpack.c.h.b16 %v2908
        %v3484 = vunpack.c.l.b16 %v2909
        %v3485 = vunpack.c.h.b16 %v2909
        %v3486 = vunpack.c.l.b16 %v2910
        %v3487 = vunpack.c.h.b16 %v2910
        %v3488 = vunpack.c.l.b16 %v2911
        %v3489 = vunpack.c.h.b16 %v2911
        %v3490 = vunpack.c.l.b16 %v2912
        %v3491 = vunpack.c.h.b16 %v2912
        %v3492 = vunpack.c.l.b16 %v2913
        %v3493 = vunpack.c.h.b16 %v2913
        %v3494 = vunpack.c.l.b16 %v2914
        %v3495 = vunpack.c.h.b16 %v2914
        %v3496 = vunpack.c.l.b16 %v2915
        %v3497 = vunpack.c.h.b16 %v2915
        %v3498 = vunpack.c.l.b16 %v2916
        %v3499 = vunpack.c.h.b16 %v2916
        %v3500 = vunpack.c.l.b16 %v2917
        %v3501 = vunpack.c.h.b16 %v2917
        %v3502 = vunpack.c.l.b16 %v2918
        %v3503 = vunpack.c.h.b16 %v2918
        %v3504 = vunpack.c.l.b16 %v2919
        %v3505 = vunpack.c.h.b16 %v2919
        %v3506 = vunpack.c.l.b16 %v2920
        %v3507 = vunpack.c.h.b16 %v2920
        %v3508 = vunpack.c.l.b16 %v2921
        %v3509 = vunpack.c.h.b16 %v2921
        %v3510 = vunpack.c.l.b16 %v2922
        %v3511 = vunpack.c.h.b16 %v2922
        %v3512 = vunpack.c.l.b16 %v2923
        %v3513 = vunpack.c.h.b16 %v2923
        %v3514 = vunpack.c.l.b16 %v2924
        %v3515 = vunpack.c.h.b16 %v2924
        %v3516 = vunpack.c.l.b16 %v2925
        %v3517 = vunpack.c.h.b16 %v2925
        %v3518 = vunpack.c.l.b16 %v2926
        %v3519 = vunpack.c.h.b16 %v2926
        %v3520 = vunpack.c.l.b16 %v2927
        %v3521 = vunpack.c.h.b16 %v2927
        %v3522 = vunpack.c.l.b16 %v2928
        %v3523 = vunpack.c.h.b16 %v2928
        %v3524 = vunpack.c.l.b16 %v2929
        %v3525 = vunpack.c.h.b16 %v2929
        %v3526 = vunpack.c.l.b16 %v2930
        %v3527 = vunpack.c.h.b16 %v2930
        %v3528 = vunpack.c.l.b16 %v2931
        %v3529 = vunpack.c.h.b16 %v2931
        %v3530 = vunpack.c.l.b16 %v2932
        %v3531 = vunpack.c.h.b16 %v2932
        %v3532 = vunpack.c.l.b16 %v2933
        %v3533 = vunpack.c.h.b16 %v2933
        %v3534 = vunpack.c.l.b16 %v2934
        %v3535 = vunpack.c.h.b16 %v2934
        %v3536 = vunpack.c.l.b16 %v2935
        %v3537 = vunpack.c.h.b16 %v2935
        %v3538 = vunpack.c.l.b16 %v2936
        %v3539 = vunpack.c.h.b16 %v2936
        %v3540 = vunpack.c.l.b16 %v2937
        %v3541 = vunpack.c.h.b16 %v2937
        %v3542 = vunpack.c.l.b16 %v2938
        %v3543 = vunpack.c.h.b16 %v2938
        %v3544 = vunpack.c.l.b16 %v2939
        %v3545 = vunpack.c.h.b16 %v2939
        %v3546 = vunpack.c.l.b16 %v2940
        %v3547 = vunpack.c.h.b16 %v2940
        %v3548 = vunpack.c.l.b16 %v2941
        %v3549 = vunpack.c.h.b16 %v2941
        %v3550 = vunpack.c.l.b16 %v2942
        %v3551 = vunpack.c.h.b16 %v2942
        %v3552 = vunpack.c.l.b16 %v2943
        %v3553 = vunpack.c.h.b16 %v2943
        %v3554 = vunpack.c.l.b16 %v2944
        %v3555 = vunpack.c.h.b16 %v2944
        %v3556 = vunpack.c.l.b16 %v2945
        %v3557 = vunpack.c.h.b16 %v2945
        %v3558 = vunpack.c.l.b16 %v2946
        %v3559 = vunpack.c.h.b16 %v2946
        %v3560 = vunpack.c.l.b16 %v2947
        %v3561 = vunpack.c.h.b16 %v2947
        %v3562 = vunpack.c.l.b16 %v2948
        %v3563 = vunpack.c.h.b16 %v2948
        %v3564 = vunpack.c.l.b16 %v2949
        %v3565 = vunpack.c.h.b16 %v2949
        %v3566 = vunpack.c.l.b16 %v2950
        %v3567 = vunpack.c.h.b16 %v2950
        %v3568 = vunpack.c.l.b16 %v2951
        %v3569 = vunpack.c.h.b16 %v2951
        %v3570 = vunpack.c.l.b16 %v2952
        %v3571 = vunpack.c.h.b16 %v2952
        %v3572 = vunpack.c.l.b16 %v2953
        %v3573 = vunpack.c.h.b16 %v2953
        %v3574 = vunpack.c.l.b16 %v2954
        %v3575 = vunpack.c.h.b16 %v2954
        %v3576 = vunpack.c.l.b16 %v2955
        %v3577 = vunpack.c.h.b16 %v2955
        %v3578 = vunpack.c.l.b16 %v2956
        %v3579 = vunpack.c.h.b16 %v2956
        %v3580 = vunpack.c.l.b16 %v2957
        %v3581 = vunpack.c.h.b16 %v2957
        %v3582 = vunpack.c.l.b16 %v2958
        %v3583 = vunpack.c.h.b16 %v2958
        %v3584 = vunpack.c.l.b16 %v2959
        %v3585 = vunpack.c.h.b16 %v2959
        %v3586 = vunpack.c.l.b16 %v2960
        %v3587 = vunpack.c.h.b16 %v2960
        %v3588 = vunpack.c.l.b16 %v2961
        %v3589 = vunpack.c.h.b16 %v2961
        %v3590 = vunpack.c.l.b16 %v2962
        %v3591 = vunpack.c.h.b16 %v2962
        %v3592 = vunpack.c.l.b16 %v2963
        %v3593 = vunpack.c.h.b16 %v2963
        %v3594 = vunpack.c.l.b16 %v2964
        %v3595 = vunpack.c.h.b16 %v2964
        %v3596 = vunpack.c.l.b16 %v2965
        %v3597 = vunpack.c.h.b16 %v2965
        %v3598 = vunpack.c.l.b16 %v2966
        %v3599 = vunpack.c.h.b16 %v2966
        %v3600 = vunpack.c.l.b16 %v2967
        %v3601 = vunpack.c.h.b16 %v2967
        %v3602 = vunpack.c.l.b16 %v2968
        %v3603 = vunpack.c.h.b16 %v2968
        %v3604 = vunpack.c.l.b16 %v2969
        %v3605 = vunpack.c.h.b16 %v2969
        %v3606 = vunpack.c.l.b16 %v2970
        %v3607 = vunpack.c.h.b16 %v2970
        %v3608 = vunpack.c.l.b16 %v2971
        %v3609 = vunpack.c.h.b16 %v2971
        %v3610 = vunpack.c.l.b16 %v2972
        %v3611 = vunpack.c.h.b16 %v2972
        %v3612 = vunpack.c.l.b16 %v2973
        %v3613 = vunpack.c.h.b16 %v2973
        %v3614 = vunpack.c.l.b16 %v2974
        %v3615 = vunpack.c.h.b16 %v2974
        %v3616 = vunpack.c.l.b16 %v2975
        %v3617 = vunpack.c.h.b16 %v2975
        %v3618 = vunpack.c.l.b16 %v2976
        %v3619 = vunpack.c.h.b16 %v2976
        %v3620 = vunpack.c.l.b16 %v2977
        %v3621 = vunpack.c.h.b16 %v2977
        %v3622 = vunpack.c.l.b16 %v2978
        %v3623 = vunpack.c.h.b16 %v2978
        %v3624 = vunpack.c.l.b16 %v2979
        %v3625 = vunpack.c.h.b16 %v2979
        %v3626 = vunpack.c.l.b16 %v2980
        %v3627 = vunpack.c.h.b16 %v2980
        %v3628 = vunpack.c.l.b16 %v2981
        %v3629 = vunpack.c.h.b16 %v2981
        %v3630 = vunpack.c.l.b16 %v2982
        %v3631 = vunpack.c.h.b16 %v2982
        %v3632 = vunpack.c.l.b16 %v2983
        %v3633 = vunpack.c.h.b16 %v2983
        %v3634 = vunpack.c.l.b16 %v2984
        %v3635 = vunpack.c.h.b16 %v2984
        %v3636 = vunpack.c.l.b16 %v2985
        %v3637 = vunpack.c.h.b16 %v2985
        %v3638 = vunpack.c.l.b16 %v2986
        %v3639 = vunpack.c.h.b16 %v2986
        %v3640 = vunpack.c.l.b16 %v2987
        %v3641 = vunpack.c.h.b16 %v2987
        %v3642 = vunpack.c.l.b16 %v2988
        %v3643 = vunpack.c.h.b16 %v2988
        %v3644 = vunpack.c.l.b16 %v2989
        %v3645 = vunpack.c.h.b16 %v2989
        %v3646 = vunpack.c.l.b16 %v2990
        %v3647 = vunpack.c.h.b16 %v2990
        %v3648 = vunpack.c.l.b16 %v2991
        %v3649 = vunpack.c.h.b16 %v2991
        %v3650 = vunpack.c.l.b16 %v2992
        %v3651 = vunpack.c.h.b16 %v2992
        %v3652 = vunpack.c.l.b16 %v2993
        %v3653 = vunpack.c.h.b16 %v2993
        %v3654 = vunpack.c.l.b16 %v2994
        %v3655 = vunpack.c.h.b16 %v2994
        %v3656 = vunpack.c.l.b16 %v2995
        %v3657 = vunpack.c.h.b16 %v2995
        %v3658 = vunpack.c.l.b16 %v2996
        %v3659 = vunpack.c.h.b16 %v2996
        %v3660 = vunpack.c.l.b16 %v2997
        %v3661 = vunpack.c.h.b16 %v2997
        %v3662 = vunpack.c.l.b16 %v2998
        %v3663 = vunpack.c.h.b16 %v2998
        %v3664 = vunpack.c.l.b16 %v2999
        %v3665 = vunpack.c.h.b16 %v2999
        %v3666 = vunpack.c.l.b16 %v3000
        %v3667 = vunpack.c.h.b16 %v3000
        %v3668 = vunpack.c.l.b16 %v3001
        %v3669 = vunpack.c.h.b16 %v3001
        %v3670 = vunpack.c.l.b16 %v3002
        %v3671 = vunpack.c.h.b16 %v3002
        %v3672 = vunpack.c.l.b16 %v3003
        %v3673 = vunpack.c.h.b16 %v3003
        %v3674 = vunpack.c.l.b16 %v3004
        %v3675 = vunpack.c.h.b16 %v3004
        %v3676 = vunpack.c.l.b16 %v3005
        %v3677 = vunpack.c.h.b16 %v3005
        %v3678 = vunpack.c.l.b16 %v3006
        %v3679 = vunpack.c.h.b16 %v3006
        %v3680 = vunpack.c.l.b16 %v3007
        %v3681 = vunpack.c.h.b16 %v3007
        %v3682 = vunpack.c.l.b16 %v3008
        %v3683 = vunpack.c.h.b16 %v3008
        %v3684 = vunpack.c.l.b16 %v3009
        %v3685 = vunpack.c.h.b16 %v3009
        %v3686 = vunpack.c.l.b16 %v3010
        %v3687 = vunpack.c.h.b16 %v3010
        %v3688 = vunpack.c.l.b16 %v3011
        %v3689 = vunpack.c.h.b16 %v3011
        %v3690 = vunpack.c.l.b16 %v3012
        %v3691 = vunpack.c.h.b16 %v3012
        %v3692 = vunpack.c.l.b16 %v3013
        %v3693 = vunpack.c.h.b16 %v3013
        %v3694 = vunpack.c.l.b16 %v3014
        %v3695 = vunpack.c.h.b16 %v3014
        %v3696 = vunpack.c.l.b16 %v3015
        %v3697 = vunpack.c.h.b16 %v3015
        %v3698 = vunpack.c.l.b16 %v3016
        %v3699 = vunpack.c.h.b16 %v3016
        %v3700 = vunpack.c.l.b16 %v3017
        %v3701 = vunpack.c.h.b16 %v3017
        %v3702 = vunpack.c.l.b16 %v3018
        %v3703 = vunpack.c.h.b16 %v3018
        %v3704 = vunpack.c.l.b16 %v3019
        %v3705 = vunpack.c.h.b16 %v3019
        %v3706 = vunpack.c.l.b16 %v3020
        %v3707 = vunpack.c.h.b16 %v3020
        %v3708 = vunpack.c.l.b16 %v3021
        %v3709 = vunpack.c.h.b16 %v3021
        %v3710 = vunpack.c.l.b16 %v3022
        %v3711 = vunpack.c.h.b16 %v3022
        %v3712 = vunpack.c.l.b16 %v3023
        %v3713 = vunpack.c.h.b16 %v3023
        %v3714 = vunpack.c.l.b16 %v3024
        %v3715 = vunpack.c.h.b16 %v3024
        %v3716 = vunpack.c.l.b16 %v3025
        %v3717 = vunpack.c.h.b16 %v3025
        %v3718 = vunpack.c.l.b16 %v3026
        %v3719 = vunpack.c.h.b16 %v3026
        %v3720 = vunpack.c.l.b16 %v3027
        %v3721 = vunpack.c.h.b16 %v3027
        %v3722 = vunpack.c.l.b16 %v3028
        %v3723 = vunpack.c.h.b16 %v3028
        %v3724 = vunpack.c.l.b16 %v3029
        %v3725 = vunpack.c.h.b16 %v3029
        %v3726 = vunpack.c.l.b16 %v3030
        %v3727 = vunpack.c.h.b16 %v3030
        %v3728 = vunpack.c.l.b16 %v3031
        %v3729 = vunpack.c.h.b16 %v3031
        %v3730 = vunpack.c.l.b16 %v3032
        %v3731 = vunpack.c.h.b16 %v3032
        %v3732 = vunpack.c.l.b16 %v3033
        %v3733 = vunpack.c.h.b16 %v3033
        %v3734 = vunpack.c.l.b16 %v3034
        %v3735 = vunpack.c.h.b16 %v3034
        %v3736 = vunpack.c.l.b16 %v3035
        %v3737 = vunpack.c.h.b16 %v3035
        %v3738 = vunpack.c.l.b16 %v3036
        %v3739 = vunpack.c.h.b16 %v3036
        %v3740 = vunpack.c.l.b16 %v3037
        %v3741 = vunpack.c.h.b16 %v3037
        %v3742 = vunpack.c.l.b16 %v3038
        %v3743 = vunpack.c.h.b16 %v3038
        %v3744 = vunpack.c.l.b16 %v3039
        %v3745 = vunpack.c.h.b16 %v3039
        %v3746 = vunpack.c.l.b16 %v3040
        %v3747 = vunpack.c.h.b16 %v3040
        %v3748 = vunpack.c.l.b16 %v3041
        %v3749 = vunpack.c.h.b16 %v3041
        %v3750 = vunpack.c.l.b16 %v3042
        %v3751 = vunpack.c.h.b16 %v3042
        %v3752 = vunpack.c.l.b16 %v3043
        %v3753 = vunpack.c.h.b16 %v3043
        %v3754 = vunpack.c.l.b16 %v3044
        %v3755 = vunpack.c.h.b16 %v3044
        %v3756 = vunpack.c.l.b16 %v3045
        %v3757 = vunpack.c.h.b16 %v3045
        %v3758 = vunpack.c.l.b16 %v3046
        %v3759 = vunpack.c.h.b16 %v3046
        %v3760 = vunpack.c.l.b16 %v3047
        %v3761 = vunpack.c.h.b16 %v3047
        %v3762 = vunpack.c.l.b16 %v3048
        %v3763 = vunpack.c.h.b16 %v3048
        %v3764 = vunpack.c.l.b16 %v3049
        %v3765 = vunpack.c.h.b16 %v3049
        %v3766 = vunpack.c.l.b16 %v3050
        %v3767 = vunpack.c.h.b16 %v3050
        %v3768 = vunpack.c.l.b16 %v3051
        %v3769 = vunpack.c.h.b16 %v3051
        %v3770 = vunpack.c.l.b16 %v3052
        %v3771 = vunpack.c.h.b16 %v3052
        %v3772 = vunpack.c.l.b16 %v3053
        %v3773 = vunpack.c.h.b16 %v3053
        %v3774 = vunpack.c.l.b16 %v3054
        %v3775 = vunpack.c.h.b16 %v3054
        %v3776 = vunpack.c.l.b16 %v3055
        %v3777 = vunpack.c.h.b16 %v3055
        %v3778 = vunpack.c.l.b16 %v3056
        %v3779 = vunpack.c.h.b16 %v3056
        %v3780 = vunpack.c.l.b16 %v3057
        %v3781 = vunpack.c.h.b16 %v3057
        %v3782 = vunpack.c.l.b16 %v3058
        %v3783 = vunpack.c.h.b16 %v3058
        %v3784 = vunpack.c.l.b16 %v3059
        %v3785 = vunpack.c.h.b16 %v3059
        %v3786 = vunpack.c.l.b16 %v3060
        %v3787 = vunpack.c.h.b16 %v3060
        %v3788 = vunpack.c.l.b16 %v3061
        %v3789 = vunpack.c.h.b16 %v3061
        %v3790 = vunpack.c.l.b16 %v3062
        %v3791 = vunpack.c.h.b16 %v3062
        %v3792 = vunpack.c.l.b16 %v3063
        %v3793 = vunpack.c.h.b16 %v3063
        %v3794 = vunpack.c.l.b16 %v3064
        %v3795 = vunpack.c.h.b16 %v3064
        %v3796 = vunpack.c.l.b16 %v3065
        %v3797 = vunpack.c.h.b16 %v3065
        %v3798 = vunpack.c.l.b16 %v3066
        %v3799 = vunpack.c.h.b16 %v3066
        %v3800 = vunpack.c.l.b16 %v3067
        %v3801 = vunpack.c.h.b16 %v3067
        %v3802 = vunpack.c.l.b16 %v3068
        %v3803 = vunpack.c.h.b16 %v3068
        %v3804 = vunpack.c.l.b16 %v3069
        %v3805 = vunpack.c.h.b16 %v3069
        %v3806 = vunpack.c.l.b16 %v3070
        %v3807 = vunpack.c.h.b16 %v3070
        %v3808 = vunpack.c.l.b16 %v3071
        %v3809 = vunpack.c.h.b16 %v3071
        %v3810 = vunpack.c.l.b16 %v3072
        %v3811 = vunpack.c.h.b16 %v3072
        %v3812 = vunpack.c.l.b16 %v3073
        %v3813 = vunpack.c.h.b16 %v3073
        %v3814 = vunpack.c.l.b16 %v3074
        %v3815 = vunpack.c.h.b16 %v3074
        %v3816 = vunpack.c.l.b16 %v3075
        %v3817 = vunpack.c.h.b16 %v3075
        %v3818 = vunpack.c.l.b16 %v3076
        %v3819 = vunpack.c.h.b16 %v3076
        %v3820 = vunpack.c.l.b16 %v3077
        %v3821 = vunpack.c.h.b16 %v3077
        %v3822 = vunpack.c.l.b16 %v3078
        %v3823 = vunpack.c.h.b16 %v3078
        %v3824 = vunpack.c.l.b16 %v3079
        %v3825 = vunpack.c.h.b16 %v3079
        %v3826 = vunpack.c.l.b16 %v3080
        %v3827 = vunpack.c.h.b16 %v3080
        %v3828 = vunpack.c.l.b16 %v3081
        %v3829 = vunpack.c.h.b16 %v3081
        %v3830 = vunpack.c.l.b16 %v3082
        %v3831 = vunpack.c.h.b16 %v3082
        %v3832 = vunpack.c.l.b16 %v3083
        %v3833 = vunpack.c.h.b16 %v3083
        %v3834 = vunpack.c.l.b16 %v3084
        %v3835 = vunpack.c.h.b16 %v3084
        %v3836 = vunpack.c.l.b16 %v3085
        %v3837 = vunpack.c.h.b16 %v3085
        %v3838 = vunpack.c.l.b16 %v3086
        %v3839 = vunpack.c.h.b16 %v3086
        %v3840 = vunpack.c.l.b16 %v3087
        %v3841 = vunpack.c.h.b16 %v3087
        %v3842 = vunpack.c.l.b16 %v3088
        %v3843 = vunpack.c.h.b16 %v3088
        %v3844 = vunpack.c.l.b16 %v3089
        %v3845 = vunpack.c.h.b16 %v3089
        %v3846 = vunpack.c.l.b16 %v3090
        %v3847 = vunpack.c.h.b16 %v3090
        %v3848 = vunpack.c.l.b16 %v3091
        %v3849 = vunpack.c.h.b16 %v3091
        %v3850 = vunpack.c.l.b16 %v3092
        %v3851 = vunpack.c.h.b16 %v3092
        %v3852 = vunpack.c.l.b16 %v3093
        %v3853 = vunpack.c.h.b16 %v3093
        %v3854 = vunpack.c.l.b16 %v3094
        %v3855 = vunpack.c.h.b16 %v3094
        %v3856 = vunpack.c.l.b16 %v3095
        %v3857 = vunpack.c.h.b16 %v3095
        %v3858 = vunpack.c.l.b16 %v3096
        %v3859 = vunpack.c.h.b16 %v3096
        %v3860 = vunpack.c.l.b16 %v3097
        %v3861 = vunpack.c.h.b16 %v3097
        %v3862 = vunpack.c.l.b16 %v3098
        %v3863 = vunpack.c.h.b16 %v3098
        %v3864 = vunpack.c.l.b16 %v3099
        %v3865 = vunpack.c.h.b16 %v3099
        %v3866 = vunpack.c.l.b16 %v3100
        %v3867 = vunpack.c.h.b16 %v3100
        %v3868 = vunpack.c.l.b16 %v3101
        %v3869 = vunpack.c.h.b16 %v3101
        %v3870 = vunpack.c.l.b16 %v3102
        %v3871 = vunpack.c.h.b16 %v3102
        %v3872 = vunpack.c.l.b16 %v3103
        %v3873 = vunpack.c.h.b16 %v3103
        %v3874 = vunpack.c.l.b16 %v3104
        %v3875 = vunpack.c.h.b16 %v3104
        %v3876 = vunpack.c.l.b16 %v3105
        %v3877 = vunpack.c.h.b16 %v3105
        %v3878 = vunpack.c.l.b16 %v3106
        %v3879 = vunpack.c.h.b16 %v3106
        %v3880 = vunpack.c.l.b16 %v3107
        %v3881 = vunpack.c.h.b16 %v3107
        %v3882 = vunpack.c.l.b16 %v3108
        %v3883 = vunpack.c.h.b16 %v3108
        %v3884 = vunpack.c.l.b16 %v3109
        %v3885 = vunpack.c.h.b16 %v3109
        %v3886 = vunpack.c.l.b16 %v3110
        %v3887 = vunpack.c.h.b16 %v3110
        %v3888 = vunpack.c.l.b16 %v3111
        %v3889 = vunpack.c.h.b16 %v3111
        %v3890 = vunpack.c.l.b16 %v3112
        %v3891 = vunpack.c.h.b16 %v3112
        %v3892 = vunpack.c.l.b16 %v3113
        %v3893 = vunpack.c.h.b16 %v3113
        %v3894 = vunpack.c.l.b16 %v3114
        %v3895 = vunpack.c.h.b16 %v3114
        %v3896 = vunpack.c.l.b16 %v3115
        %v3897 = vunpack.c.h.b16 %v3115
        %v3898 = vunpack.c.l.b16 %v3116
        %v3899 = vunpack.c.h.b16 %v3116
        %v3900 = vunpack.c.l.b16 %v3117
        %v3901 = vunpack.c.h.b16 %v3117
        %v3902 = vunpack.c.l.b16 %v3118
        %v3903 = vunpack.c.h.b16 %v3118
        %v3904 = vunpack.c.l.b16 %v3119
        %v3905 = vunpack.c.h.b16 %v3119
        %v3906 = vunpack.c.l.b16 %v3120
        %v3907 = vunpack.c.h.b16 %v3120
        %v3908 = vunpack.c.l.b16 %v3121
        %v3909 = vunpack.c.h.b16 %v3121
        %v3910 = vunpack.c.l.b16 %v3122
        %v3911 = vunpack.c.h.b16 %v3122
        %v3912 = vunpack.c.l.b16 %v3123
        %v3913 = vunpack.c.h.b16 %v3123
        %v3914 = vunpack.c.l.b16 %v3124
        %v3915 = vunpack.c.h.b16 %v3124
        %v3916 = vunpack.c.l.b16 %v3125
        %v3917 = vunpack.c.h.b16 %v3125
        %v3918 = vunpack.c.l.b16 %v3126
        %v3919 = vunpack.c.h.b16 %v3126
        %v3920 = vunpack.c.l.b16 %v3127
        %v3921 = vunpack.c.h.b16 %v3127
        %v3922 = vunpack.c.l.b16 %v3128
        %v3923 = vunpack.c.h.b16 %v3128
        %v3924 = vunpack.c.l.b16 %v3129
        %v3925 = vunpack.c.h.b16 %v3129
        %v3926 = vunpack.c.l.b16 %v3130
        %v3927 = vunpack.c.h.b16 %v3130
        %v3928 = vunpack.c.l.b16 %v3131
        %v3929 = vunpack.c.h.b16 %v3131
        %v3930 = vunpack.c.l.b16 %v3132
        %v3931 = vunpack.c.h.b16 %v3132
        %v3932 = vunpack.c.l.b16 %v3133
        %v3933 = vunpack.c.h.b16 %v3133
        %v3934 = vunpack.c.l.b16 %v3134
        %v3935 = vunpack.c.h.b16 %v3134
        %v3936 = vunpack.c.l.b16 %v3135
        %v3937 = vunpack.c.h.b16 %v3135
        %v3938 = vunpack.c.l.b16 %v3136
        %v3939 = vunpack.c.h.b16 %v3136
        %v3940 = vunpack.c.l.b16 %v3137
        %v3941 = vunpack.c.h.b16 %v3137
        %v3942 = vunpack.c.l.b16 %v3138
        %v3943 = vunpack.c.h.b16 %v3138
        %v3944 = vunpack.c.l.b16 %v3139
        %v3945 = vunpack.c.h.b16 %v3139
        %v3946 = vunpack.c.l.b16 %v3140
        %v3947 = vunpack.c.h.b16 %v3140
        %v3948 = vunpack.c.l.b16 %v3141
        %v3949 = vunpack.c.h.b16 %v3141
        %v3950 = vunpack.c.l.b16 %v3142
        %v3951 = vunpack.c.h.b16 %v3142
        %v3952 = vunpack.c.l.b16 %v3143
        %v3953 = vunpack.c.h.b16 %v3143
        %v3954 = vpack.c.b16 %v3450, %v3442
        %v3955 = vpack.c.b16 %v3451, %v3443
        %v3956 = vpack.c.b16 %v3452, %v3444
        %v3957 = vpack.c.b16 %v3453, %v3445
        %v3958 = vpack.c.b16 %v3454, %v3446
        %v3959 = vpack.c.b16 %v3455, %v3447
        %v3960 = vpack.c.b16 %v3456, %v3448
        %v3961 = vpack.c.b16 %v3457, %v3449
        %v3962 = vpack.c.b16 %v3466, %v3458
        %v3963 = vpack.c.b16 %v3467, %v3459
        %v3964 = vpack.c.b16 %v3468, %v3460
        %v3965 = vpack.c.b16 %v3469, %v3461
        %v3966 = vpack.c.b16 %v3470, %v3462
        %v3967 = vpack.c.b16 %v3471, %v3463
        %v3968 = vpack.c.b16 %v3472, %v3464
        %v3969 = vpack.c.b16 %v3473, %v3465
        %v3970 = vpack.c.b16 %v3482, %v3474
        %v3971 = vpack.c.b16 %v3483, %v3475
        %v3972 = vpack.c.b16 %v3484, %v3476
        %v3973 = vpack.c.b16 %v3485, %v3477
        %v3974 = vpack.c.b16 %v3486, %v3478
        %v3975 = vpack.c.b16 %v3487, %v3479
        %v3976 = vpack.c.b16 %v3488, %v3480
        %v3977 = vpack.c.b16 %v3489, %v3481
        %v3978 = vpack.c.b16 %v3498, %v3490
        %v3979 = vpack.c.b16 %v3499, %v3491
        %v3980 = vpack.c.b16 %v3500, %v3492
        %v3981 = vpack.c.b16 %v3501, %v3493
        %v3982 = vpack.c.b16 %v3502, %v3494
        %v3983 = vpack.c.b16 %v3503, %v3495
        %v3984 = vpack.c.b16 %v3504, %v3496
        %v3985 = vpack.c.b16 %v3505, %v3497
        %v3986 = vpack.c.b16 %v3514, %v3506
        %v3987 = vpack.c.b16 %v3515, %v3507
        %v3988 = vpack.c.b16 %v3516, %v3508
        %v3989 = vpack.c.b16 %v3517, %v3509
        %v3990 = vpack.c.b16 %v3518, %v3510
        %v3991 = vpack.c.b16 %v3519, %v3511
        %v3992 = vpack.c.b16 %v3520, %v3512
        %v3993 = vpack.c.b16 %v3521, %v3513
        %v3994 = vpack.c.b16 %v3530, %v3522
        %v3995 = vpack.c.b16 %v3531, %v3523
        %v3996 = vpack.c.b16 %v3532, %v3524
        %v3997 = vpack.c.b16 %v3533, %v3525
        %v3998 = vpack.c.b16 %v3534, %v3526
        %v3999 = vpack.c.b16 %v3535, %v3527
        %v4000 = vpack.c.b16 %v3536, %v3528
        %v4001 = vpack.c.b16 %v3537, %v3529
        %v4002 = vpack.c.b16 %v3546, %v3538
        %v4003 = vpack.c.b16 %v3547, %v3539
        %v4004 = vpack.c.b16 %v3548, %v3540
        %v4005 = vpack.c.b16 %v3549, %v3541
        %v4006 = vpack.c.b16 %v3550, %v3542
        %v4007 = vpack.c.b16 %v3551, %v3543
        %v4008 = vpack.c.b16 %v3552, %v3544
        %v4009 = vpack.c.b16 %v3553, %v3545
        %v4010 = vpack.c.b16 %v3562, %v3554
        %v4011 = vpack.c.b16 %v3563, %v3555
        %v4012 = vpack.c.b16 %v3564, %v3556
        %v4013 = vpack.c.b16 %v3565, %v3557
        %v4014 = vpack.c.b16 %v3566, %v3558
        %v4015 = vpack.c.b16 %v3567, %v3559
        %v4016 = vpack.c.b16 %v3568, %v3560
        %v4017 = vpack.c.b16 %v3569, %v3561
        %v4018 = vpack.c.b16 %v3578, %v3570
        %v4019 = vpack.c.b16 %v3579, %v3571
        %v4020 = vpack.c.b16 %v3580, %v3572
        %v4021 = vpack.c.b16 %v3581, %v3573
        %v4022 = vpack.c.b16 %v3582, %v3574
        %v4023 = vpack.c.b16 %v3583, %v3575
        %v4024 = vpack.c.b16 %v3584, %v3576
        %v4025 = vpack.c.b16 %v3585, %v3577
        %v4026 = vpack.c.b16 %v3594, %v3586
        %v4027 = vpack.c.b16 %v3595, %v3587
        %v4028 = vpack.c.b16 %v3596, %v3588
        %v4029 = vpack.c.b16 %v3597, %v3589
        %v4030 = vpack.c.b16 %v3598, %v3590
        %v4031 = vpack.c.b16 %v3599, %v3591
        %v4032 = vpack.c.b16 %v3600, %v3592
        %v4033 = vpack.c.b16 %v3601, %v3593
        %v4034 = vpack.c.b16 %v3610, %v3602
        %v4035 = vpack.c.b16 %v3611, %v3603
        %v4036 = vpack.c.b16 %v3612, %v3604
        %v4037 = vpack.c.b16 %v3613, %v3605
        %v4038 = vpack.c.b16 %v3614, %v3606
        %v4039 = vpack.c.b16 %v3615, %v3607
        %v4040 = vpack.c.b16 %v3616, %v3608
        %v4041 = vpack.c.b16 %v3617, %v3609
        %v4042 = vpack.c.b16 %v3626, %v3618
        %v4043 = vpack.c.b16 %v3627, %v3619
        %v4044 = vpack.c.b16 %v3628, %v3620
        %v4045 = vpack.c.b16 %v3629, %v3621
        %v4046 = vpack.c.b16 %v3630, %v3622
        %v4047 = vpack.c.b16 %v3631, %v3623
        %v4048 = vpack.c.b16 %v3632, %v3624
        %v4049 = vpack.c.b16 %v3633, %v3625
        %v4050 = vpack.c.b16 %v3642, %v3634
        %v4051 = vpack.c.b16 %v3643, %v3635
        %v4052 = vpack.c.b16 %v3644, %v3636
        %v4053 = vpack.c.b16 %v3645, %v3637
        %v4054 = vpack.c.b16 %v3646, %v3638
        %v4055 = vpack.c.b16 %v3647, %v3639
        %v4056 = vpack.c.b16 %v3648, %v3640
        %v4057 = vpack.c.b16 %v3649, %v3641
        %v4058 = vpack.c.b16 %v3658, %v3650
        %v4059 = vpack.c.b16 %v3659, %v3651
        %v4060 = vpack.c.b16 %v3660, %v3652
        %v4061 = vpack.c.b16 %v3661, %v3653
        %v4062 = vpack.c.b16 %v3662, %v3654
        %v4063 = vpack.c.b16 %v3663, %v3655
        %v4064 = vpack.c.b16 %v3664, %v3656
        %v4065 = vpack.c.b16 %v3665, %v3657
        %v4066 = vpack.c.b16 %v3674, %v3666
        %v4067 = vpack.c.b16 %v3675, %v3667
        %v4068 = vpack.c.b16 %v3676, %v3668
        %v4069 = vpack.c.b16 %v3677, %v3669
        %v4070 = vpack.c.b16 %v3678, %v3670
        %v4071 = vpack.c.b16 %v3679, %v3671
        %v4072 = vpack.c.b16 %v3680, %v3672
        %v4073 = vpack.c.b16 %v3681, %v3673
        %v4074 = vpack.c.b16 %v3690, %v3682
        %v4075 = vpack.c.b16 %v3691, %v3683
        %v4076 = vpack.c.b16 %v3692, %v3684
        %v4077 = vpack.c.b16 %v3693, %v3685
        %v4078 = vpack.c.b16 %v3694, %v3686
        %v4079 = vpack.c.b16 %v3695, %v3687
        %v4080 = vpack.c.b16 %v3696, %v3688
        %v4081 = vpack.c.b16 %v3697, %v3689
        %v4082 = vpack.c.b16 %v3706, %v3698
        %v4083 = vpack.c.b16 %v3707, %v3699
        %v4084 = vpack.c.b16 %v3708, %v3700
        %v4085 = vpack.c.b16 %v3709, %v3701
        %v4086 = vpack.c.b16 %v3710, %v3702
        %v4087 = vpack.c.b16 %v3711, %v3703
        %v4088 = vpack.c.b16 %v3712, %v3704
        %v4089 = vpack.c.b16 %v3713, %v3705
        %v4090 = vpack.c.b16 %v3722, %v3714
        %v4091 = vpack.c.b16 %v3723, %v3715
        %v4092 = vpack.c.b16 %v3724, %v3716
        %v4093 = vpack.c.b16 %v3725, %v3717
        %v4094 = vpack.c.b16 %v3726, %v3718
        %v4095 = vpack.c.b16 %v3727, %v3719
        %v4096 = vpack.c.b16 %v3728, %v3720
        %v4097 = vpack.c.b16 %v3729, %v3721
        %v4098 = vpack.c.b16 %v3738, %v3730
        %v4099 = vpack.c.b16 %v3739, %v3731
        %v4100 = vpack.c.b16 %v3740, %v3732
        %v4101 = vpack.c.b16 %v3741, %v3733
        %v4102 = vpack.c.b16 %v3742, %v3734
        %v4103 = vpack.c.b16 %v3743, %v3735
        %v4104 = vpack.c.b16 %v3744, %v3736
        %v4105 = vpack.c.b16 %v3745, %v3737
        %v4106 = vpack.c.b16 %v3754, %v3746
        %v4107 = vpack.c.b16 %v3755, %v3747
        %v4108 = vpack.c.b16 %v3756, %v3748
        %v4109 = vpack.c.b16 %v3757, %v3749
        %v4110 = vpack.c.b16 %v3758, %v3750
        %v4111 = vpack.c.b16 %v3759, %v3751
        %v4112 = vpack.c.b16 %v3760, %v3752
        %v4113 = vpack.c.b16 %v3761, %v3753
        %v4114 = vpack.c.b16 %v3770, %v3762
        %v4115 = vpack.c.b16 %v3771, %v3763
        %v4116 = vpack.c.b16 %v3772, %v3764
        %v4117 = vpack.c.b16 %v3773, %v3765
        %v4118 = vpack.c.b16 %v3774, %v3766
        %v4119 = vpack.c.b16 %v3775, %v3767
        %v4120 = vpack.c.b16 %v3776, %v3768
        %v4121 = vpack.c.b16 %v3777, %v3769
        %v4122 = vpack.c.b16 %v3786, %v3778
        %v4123 = vpack.c.b16 %v3787, %v3779
        %v4124 = vpack.c.b16 %v3788, %v3780
        %v4125 = vpack.c.b16 %v3789, %v3781
        %v4126 = vpack.c.b16 %v3790, %v3782
        %v4127 = vpack.c.b16 %v3791, %v3783
        %v4128 = vpack.c.b16 %v3792, %v3784
        %v4129 = vpack.c.b16 %v3793, %v3785
        %v4130 = vpack.c.b16 %v3802, %v3794
        %v4131 = vpack.c.b16 %v3803, %v3795
        %v4132 = vpack.c.b16 %v3804, %v3796
        %v4133 = vpack.c.b16 %v3805, %v3797
        %v4134 = vpack.c.b16 %v3806, %v3798
        %v4135 = vpack.c.b16 %v3807, %v3799
        %v4136 = vpack.c.b16 %v3808, %v3800
        %v4137 = vpack.c.b16 %v3809, %v3801
        %v4138 = vpack.c.b16 %v3818, %v3810
        %v4139 = vpack.c.b16 %v3819, %v3811
        %v4140 = vpack.c.b16 %v3820, %v3812
        %v4141 = vpack.c.b16 %v3821, %v3813
        %v4142 = vpack.c.b16 %v3822, %v3814
        %v4143 = vpack.c.b16 %v3823, %v3815
        %v4144 = vpack.c.b16 %v3824, %v3816
        %v4145 = vpack.c.b16 %v3825, %v3817
        %v4146 = vpack.c.b16 %v3834, %v3826
        %v4147 = vpack.c.b16 %v3835, %v3827
        %v4148 = vpack.c.b16 %v3836, %v3828
        %v4149 = vpack.c.b16 %v3837, %v3829
        %v4150 = vpack.c.b16 %v3838, %v3830
        %v4151 = vpack.c.b16 %v3839, %v3831
        %v4152 = vpack.c.b16 %v3840, %v3832
        %v4153 = vpack.c.b16 %v3841, %v3833
        %v4154 = vpack.c.b16 %v3850, %v3842
        %v4155 = vpack.c.b16 %v3851, %v3843
        %v4156 = vpack.c.b16 %v3852, %v3844
        %v4157 = vpack.c.b16 %v3853, %v3845
        %v4158 = vpack.c.b16 %v3854, %v3846
        %v4159 = vpack.c.b16 %v3855, %v3847
        %v4160 = vpack.c.b16 %v3856, %v3848
        %v4161 = vpack.c.b16 %v3857, %v3849
        %v4162 = vpack.c.b16 %v3866, %v3858
        %v4163 = vpack.c.b16 %v3867, %v3859
        %v4164 = vpack.c.b16 %v3868, %v3860
        %v4165 = vpack.c.b16 %v3869, %v3861
        %v4166 = vpack.c.b16 %v3870, %v3862
        %v4167 = vpack.c.b16 %v3871, %v3863
        %v4168 = vpack.c.b16 %v3872, %v3864
        %v4169 = vpack.c.b16 %v3873, %v3865
        %v4170 = vpack.c.b16 %v3882, %v3874
        %v4171 = vpack.c.b16 %v3883, %v3875
        %v4172 = vpack.c.b16 %v3884, %v3876
        %v4173 = vpack.c.b16 %v3885, %v3877
        %v4174 = vpack.c.b16 %v3886, %v3878
        %v4175 = vpack.c.b16 %v3887, %v3879
        %v4176 = vpack.c.b16 %v3888, %v3880
        %v4177 = vpack.c.b16 %v3889, %v3881
        %v4178 = vpack.c.b16 %v3898, %v3890
        %v4179 = vpack.c.b16 %v3899, %v3891
        %v4180 = vpack.c.b16 %v3900, %v3892
        %v4181 = vpack.c.b16 %v3901, %v3893
        %v4182 = vpack.c.b16 %v3902, %v3894
        %v4183 = vpack.c.b16 %v3903, %v3895
        %v4184 = vpack.c.b16 %v3904, %v3896
        %v4185 = vpack.c.b16 %v3905, %v3897
        %v4186 = vpack.c.b16 %v3914, %v3906
        %v4187 = vpack.c.b16 %v3915, %v3907
        %v4188 = vpack.c.b16 %v3916, %v3908
        %v4189 = vpack.c.b16 %v3917, %v3909
        %v4190 = vpack.c.b16 %v3918, %v3910
        %v4191 = vpack.c.b16 %v3919, %v3911
        %v4192 = vpack.c.b16 %v3920, %v3912
        %v4193 = vpack.c.b16 %v3921, %v3913
        %v4194 = vpack.c.b16 %v3930, %v3922
        %v4195 = vpack.c.b16 %v3931, %v3923
        %v4196 = vpack.c.b16 %v3932, %v3924
        %v4197 = vpack.c.b16 %v3933, %v3925
        %v4198 = vpack.c.b16 %v3934, %v3926
        %v4199 = vpack.c.b16 %v3935, %v3927
        %v4200 = vpack.c.b16 %v3936, %v3928
        %v4201 = vpack.c.b16 %v3937, %v3929
        %v4202 = vpack.c.b16 %v3946, %v3938
        %v4203 = vpack.c.b16 %v3947, %v3939
        %v4204 = vpack.c.b16 %v3948, %v3940
        %v4205 = vpack.c.b16 %v3949, %v3941
        %v4206 = vpack.c.b16 %v3950, %v3942
        %v4207 = vpack.c.b16 %v3951, %v3943
        %v4208 = vpack.c.b16 %v3952, %v3944
        %v4209 = vpack.c.b16 %v3953, %v3945
        %4466 = vmatprep.subr.bf16.mxu0 %v4011
        %4467 = vmatpush1.bf16.msra.mxu0 %v4010
        %4468 = vmatprep.subr.bf16.mxu0 %v4003
        %4469 = vmatpush1.bf16.msra.mxu0 %v4002
        %4470 = vmatprep.subr.bf16.mxu0 %v3995
        %4471 = vmatpush1.bf16.msra.mxu0 %v3994
        %4472 = vmatprep.subr.bf16.mxu0 %v3987
        %4473 = vmatpush1.bf16.msra.mxu0 %v3986
        %4474 = vmatprep.subr.bf16.mxu0 %v3979
        %4475 = vmatpush1.bf16.msra.mxu0 %v3978
        %4476 = vmatprep.subr.bf16.mxu0 %v3971
        %4477 = vmatpush1.bf16.msra.mxu0 %v3970
        %4478 = vmatprep.subr.bf16.mxu0 %v3963
        %4479 = vmatpush1.bf16.msra.mxu0 %v3962
        %4480 = vmatprep.subr.bf16.mxu0 %v3955
        %4481 = vmatpush1.bf16.msra.mxu0 %v3954
        %4482 = vmatprep.subr.bf16.mxu0 %v4075
        %4483 = vmatpush2.bf16.msra.mxu0 %v4074
        %4484 = vmatprep.subr.bf16.mxu0 %v4067
        %4485 = vmatpush2.bf16.msra.mxu0 %v4066
        %4486 = vmatprep.subr.bf16.mxu0 %v4059
        %4487 = vmatpush2.bf16.msra.mxu0 %v4058
        %4488 = vmatprep.subr.bf16.mxu0 %v4051
        %4489 = vmatpush2.bf16.msra.mxu0 %v4050
        %4490 = vmatprep.subr.bf16.mxu0 %v4043
        %4491 = vmatpush2.bf16.msra.mxu0 %v4042
        %4492 = vmatprep.subr.bf16.mxu0 %v4035
        %4493 = vmatpush2.bf16.msra.mxu0 %v4034
        %4494 = vmatprep.subr.bf16.mxu0 %v4027
        %4495 = vmatpush2.bf16.msra.mxu0 %v4026
        %4496 = vmatprep.subr.bf16.mxu0 %v4019
        %4497 = vmatpush2.bf16.msra.mxu0 %v4018
        %4498 = vmatprep.mubr.bf16.mxu0 %v2885
        %4499 = vmatmul.mubr.bf16.gmra.mxu0 %v2884
        %v4500 = vpop.f32.mrf.mxu0
        %v4501 = vadd.f32 %v3149, %v4500
        %v4502 = vpop.f32.mrf.mxu0
        %v4503 = vadd.f32 %v3153, %v4502
        %v4504 = vpop.f32.mrf.mxu0
        %v4505 = vpop.f32.mrf.mxu0
        %4506 = vdwg.mxu0
        %4507 = vmatprep.subr.bf16.mxu0 %v4139
        %4508 = vmatpush1.bf16.msra.mxu0 %v4138
        %4509 = vmatprep.subr.bf16.mxu0 %v4131
        %4510 = vmatpush1.bf16.msra.mxu0 %v4130
        %4511 = vmatprep.subr.bf16.mxu0 %v4123
        %4512 = vmatpush1.bf16.msra.mxu0 %v4122
        %4513 = vmatprep.subr.bf16.mxu0 %v4115
        %4514 = vmatpush1.bf16.msra.mxu0 %v4114
        %4515 = vmatprep.subr.bf16.mxu0 %v4107
        %4516 = vmatpush1.bf16.msra.mxu0 %v4106
        %4517 = vmatprep.subr.bf16.mxu0 %v4099
        %4518 = vmatpush1.bf16.msra.mxu0 %v4098
        %4519 = vmatprep.subr.bf16.mxu0 %v4091
        %4520 = vmatpush1.bf16.msra.mxu0 %v4090
        %4521 = vmatprep.subr.bf16.mxu0 %v4083
        %4522 = vmatpush1.bf16.msra.mxu0 %v4082
        %4523 = vmatprep.subr.bf16.mxu0 %v4203
        %4524 = vmatpush2.bf16.msra.mxu0 %v4202
        %4525 = vmatprep.subr.bf16.mxu0 %v4195
        %4526 = vmatpush2.bf16.msra.mxu0 %v4194
        %4527 = vmatprep.subr.bf16.mxu0 %v4187
        %4528 = vmatpush2.bf16.msra.mxu0 %v4186
        %4529 = vmatprep.subr.bf16.mxu0 %v4179
        %4530 = vmatpush2.bf16.msra.mxu0 %v4178
        %4531 = vmatprep.subr.bf16.mxu0 %v4171
        %4532 = vmatpush2.bf16.msra.mxu0 %v4170
        %4533 = vmatprep.subr.bf16.mxu0 %v4163
        %4534 = vmatpush2.bf16.msra.mxu0 %v4162
        %4535 = vmatprep.subr.bf16.mxu0 %v4155
        %4536 = vmatpush2.bf16.msra.mxu0 %v4154
        %4537 = vmatprep.subr.bf16.mxu0 %v4147
        %4538 = vmatpush2.bf16.msra.mxu0 %v4146
        %4539 = vmatprep.mubr.bf16.mxu0 %v2887
        %4540 = vmatmul.mubr.bf16.gmra.mxu0 %v2886
        %v4541 = vpop.f32.mrf.mxu0
        %v4542 = vadd.f32 %v4501, %v4541
        %v4543 = vpop.f32.mrf.mxu0
        %v4544 = vadd.f32 %v4503, %v4543
        %v4545 = vpop.f32.mrf.mxu0
        %v4546 = vpop.f32.mrf.mxu0
        %4547 = vdwg.mxu0
        %4548 = vmatprep.subr.bf16.mxu0 %v4013
        %4549 = vmatpush1.bf16.msra.mxu0 %v4012
        %4550 = vmatprep.subr.bf16.mxu0 %v4005
        %4551 = vmatpush1.bf16.msra.mxu0 %v4004
        %4552 = vmatprep.subr.bf16.mxu0 %v3997
        %4553 = vmatpush1.bf16.msra.mxu0 %v3996
        %4554 = vmatprep.subr.bf16.mxu0 %v3989
        %4555 = vmatpush1.bf16.msra.mxu0 %v3988
        %4556 = vmatprep.subr.bf16.mxu0 %v3981
        %4557 = vmatpush1.bf16.msra.mxu0 %v3980
        %4558 = vmatprep.subr.bf16.mxu0 %v3973
        %4559 = vmatpush1.bf16.msra.mxu0 %v3972
        %4560 = vmatprep.subr.bf16.mxu0 %v3965
        %4561 = vmatpush1.bf16.msra.mxu0 %v3964
        %4562 = vmatprep.subr.bf16.mxu0 %v3957
        %4563 = vmatpush1.bf16.msra.mxu0 %v3956
        %4564 = vmatprep.subr.bf16.mxu0 %v4077
        %4565 = vmatpush2.bf16.msra.mxu0 %v4076
        %4566 = vmatprep.subr.bf16.mxu0 %v4069
        %4567 = vmatpush2.bf16.msra.mxu0 %v4068
        %4568 = vmatprep.subr.bf16.mxu0 %v4061
        %4569 = vmatpush2.bf16.msra.mxu0 %v4060
        %4570 = vmatprep.subr.bf16.mxu0 %v4053
        %4571 = vmatpush2.bf16.msra.mxu0 %v4052
        %4572 = vmatprep.subr.bf16.mxu0 %v4045
        %4573 = vmatpush2.bf16.msra.mxu0 %v4044
        %4574 = vmatprep.subr.bf16.mxu0 %v4037
        %4575 = vmatpush2.bf16.msra.mxu0 %v4036
        %4576 = vmatprep.subr.bf16.mxu0 %v4029
        %4577 = vmatpush2.bf16.msra.mxu0 %v4028
        %4578 = vmatprep.subr.bf16.mxu0 %v4021
        %4579 = vmatpush2.bf16.msra.mxu0 %v4020
        %4580 = vmatprep.mubr.bf16.mxu0 %v2885
        %4581 = vmatmul.mubr.bf16.gmra.mxu0 %v2884
        %v4582 = vpop.f32.mrf.mxu0
        %v4583 = vadd.f32 %v3157, %v4582
        %v4584 = vpop.f32.mrf.mxu0
        %v4585 = vadd.f32 %v3161, %v4584
        %v4586 = vpop.f32.mrf.mxu0
        %v4587 = vpop.f32.mrf.mxu0
        %4588 = vdwg.mxu0
        %4589 = vmatprep.subr.bf16.mxu0 %v4141
        %4590 = vmatpush1.bf16.msra.mxu0 %v4140
        %4591 = vmatprep.subr.bf16.mxu0 %v4133
        %4592 = vmatpush1.bf16.msra.mxu0 %v4132
        %4593 = vmatprep.subr.bf16.mxu0 %v4125
        %4594 = vmatpush1.bf16.msra.mxu0 %v4124
        %4595 = vmatprep.subr.bf16.mxu0 %v4117
        %4596 = vmatpush1.bf16.msra.mxu0 %v4116
        %4597 = vmatprep.subr.bf16.mxu0 %v4109
        %4598 = vmatpush1.bf16.msra.mxu0 %v4108
        %4599 = vmatprep.subr.bf16.mxu0 %v4101
        %4600 = vmatpush1.bf16.msra.mxu0 %v4100
        %4601 = vmatprep.subr.bf16.mxu0 %v4093
        %4602 = vmatpush1.bf16.msra.mxu0 %v4092
        %4603 = vmatprep.subr.bf16.mxu0 %v4085
        %4604 = vmatpush1.bf16.msra.mxu0 %v4084
        %4605 = vmatprep.subr.bf16.mxu0 %v4205
        %4606 = vmatpush2.bf16.msra.mxu0 %v4204
        %4607 = vmatprep.subr.bf16.mxu0 %v4197
        %4608 = vmatpush2.bf16.msra.mxu0 %v4196
        %4609 = vmatprep.subr.bf16.mxu0 %v4189
        %4610 = vmatpush2.bf16.msra.mxu0 %v4188
        %4611 = vmatprep.subr.bf16.mxu0 %v4181
        %4612 = vmatpush2.bf16.msra.mxu0 %v4180
        %4613 = vmatprep.subr.bf16.mxu0 %v4173
        %4614 = vmatpush2.bf16.msra.mxu0 %v4172
        %4615 = vmatprep.subr.bf16.mxu0 %v4165
        %4616 = vmatpush2.bf16.msra.mxu0 %v4164
        %4617 = vmatprep.subr.bf16.mxu0 %v4157
        %4618 = vmatpush2.bf16.msra.mxu0 %v4156
        %4619 = vmatprep.subr.bf16.mxu0 %v4149
        %4620 = vmatpush2.bf16.msra.mxu0 %v4148
        %4621 = vmatprep.mubr.bf16.mxu0 %v2887
        %4622 = vmatmul.mubr.bf16.gmra.mxu0 %v2886
        %v4623 = vpop.f32.mrf.mxu0
        %v4624 = vadd.f32 %v4583, %v4623
        %v4625 = vpop.f32.mrf.mxu0
        %v4626 = vadd.f32 %v4585, %v4625
        %v4627 = vpop.f32.mrf.mxu0
        %v4628 = vpop.f32.mrf.mxu0
        %4629 = vdwg.mxu0
        %4630 = vmatprep.subr.bf16.mxu0 %v4015
        %4631 = vmatpush1.bf16.msra.mxu0 %v4014
        %4632 = vmatprep.subr.bf16.mxu0 %v4007
        %4633 = vmatpush1.bf16.msra.mxu0 %v4006
        %4634 = vmatprep.subr.bf16.mxu0 %v3999
        %4635 = vmatpush1.bf16.msra.mxu0 %v3998
        %4636 = vmatprep.subr.bf16.mxu0 %v3991
        %4637 = vmatpush1.bf16.msra.mxu0 %v3990
        %4638 = vmatprep.subr.bf16.mxu0 %v3983
        %4639 = vmatpush1.bf16.msra.mxu0 %v3982
        %4640 = vmatprep.subr.bf16.mxu0 %v3975
        %4641 = vmatpush1.bf16.msra.mxu0 %v3974
        %4642 = vmatprep.subr.bf16.mxu0 %v3967
        %4643 = vmatpush1.bf16.msra.mxu0 %v3966
        %4644 = vmatprep.subr.bf16.mxu0 %v3959
        %4645 = vmatpush1.bf16.msra.mxu0 %v3958
        %4646 = vmatprep.subr.bf16.mxu0 %v4079
        %4647 = vmatpush2.bf16.msra.mxu0 %v4078
        %4648 = vmatprep.subr.bf16.mxu0 %v4071
        %4649 = vmatpush2.bf16.msra.mxu0 %v4070
        %4650 = vmatprep.subr.bf16.mxu0 %v4063
        %4651 = vmatpush2.bf16.msra.mxu0 %v4062
        %4652 = vmatprep.subr.bf16.mxu0 %v4055
        %4653 = vmatpush2.bf16.msra.mxu0 %v4054
        %4654 = vmatprep.subr.bf16.mxu0 %v4047
        %4655 = vmatpush2.bf16.msra.mxu0 %v4046
        %4656 = vmatprep.subr.bf16.mxu0 %v4039
        %4657 = vmatpush2.bf16.msra.mxu0 %v4038
        %4658 = vmatprep.subr.bf16.mxu0 %v4031
        %4659 = vmatpush2.bf16.msra.mxu0 %v4030
        %4660 = vmatprep.subr.bf16.mxu0 %v4023
        %4661 = vmatpush2.bf16.msra.mxu0 %v4022
        %4662 = vmatprep.mubr.bf16.mxu0 %v2885
        %4663 = vmatmul.mubr.bf16.gmra.mxu0 %v2884
        %v4664 = vpop.f32.mrf.mxu0
        %v4665 = vadd.f32 %v3165, %v4664
        %v4666 = vpop.f32.mrf.mxu0
        %v4667 = vadd.f32 %v3169, %v4666
        %v4668 = vpop.f32.mrf.mxu0
        %v4669 = vpop.f32.mrf.mxu0
        %4670 = vdwg.mxu0
        %4671 = vmatprep.subr.bf16.mxu0 %v4143
        %4672 = vmatpush1.bf16.msra.mxu0 %v4142
        %4673 = vmatprep.subr.bf16.mxu0 %v4135
        %4674 = vmatpush1.bf16.msra.mxu0 %v4134
        %4675 = vmatprep.subr.bf16.mxu0 %v4127
        %4676 = vmatpush1.bf16.msra.mxu0 %v4126
        %4677 = vmatprep.subr.bf16.mxu0 %v4119
        %4678 = vmatpush1.bf16.msra.mxu0 %v4118
        %4679 = vmatprep.subr.bf16.mxu0 %v4111
        %4680 = vmatpush1.bf16.msra.mxu0 %v4110
        %4681 = vmatprep.subr.bf16.mxu0 %v4103
        %4682 = vmatpush1.bf16.msra.mxu0 %v4102
        %4683 = vmatprep.subr.bf16.mxu0 %v4095
        %4684 = vmatpush1.bf16.msra.mxu0 %v4094
        %4685 = vmatprep.subr.bf16.mxu0 %v4087
        %4686 = vmatpush1.bf16.msra.mxu0 %v4086
        %4687 = vmatprep.subr.bf16.mxu0 %v4207
        %4688 = vmatpush2.bf16.msra.mxu0 %v4206
        %4689 = vmatprep.subr.bf16.mxu0 %v4199
        %4690 = vmatpush2.bf16.msra.mxu0 %v4198
        %4691 = vmatprep.subr.bf16.mxu0 %v4191
        %4692 = vmatpush2.bf16.msra.mxu0 %v4190
        %4693 = vmatprep.subr.bf16.mxu0 %v4183
        %4694 = vmatpush2.bf16.msra.mxu0 %v4182
        %4695 = vmatprep.subr.bf16.mxu0 %v4175
        %4696 = vmatpush2.bf16.msra.mxu0 %v4174
        %4697 = vmatprep.subr.bf16.mxu0 %v4167
        %4698 = vmatpush2.bf16.msra.mxu0 %v4166
        %4699 = vmatprep.subr.bf16.mxu0 %v4159
        %4700 = vmatpush2.bf16.msra.mxu0 %v4158
        %4701 = vmatprep.subr.bf16.mxu0 %v4151
        %4702 = vmatpush2.bf16.msra.mxu0 %v4150
        %4703 = vmatprep.mubr.bf16.mxu0 %v2887
        %4704 = vmatmul.mubr.bf16.gmra.mxu0 %v2886
        %v4705 = vpop.f32.mrf.mxu0
        %v4706 = vadd.f32 %v4665, %v4705
        %v4707 = vpop.f32.mrf.mxu0
        %v4708 = vadd.f32 %v4667, %v4707
        %v4709 = vpop.f32.mrf.mxu0
        %v4710 = vpop.f32.mrf.mxu0
        %4711 = vdwg.mxu0
        %4712 = vmatprep.subr.bf16.mxu0 %v4017
        %4713 = vmatpush1.bf16.msra.mxu0 %v4016
        %4714 = vmatprep.subr.bf16.mxu0 %v4009
        %4715 = vmatpush1.bf16.msra.mxu0 %v4008
        %4716 = vmatprep.subr.bf16.mxu0 %v4001
        %4717 = vmatpush1.bf16.msra.mxu0 %v4000
        %4718 = vmatprep.subr.bf16.mxu0 %v3993
        %4719 = vmatpush1.bf16.msra.mxu0 %v3992
        %4720 = vmatprep.subr.bf16.mxu0 %v3985
        %4721 = vmatpush1.bf16.msra.mxu0 %v3984
        %4722 = vmatprep.subr.bf16.mxu0 %v3977
        %4723 = vmatpush1.bf16.msra.mxu0 %v3976
        %4724 = vmatprep.subr.bf16.mxu0 %v3969
        %4725 = vmatpush1.bf16.msra.mxu0 %v3968
        %4726 = vmatprep.subr.bf16.mxu0 %v3961
        %4727 = vmatpush1.bf16.msra.mxu0 %v3960
        %4728 = vmatprep.subr.bf16.mxu0 %v4081
        %4729 = vmatpush2.bf16.msra.mxu0 %v4080
        %4730 = vmatprep.subr.bf16.mxu0 %v4073
        %4731 = vmatpush2.bf16.msra.mxu0 %v4072
        %4732 = vmatprep.subr.bf16.mxu0 %v4065
        %4733 = vmatpush2.bf16.msra.mxu0 %v4064
        %4734 = vmatprep.subr.bf16.mxu0 %v4057
        %4735 = vmatpush2.bf16.msra.mxu0 %v4056
        %4736 = vmatprep.subr.bf16.mxu0 %v4049
        %4737 = vmatpush2.bf16.msra.mxu0 %v4048
        %4738 = vmatprep.subr.bf16.mxu0 %v4041
        %4739 = vmatpush2.bf16.msra.mxu0 %v4040
        %4740 = vmatprep.subr.bf16.mxu0 %v4033
        %4741 = vmatpush2.bf16.msra.mxu0 %v4032
        %4742 = vmatprep.subr.bf16.mxu0 %v4025
        %4743 = vmatpush2.bf16.msra.mxu0 %v4024
        %4744 = vmatprep.mubr.bf16.mxu0 %v2885
        %4745 = vmatmul.mubr.bf16.gmra.mxu0 %v2884
        %v4746 = vpop.f32.mrf.mxu0
        %v4747 = vadd.f32 %v3173, %v4746
        %v4748 = vpop.f32.mrf.mxu0
        %v4749 = vadd.f32 %v3177, %v4748
        %v4750 = vpop.f32.mrf.mxu0
        %v4751 = vpop.f32.mrf.mxu0
        %4752 = vdwg.mxu0
        %4753 = vmatprep.subr.bf16.mxu0 %v4145
        %4754 = vmatpush1.bf16.msra.mxu0 %v4144
        %4755 = vmatprep.subr.bf16.mxu0 %v4137
        %4756 = vmatpush1.bf16.msra.mxu0 %v4136
        %4757 = vmatprep.subr.bf16.mxu0 %v4129
        %4758 = vmatpush1.bf16.msra.mxu0 %v4128
        %4759 = vmatprep.subr.bf16.mxu0 %v4121
        %4760 = vmatpush1.bf16.msra.mxu0 %v4120
        %4761 = vmatprep.subr.bf16.mxu0 %v4113
        %4762 = vmatpush1.bf16.msra.mxu0 %v4112
        %4763 = vmatprep.subr.bf16.mxu0 %v4105
        %4764 = vmatpush1.bf16.msra.mxu0 %v4104
        %4765 = vmatprep.subr.bf16.mxu0 %v4097
        %4766 = vmatpush1.bf16.msra.mxu0 %v4096
        %4767 = vmatprep.subr.bf16.mxu0 %v4089
        %4768 = vmatpush1.bf16.msra.mxu0 %v4088
        %4769 = vmatprep.subr.bf16.mxu0 %v4209
        %4770 = vmatpush2.bf16.msra.mxu0 %v4208
        %4771 = vmatprep.subr.bf16.mxu0 %v4201
        %4772 = vmatpush2.bf16.msra.mxu0 %v4200
        %4773 = vmatprep.subr.bf16.mxu0 %v4193
        %4774 = vmatpush2.bf16.msra.mxu0 %v4192
        %4775 = vmatprep.subr.bf16.mxu0 %v4185
        %4776 = vmatpush2.bf16.msra.mxu0 %v4184
        %4777 = vmatprep.subr.bf16.mxu0 %v4177
        %4778 = vmatpush2.bf16.msra.mxu0 %v4176
        %4779 = vmatprep.subr.bf16.mxu0 %v4169
        %4780 = vmatpush2.bf16.msra.mxu0 %v4168
        %4781 = vmatprep.subr.bf16.mxu0 %v4161
        %4782 = vmatpush2.bf16.msra.mxu0 %v4160
        %4783 = vmatprep.subr.bf16.mxu0 %v4153
        %4784 = vmatpush2.bf16.msra.mxu0 %v4152
        %4785 = vmatprep.mubr.bf16.mxu0 %v2887
        %4786 = vmatmul.mubr.bf16.gmra.mxu0 %v2886
        %v4787 = vpop.f32.mrf.mxu0
        %v4788 = vadd.f32 %v4747, %v4787
        %v4789 = vpop.f32.mrf.mxu0
        %v4790 = vadd.f32 %v4749, %v4789
        %v4791 = vpop.f32.mrf.mxu0
        %v4792 = vpop.f32.mrf.mxu0
        %4793 = vdwg.mxu0
        %v4802 = vcombine.low %v4542, %v4544
        %v4803 = vcombine.low %v4624, %v4626
        %v4805 = vunpack.c.l.s4 1983009808
        %v4806 = vunpack.c.0.s8 %v4805
        %v4807 = vlaneseq
        %v4808 = vshrl.u32 %v4807, 7
        %v4809 = vsub.s32 %v4806, %v4808
        %v4810 = vrot.slane %v4802, %v4809
        %v4812 = vunpack.c.l.s4 1983009808
        %v4813 = vunpack.c.0.s8 %v4812
        %v4814 = vlaneseq
        %v4815 = vshrl.u32 %v4814, 7
        %v4816 = vsub.s32 %v4813, %v4815
        %v4817 = vrot.slane %v4803, %v4816
        %v4818 = vcombine.low %v4810, %v4817
        %v4819 = vcombine.low %v4706, %v4708
        %v4820 = vcombine.low %v4788, %v4790
        %v4822 = vunpack.c.l.s4 1983009808
        %v4823 = vunpack.c.0.s8 %v4822
        %v4824 = vlaneseq
        %v4825 = vshrl.u32 %v4824, 7
        %v4826 = vsub.s32 %v4823, %v4825
        %v4827 = vrot.slane %v4819, %v4826
        %v4829 = vunpack.c.l.s4 1983009808
        %v4830 = vunpack.c.0.s8 %v4829
        %v4831 = vlaneseq
        %v4832 = vshrl.u32 %v4831, 7
        %v4833 = vsub.s32 %v4830, %v4832
        %v4834 = vrot.slane %v4820, %v4833
        %v4835 = vcombine.low %v4827, %v4834
        %4838 = vst [vmem:[%s774] sm:$0xff] %v4818
        %4839 = vst [vmem:[%s774 + $0x8] sm:$0xff] %v4835
        %s4840 = smul.u32 8, %s16
        %p4841 = scmp.lt.s32.totalorder %s4840, 15
        %s4842 = scalar_select %p4841, %s4840, 15
        %s4843 = smul.addr %s4842, 2
        %s4844 = scalar_lea.vmem %s5, %s4843
        // Predicated region
        $region64: #{_lambda_.1} parent=58 // pred_check
          %p4845 = pneg %p149
        $region65: #{_lambda_.1} parent=58 // pred_check_branch
          %4847 = sbr.rel (%p4845) target = $region67
        $region66: #{_lambda_.1} parent=58 // pred_region
          %s4848 = smul.u32 8, %s16
        $region67: #{_lambda_.1} parent=58 // pred_fallthru
          _
      $region59: #{_lambda_.1} parent=5 // pred_fallthru
        _
      %p4849 = scmp.le.s32.totalorder 2, %s11
      // Predicated region
      $region68: #{_lambda_.1} parent=5 // pred_check
        %p4850 = pneg %p4849
      $region69: #{_lambda_.1} parent=5 // pred_check_branch
        %4852 = sbr.rel (%p4850) target = $region71
      $region70: #{_lambda_.1} parent=5 // pred_region
        %s4853 = ssub.s32 %s11, 2
        // Predicated region
        $region72: #{_lambda_.1} parent=70 // pred_check
          %p4854 = pneg %p155
        $region73: #{_lambda_.1} parent=70 // pred_check_branch
          %4856 = sbr.rel (%p4854) target = $region75
        $region74: #{_lambda_.1} parent=70 // pred_region
          %s4857 = smul.u32 8, %s17
          %p4858 = scmp.lt.s32.totalorder %s4857, 15
          %s4859 = scalar_select %p4858, %s4857, 15
          %s4860 = smul.addr %s4859, 2
          %s4861 = scalar_lea.vmem %s5, %s4860
        $region75: #{_lambda_.1} parent=70 // pred_fallthru
          _
      $region71: #{_lambda_.1} parent=5 // pred_fallthru
        _
    $region6: #{_lambda_.1} parent=1 // loop_footer
      %s15 = sadd.s32 1, %s11
    $region7: #{_lambda_.1} parent=1 // loop_footer_branch
      %10 = sbr.rel target = $region3
    $region8: #{_lambda_.1} parent=1 // loop_exit
      _

</llo_original>
